<compile_context>
chip_gen: v6e
topology: v6e:2x2x1
jax: 0.10.0
libtpu: 0.0.40
codegen_flags: <defaults>
</compile_context>

<pallas_src>
import functools

import jax
import jax.numpy as jnp
from jax import lax
from jax.experimental import pallas as pl
from jax.experimental.pallas import tpu as pltpu

INPUT_SIZE = 16
HIDDEN = 32          # 4*H = 128 lanes per direction, 8*H = 256 for both dirs
NUM_LAYERS = 2
BATCH = 4
SEQ = 8


# --------------------------------------------------------------------------- #
# Fused kernel: [bi-LSTM layer 1] -> [bi-LSTM layer 2] -> [fc/relu MLP head]
# --------------------------------------------------------------------------- #
def _fused_kernel(x_ref, wih1_ref, whh1_ref, b1_ref,
                  wih2_ref, whh2_ref, b2_ref,
                  fw1_ref, fb1_ref, fw2_ref, fb2_ref,
                  fw3_ref, fb3_ref, fw4_ref, fb4_ref,
                  out_ref, gx_scr, seq_scr, *, T, B, H):
    f32 = jnp.float32
    # Lane mask: True on the forward-direction half of every 2H-wide gate block.
    col = lax.broadcasted_iota(jnp.int32, (B, 8 * H), 1)
    is_fwd = (col % (2 * H)) < H

    def run_layer(whh, store_out):
        """Fused fwd+bwd recurrence. gx_scr holds x@Wih + b for every timestep.
        State lane layout: h = [h_fwd | h_bwd], c = [c_fwd | c_bwd]  -> (B, 2H)."""
        h = jnp.zeros((B, 2 * H), f32)
        c = jnp.zeros((B, 2 * H), f32)
        for s in range(T):                       # static unroll, T is small
            rs = T - 1 - s                       # backward direction reads time rs
            gx_s = gx_scr[s * B:(s + 1) * B, :]
            gx_r = gx_scr[rs * B:(rs + 1) * B, :]
            gates = (jnp.where(is_fwd, gx_s, gx_r)
                     + jnp.dot(h, whh, preferred_element_type=f32))
            sig = jax.nn.sigmoid(gates[:, 0:6 * H])      # i | f | o  (one EUP pass)
            i_g = sig[:, 0:2 * H]
            f_g = sig[:, 2 * H:4 * H]
            o_g = sig[:, 4 * H:6 * H]
            g_g = jnp.tanh(gates[:, 6 * H:8 * H])        # g          (one EUP pass)
            c = f_g * c + i_g * g_g
            h = o_g * jnp.tanh(c)
            if store_out:
                # Layer output, lane layout [fwd | bwd]; the backward hidden of
                # processing step s belongs to output timestep rs.
                seq_scr[s * B:(s + 1) * B, 0:H] = h[:, 0:H]
                seq_scr[rs * B:(rs + 1) * B, H:2 * H] = h[:, H:2 * H]
        return h

    # ---- layer 1: hoisted input projection (one matmul for all T, both dirs) ----
    gx_scr[...] = (jnp.dot(x_ref[...], wih1_ref[...], preferred_element_type=f32)
                   + b1_ref[...])
    run_layer(whh1_ref[...], store_out=True)

    # ---- layer 2 (input = layer-1 [fwd | bwd] sequence, kept in VMEM) -----------
    gx_scr[...] = (jnp.dot(seq_scr[...], wih2_ref[...], preferred_element_type=f32)
                   + b2_ref[...])
    h2 = run_layer(whh2_ref[...], store_out=False)

    # ---- MLP head ---------------------------------------------------------------
    # TODO(synk): the PyTorch module declares fc = nn.Linear(hidden_size, 64) even
    # though a bidirectional LSTM emits 2*hidden_size features (the reference
    # forward would raise a shape error); we honor the declared head shapes by
    # feeding the forward-direction half of the last-timestep output.
    feat = h2[:, 0:H]
    y = jnp.maximum(jnp.dot(feat, fw1_ref[...], preferred_element_type=f32)
                    + fb1_ref[...], 0.0)
    y = jnp.maximum(jnp.dot(y, fw2_ref[...], preferred_element_type=f32)
                    + fb2_ref[...], 0.0)
    y = jnp.maximum(jnp.dot(y, fw3_ref[...], preferred_element_type=f32)
                    + fb3_ref[...], 0.0)
    out_ref[...] = (jnp.dot(y, fw4_ref[...], preferred_element_type=f32)
                    + fb4_ref[...])


# --------------------------------------------------------------------------- #
# Wrapper: single pallas_call for the whole forward pass
# --------------------------------------------------------------------------- #
def bidirection_lstm_forward(x, packed):
    """x: (B, T, I) float32 (batch_first) -> (B, 1) float32."""
    B, T, I = x.shape
    Bp = ((B + 7) // 8) * 8                      # pad batch to a full sublane tile
    x_tm = jnp.transpose(x, (1, 0, 2))           # (T, B, I)  (tiny layout prep)
    x_tm = jnp.pad(x_tm, ((0, 0), (0, Bp - B), (0, 0)))
    x2d = x_tm.reshape(T * Bp, I)                # row index = t*Bp + b

    args = (x2d,) + tuple(packed)
    kernel = functools.partial(_fused_kernel, T=T, B=Bp, H=HIDDEN)
    out = pl.pallas_call(
        kernel,
        out_shape=jax.ShapeDtypeStruct((Bp, 1), jnp.float32),
        grid=(1,),
        in_specs=[pl.BlockSpec(a.shape, lambda i: (0, 0)) for a in args],
        out_specs=pl.BlockSpec((Bp, 1), lambda i: (0, 0)),
        scratch_shapes=[
            pltpu.VMEM((T * Bp, 8 * HIDDEN), jnp.float32),   # gate pre-acts (reused per layer)
            pltpu.VMEM((T * Bp, 2 * HIDDEN), jnp.float32),   # layer-1 output sequence
        ],
    )(*args)
    return out[:B]


bidirection_lstm_forward_jit = jax.jit(bidirection_lstm_forward)


# --------------------------------------------------------------------------- #
# Parameters: PyTorch-style raw params + packing into the fused layout
# --------------------------------------------------------------------------- #
def init_raw_params(key):
    """Raw params, input-major: W_ih (D,4H), W_hh (H,4H); PyTorch gate order
    [i,f,g,o]; biases pre-summed (b_ih + b_hh)."""
    raw = {"lstm": [], "head": []}
    bound = 1.0 / (HIDDEN ** 0.5)
    for layer in range(NUM_LAYERS):
        d_in = INPUT_SIZE if layer == 0 else 2 * HIDDEN
        dirs = []
        for _direction in range(2):              # forward, backward
            key, k1, k2, k3, k4 = jax.random.split(key, 5)
            wih = jax.random.uniform(k1, (d_in, 4 * HIDDEN), jnp.float32, -bound, bound)
            whh = jax.random.uniform(k2, (HIDDEN, 4 * HIDDEN), jnp.float32, -bound, bound)
            bih = jax.random.uniform(k3, (1, 4 * HIDDEN), jnp.float32, -bound, bound)
            bhh = jax.random.uniform(k4, (1, 4 * HIDDEN), jnp.float32, -bound, bound)
            dirs.append((wih, whh, bih + bhh))
        raw["lstm"].append(dirs)
    for fan_in, fan_out in [(HIDDEN, 64), (64, 32), (32, 8), (8, 1)]:
        key, kw, kb = jax.random.split(key, 3)
        hb = 1.0 / (fan_in ** 0.5)
        raw["head"].append(
            (jax.random.uniform(kw, (fan_in, fan_out), jnp.float32, -hb, hb),
             jax.random.uniform(kb, (1, fan_out), jnp.float32, -hb, hb)))
    return raw


def _pack_bilstm(wih_f, whh_f, b_f, wih_b, whh_b, b_b, H):
    """Pack fwd/bwd weights for the fused direction kernel.
    Packed column order (8H wide): [ i_f i_b | f_f f_b | o_f o_b | g_f g_b ]."""
    order = (0, 1, 3, 2)                        # PyTorch gate order is [i, f, g, o]

    def gate(w, k):
        return w[:, k * H:(k + 1) * H]

    def blkdiag(a, b):
        za, zb = jnp.zeros_like(a), jnp.zeros_like(b)
        return jnp.concatenate(
            [jnp.concatenate([a, za], axis=1), jnp.concatenate([zb, b], axis=1)], axis=0)

    wih_p = jnp.concatenate(
        [jnp.concatenate([gate(wih_f, k), gate(wih_b, k)], axis=1) for k in order], axis=1)
    whh_p = jnp.concatenate(
        [blkdiag(gate(whh_f, k), gate(whh_b, k)) for k in order], axis=1)
    b_p = jnp.concatenate(
        [jnp.concatenate([gate(b_f, k), gate(b_b, k)], axis=1) for k in order], axis=1)
    return wih_p, whh_p, b_p


def pack_params(raw):
    packed = []
    for layer in range(NUM_LAYERS):
        (wf, hf, bf), (wb, hb, bb) = raw["lstm"][layer]
        packed.extend(_pack_bilstm(wf, hf, bf, wb, hb, bb, HIDDEN))
    for w, b in raw["head"]:
        packed.extend([w, b])
    return tuple(packed)


# --------------------------------------------------------------------------- #
# Pure-JAX reference (same documented head semantics) for a correctness check
# --------------------------------------------------------------------------- #
def _lstm_dir_ref(x_tm, wih, whh, b):
    T, B, _ = x_tm.shape
    H = whh.shape[0]
    h = jnp.zeros((B, H), jnp.float32)
    c = jnp.zeros((B, H), jnp.float32)
    outs = []
    for t in range(T):
        gates = x_tm[t] @ wih + h @ whh + b
        i = jax.nn.sigmoid(gates[:, 0:H])
        f = jax.nn.sigmoid(gates[:, H:2 * H])
        g = jnp.tanh(gates[:, 2 * H:3 * H])
        o = jax.nn.sigmoid(gates[:, 3 * H:4 * H])
        c = f * c + i * g
        h = o * jnp.tanh(c)
        outs.append(h)
    return jnp.stack(outs, axis=0)


def reference_forward(x, raw):
    layer_in = jnp.transpose(x, (1, 0, 2))
    for layer in range(NUM_LAYERS):
        (wf, hf, bf), (wb, hb, bb) = raw["lstm"][layer]
        out_f = _lstm_dir_ref(layer_in, wf, hf, bf)
        out_b = _lstm_dir_ref(layer_in[::-1], wb, hb, bb)[::-1]
        layer_in = jnp.concatenate([out_f, out_b], axis=-1)
    feat = layer_in[-1][:, :HIDDEN]
    (w1, c1), (w2, c2), (w3, c3), (w4, c4) = raw["head"]
    y = jnp.maximum(feat @ w1 + c1, 0.0)
    y = jnp.maximum(y @ w2 + c2, 0.0)
    y = jnp.maximum(y @ w3 + c3, 0.0)
    return y @ w4 + c4


if __name__ == "__main__":
    key = jax.random.PRNGKey(0)
    key, kx, kp = jax.random.split(key, 3)
    x = jax.random.normal(kx, (BATCH, SEQ, INPUT_SIZE), jnp.float32)
    raw = init_raw_params(kp)
    packed = pack_params(raw)

    out = bidirection_lstm_forward_jit(x, packed)
    jax.block_until_ready(out)
    assert out.shape == (BATCH, 1)

    ref = reference_forward(x, raw)
    assert jnp.allclose(out, ref, rtol=1e-2, atol=1e-2), (out, ref)
    print("KERNEL_OK")
</pallas_src>

<mosaic_0001>
module attributes {stable_mosaic.version = 11 : i64} {
  func.func @_fused_kernel(%arg0: i32, %arg1: memref<64x16xf32, #tpu.memory_space<vmem>>, %arg2: memref<16x256xf32, #tpu.memory_space<vmem>>, %arg3: memref<64x256xf32, #tpu.memory_space<vmem>>, %arg4: memref<1x256xf32, #tpu.memory_space<vmem>>, %arg5: memref<64x256xf32, #tpu.memory_space<vmem>>, %arg6: memref<64x256xf32, #tpu.memory_space<vmem>>, %arg7: memref<1x256xf32, #tpu.memory_space<vmem>>, %arg8: memref<32x64xf32, #tpu.memory_space<vmem>>, %arg9: memref<1x64xf32, #tpu.memory_space<vmem>>, %arg10: memref<64x32xf32, #tpu.memory_space<vmem>>, %arg11: memref<1x32xf32, #tpu.memory_space<vmem>>, %arg12: memref<32x8xf32, #tpu.memory_space<vmem>>, %arg13: memref<1x8xf32, #tpu.memory_space<vmem>>, %arg14: memref<8x1xf32, #tpu.memory_space<vmem>>, %arg15: memref<1x1xf32, #tpu.memory_space<vmem>>, %arg16: memref<8x1xf32, #tpu.memory_space<vmem>>, %arg17: memref<64x256xf32, #tpu.memory_space<vmem>>, %arg18: memref<64x64xf32, #tpu.memory_space<vmem>>) attributes {dimension_semantics = [#tpu.dimension_semantics<arbitrary>], iteration_bounds = array<i64: 1>, scalar_prefetch = 0 : i64, scratch_operands = 2 : i64, tpu.core_type = #tpu.core_type<tc>, window_params = [{pipeline_mode = #tpu.pipeline_mode<synchronous>, transform_indices = @transform_0, window_bounds = array<i64: 64, 16>}, {pipeline_mode = #tpu.pipeline_mode<synchronous>, transform_indices = @transform_1, window_bounds = array<i64: 16, 256>}, {pipeline_mode = #tpu.pipeline_mode<synchronous>, transform_indices = @transform_2, window_bounds = array<i64: 64, 256>}, {pipeline_mode = #tpu.pipeline_mode<synchronous>, transform_indices = @transform_3, window_bounds = array<i64: 1, 256>}, {pipeline_mode = #tpu.pipeline_mode<synchronous>, transform_indices = @transform_4, window_bounds = array<i64: 64, 256>}, {pipeline_mode = #tpu.pipeline_mode<synchronous>, transform_indices = @transform_5, window_bounds = array<i64: 64, 256>}, {pipeline_mode = #tpu.pipeline_mode<synchronous>, transform_indices = @transform_6, window_bounds = array<i64: 1, 256>}, {pipeline_mode = #tpu.pipeline_mode<synchronous>, transform_indices = @transform_7, window_bounds = array<i64: 32, 64>}, {pipeline_mode = #tpu.pipeline_mode<synchronous>, transform_indices = @transform_8, window_bounds = array<i64: 1, 64>}, {pipeline_mode = #tpu.pipeline_mode<synchronous>, transform_indices = @transform_9, window_bounds = array<i64: 64, 32>}, {pipeline_mode = #tpu.pipeline_mode<synchronous>, transform_indices = @transform_10, window_bounds = array<i64: 1, 32>}, {pipeline_mode = #tpu.pipeline_mode<synchronous>, transform_indices = @transform_11, window_bounds = array<i64: 32, 8>}, {pipeline_mode = #tpu.pipeline_mode<synchronous>, transform_indices = @transform_12, window_bounds = array<i64: 1, 8>}, {pipeline_mode = #tpu.pipeline_mode<synchronous>, transform_indices = @transform_13, window_bounds = array<i64: 8, 1>}, {pipeline_mode = #tpu.pipeline_mode<synchronous>, transform_indices = @transform_14, window_bounds = array<i64: 1, 1>}, {pipeline_mode = #tpu.pipeline_mode<synchronous>, transform_indices = @transform_15, window_bounds = array<i64: 8, 1>}]} {
    %0 = tpu.iota {dimensions = array<i32: 1>} : vector<8x256xi32>
    %c64_i32 = arith.constant 64 : i32
    %c0_i32 = arith.constant 0 : i32
    %1 = arith.cmpi eq, %c64_i32, %c0_i32 : i32
    %c1_i32 = arith.constant 1 : i32
    %2 = arith.select %1, %c1_i32, %c64_i32 : i32
    %3 = vector.broadcast %2 : i32 to vector<8x256xi32>
    %4 = arith.remsi %0, %3 : vector<8x256xi32>
    %c0_i32_0 = arith.constant 0 : i32
    %5 = vector.broadcast %c0_i32_0 : i32 to vector<8x256xi32>
    %6 = arith.cmpi ne, %4, %5 : vector<8x256xi32>
    %c0_i32_1 = arith.constant 0 : i32
    %7 = vector.broadcast %c0_i32_1 : i32 to vector<8x256xi32>
    %8 = arith.cmpi slt, %4, %7 : vector<8x256xi32>
    %c0_i32_2 = arith.constant 0 : i32
    %9 = arith.cmpi slt, %2, %c0_i32_2 : i32
    %10 = vector.broadcast %9 : i1 to vector<8x256xi1>
    %11 = vector.broadcast %10 : vector<8x256xi1> to vector<8x256xi1>
    %12 = arith.xori %8, %11 : vector<8x256xi1>
    %13 = arith.andi %12, %6 : vector<8x256xi1>
    %14 = vector.broadcast %2 : i32 to vector<8x256xi32>
    %15 = arith.addi %4, %14 : vector<8x256xi32>
    %16 = arith.select %13, %15, %4 : vector<8x256xi1>, vector<8x256xi32>
    %c32_i32 = arith.constant 32 : i32
    %17 = vector.broadcast %c32_i32 : i32 to vector<8x256xi32>
    %18 = arith.cmpi slt, %16, %17 : vector<8x256xi32>
    %c0 = arith.constant 0 : index
    %c0_3 = arith.constant 0 : index
    %19 = vector.load %arg1[%c0, %c0_3] : memref<64x16xf32, #tpu.memory_space<vmem>>, vector<64x16xf32>
    %c0_4 = arith.constant 0 : index
    %c0_5 = arith.constant 0 : index
    %20 = vector.load %arg2[%c0_4, %c0_5] : memref<16x256xf32, #tpu.memory_space<vmem>>, vector<16x256xf32>
    %cst = arith.constant dense<0.000000e+00> : vector<64x256xf32>
    %21 = tpu.matmul %19, %20, %cst {dimension_numbers = #tpu.dot_dimension_numbers<[1], [0], [0], [1], [0, 0, 1, 1], [], []>} : vector<64x16xf32>, vector<16x256xf32>, vector<64x256xf32> -> vector<64x256xf32>
    %c0_6 = arith.constant 0 : index
    %c0_7 = arith.constant 0 : index
    %22 = vector.load %arg4[%c0_6, %c0_7] : memref<1x256xf32, #tpu.memory_space<vmem>>, vector<1x256xf32>
    %23 = vector.broadcast %22 : vector<1x256xf32> to vector<64x256xf32>
    %24 = arith.addf %21, %23 : vector<64x256xf32>
    %c0_8 = arith.constant 0 : index
    %c0_9 = arith.constant 0 : index
    %25 = vector.load %arg17[%c0_8, %c0_9] : memref<64x256xf32, #tpu.memory_space<vmem>>, vector<64x256xf32>
    tpu.vector_store %arg17[%c0_8, %c0_9], %24 {strides = array<i32>} : memref<64x256xf32, #tpu.memory_space<vmem>>, vector<64x256xf32>,
    %c0_10 = arith.constant 0 : index
    %c0_11 = arith.constant 0 : index
    %26 = vector.load %arg3[%c0_10, %c0_11] : memref<64x256xf32, #tpu.memory_space<vmem>>, vector<64x256xf32>
    %cst_12 = arith.constant 0.000000e+00 : f32
    %27 = vector.broadcast %cst_12 : f32 to vector<8x64xf32>
    %cst_13 = arith.constant 0.000000e+00 : f32
    %28 = vector.broadcast %cst_13 : f32 to vector<8x64xf32>
    %c0_14 = arith.constant 0 : index
    %c0_15 = arith.constant 0 : index
    %29 = vector.load %arg17[%c0_14, %c0_15] : memref<64x256xf32, #tpu.memory_space<vmem>>, vector<8x256xf32>
    %c56 = arith.constant 56 : index
    %c0_16 = arith.constant 0 : index
    %30 = vector.load %arg17[%c56, %c0_16] : memref<64x256xf32, #tpu.memory_space<vmem>>, vector<8x256xf32>
    %31 = arith.select %18, %29, %30 : vector<8x256xi1>, vector<8x256xf32>
    %cst_17 = arith.constant dense<0.000000e+00> : vector<8x256xf32>
    %32 = tpu.matmul %27, %26, %cst_17 {dimension_numbers = #tpu.dot_dimension_numbers<[1], [0], [0], [1], [0, 0, 1, 1], [], []>} : vector<8x64xf32>, vector<64x256xf32>, vector<8x256xf32> -> vector<8x256xf32>
    %33 = arith.addf %31, %32 : vector<8x256xf32>
    %34 = vector.extract_strided_slice %33 {offsets = [0, 0], sizes = [8, 192], strides = [1, 1]} : vector<8x256xf32> to vector<8x192xf32>
    %35 = arith.negf %34 : vector<8x192xf32>
    %36 = math.exp %35 : vector<8x192xf32>
    %cst_18 = arith.constant 1.000000e+00 : f32
    %37 = vector.broadcast %cst_18 : f32 to vector<8x192xf32>
    %38 = arith.addf %37, %36 : vector<8x192xf32>
    %39 = arith.divf %37, %38 : vector<8x192xf32>
    %40 = vector.extract_strided_slice %39 {offsets = [0, 0], sizes = [8, 64], strides = [1, 1]} : vector<8x192xf32> to vector<8x64xf32>
    %41 = vector.extract_strided_slice %39 {offsets = [0, 64], sizes = [8, 64], strides = [1, 1]} : vector<8x192xf32> to vector<8x64xf32>
    %42 = vector.extract_strided_slice %39 {offsets = [0, 128], sizes = [8, 64], strides = [1, 1]} : vector<8x192xf32> to vector<8x64xf32>
    %43 = vector.extract_strided_slice %33 {offsets = [0, 192], sizes = [8, 64], strides = [1, 1]} : vector<8x256xf32> to vector<8x64xf32>
    %44 = math.tanh %43 : vector<8x64xf32>
    %45 = arith.mulf %41, %28 : vector<8x64xf32>
    %46 = arith.mulf %40, %44 : vector<8x64xf32>
    %47 = arith.addf %45, %46 : vector<8x64xf32>
    %48 = math.tanh %47 : vector<8x64xf32>
    %49 = arith.mulf %42, %48 : vector<8x64xf32>
    %50 = vector.extract_strided_slice %49 {offsets = [0, 0], sizes = [8, 32], strides = [1, 1]} : vector<8x64xf32> to vector<8x32xf32>
    %c0_19 = arith.constant 0 : index
    %c0_20 = arith.constant 0 : index
    %51 = vector.load %arg18[%c0_19, %c0_20] : memref<64x64xf32, #tpu.memory_space<vmem>>, vector<8x32xf32>
    tpu.vector_store %arg18[%c0_19, %c0_20], %50 {strides = array<i32>} : memref<64x64xf32, #tpu.memory_space<vmem>>, vector<8x32xf32>,
    %52 = vector.extract_strided_slice %49 {offsets = [0, 32], sizes = [8, 32], strides = [1, 1]} : vector<8x64xf32> to vector<8x32xf32>
    %c56_21 = arith.constant 56 : index
    %c32 = arith.constant 32 : index
    %53 = vector.load %arg18[%c56_21, %c32] : memref<64x64xf32, #tpu.memory_space<vmem>>, vector<8x32xf32>
    tpu.vector_store %arg18[%c56_21, %c32], %52 {strides = array<i32>} : memref<64x64xf32, #tpu.memory_space<vmem>>, vector<8x32xf32>,
    %c8 = arith.constant 8 : index
    %c0_22 = arith.constant 0 : index
    %54 = vector.load %arg17[%c8, %c0_22] : memref<64x256xf32, #tpu.memory_space<vmem>>, vector<8x256xf32>
    %c48 = arith.constant 48 : index
    %c0_23 = arith.constant 0 : index
    %55 = vector.load %arg17[%c48, %c0_23] : memref<64x256xf32, #tpu.memory_space<vmem>>, vector<8x256xf32>
    %56 = arith.select %18, %54, %55 : vector<8x256xi1>, vector<8x256xf32>
    %cst_24 = arith.constant dense<0.000000e+00> : vector<8x256xf32>
    %57 = tpu.matmul %49, %26, %cst_24 {dimension_numbers = #tpu.dot_dimension_numbers<[1], [0], [0], [1], [0, 0, 1, 1], [], []>} : vector<8x64xf32>, vector<64x256xf32>, vector<8x256xf32> -> vector<8x256xf32>
    %58 = arith.addf %56, %57 : vector<8x256xf32>
    %59 = vector.extract_strided_slice %58 {offsets = [0, 0], sizes = [8, 192], strides = [1, 1]} : vector<8x256xf32> to vector<8x192xf32>
    %60 = arith.negf %59 : vector<8x192xf32>
    %61 = math.exp %60 : vector<8x192xf32>
    %cst_25 = arith.constant 1.000000e+00 : f32
    %62 = vector.broadcast %cst_25 : f32 to vector<8x192xf32>
    %63 = arith.addf %62, %61 : vector<8x192xf32>
    %64 = arith.divf %62, %63 : vector<8x192xf32>
    %65 = vector.extract_strided_slice %64 {offsets = [0, 0], sizes = [8, 64], strides = [1, 1]} : vector<8x192xf32> to vector<8x64xf32>
    %66 = vector.extract_strided_slice %64 {offsets = [0, 64], sizes = [8, 64], strides = [1, 1]} : vector<8x192xf32> to vector<8x64xf32>
    %67 = vector.extract_strided_slice %64 {offsets = [0, 128], sizes = [8, 64], strides = [1, 1]} : vector<8x192xf32> to vector<8x64xf32>
    %68 = vector.extract_strided_slice %58 {offsets = [0, 192], sizes = [8, 64], strides = [1, 1]} : vector<8x256xf32> to vector<8x64xf32>
    %69 = math.tanh %68 : vector<8x64xf32>
    %70 = arith.mulf %66, %47 : vector<8x64xf32>
    %71 = arith.mulf %65, %69 : vector<8x64xf32>
    %72 = arith.addf %70, %71 : vector<8x64xf32>
    %73 = math.tanh %72 : vector<8x64xf32>
    %74 = arith.mulf %67, %73 : vector<8x64xf32>
    %75 = vector.extract_strided_slice %74 {offsets = [0, 0], sizes = [8, 32], strides = [1, 1]} : vector<8x64xf32> to vector<8x32xf32>
    %c8_26 = arith.constant 8 : index
    %c0_27 = arith.constant 0 : index
    %76 = vector.load %arg18[%c8_26, %c0_27] : memref<64x64xf32, #tpu.memory_space<vmem>>, vector<8x32xf32>
    tpu.vector_store %arg18[%c8_26, %c0_27], %75 {strides = array<i32>} : memref<64x64xf32, #tpu.memory_space<vmem>>, vector<8x32xf32>,
    %77 = vector.extract_strided_slice %74 {offsets = [0, 32], sizes = [8, 32], strides = [1, 1]} : vector<8x64xf32> to vector<8x32xf32>
    %c48_28 = arith.constant 48 : index
    %c32_29 = arith.constant 32 : index
    %78 = vector.load %arg18[%c48_28, %c32_29] : memref<64x64xf32, #tpu.memory_space<vmem>>, vector<8x32xf32>
    tpu.vector_store %arg18[%c48_28, %c32_29], %77 {strides = array<i32>} : memref<64x64xf32, #tpu.memory_space<vmem>>, vector<8x32xf32>,
    %c16 = arith.constant 16 : index
    %c0_30 = arith.constant 0 : index
    %79 = vector.load %arg17[%c16, %c0_30] : memref<64x256xf32, #tpu.memory_space<vmem>>, vector<8x256xf32>
    %c40 = arith.constant 40 : index
    %c0_31 = arith.constant 0 : index
    %80 = vector.load %arg17[%c40, %c0_31] : memref<64x256xf32, #tpu.memory_space<vmem>>, vector<8x256xf32>
    %81 = arith.select %18, %79, %80 : vector<8x256xi1>, vector<8x256xf32>
    %cst_32 = arith.constant dense<0.000000e+00> : vector<8x256xf32>
    %82 = tpu.matmul %74, %26, %cst_32 {dimension_numbers = #tpu.dot_dimension_numbers<[1], [0], [0], [1], [0, 0, 1, 1], [], []>} : vector<8x64xf32>, vector<64x256xf32>, vector<8x256xf32> -> vector<8x256xf32>
    %83 = arith.addf %81, %82 : vector<8x256xf32>
    %84 = vector.extract_strided_slice %83 {offsets = [0, 0], sizes = [8, 192], strides = [1, 1]} : vector<8x256xf32> to vector<8x192xf32>
    %85 = arith.negf %84 : vector<8x192xf32>
    %86 = math.exp %85 : vector<8x192xf32>
    %cst_33 = arith.constant 1.000000e+00 : f32
    %87 = vector.broadcast %cst_33 : f32 to vector<8x192xf32>
    %88 = arith.addf %87, %86 : vector<8x192xf32>
    %89 = arith.divf %87, %88 : vector<8x192xf32>
    %90 = vector.extract_strided_slice %89 {offsets = [0, 0], sizes = [8, 64], strides = [1, 1]} : vector<8x192xf32> to vector<8x64xf32>
    %91 = vector.extract_strided_slice %89 {offsets = [0, 64], sizes = [8, 64], strides = [1, 1]} : vector<8x192xf32> to vector<8x64xf32>
    %92 = vector.extract_strided_slice %89 {offsets = [0, 128], sizes = [8, 64], strides = [1, 1]} : vector<8x192xf32> to vector<8x64xf32>
    %93 = vector.extract_strided_slice %83 {offsets = [0, 192], sizes = [8, 64], strides = [1, 1]} : vector<8x256xf32> to vector<8x64xf32>
    %94 = math.tanh %93 : vector<8x64xf32>
    %95 = arith.mulf %91, %72 : vector<8x64xf32>
    %96 = arith.mulf %90, %94 : vector<8x64xf32>
    %97 = arith.addf %95, %96 : vector<8x64xf32>
    %98 = math.tanh %97 : vector<8x64xf32>
    %99 = arith.mulf %92, %98 : vector<8x64xf32>
    %100 = vector.extract_strided_slice %99 {offsets = [0, 0], sizes = [8, 32], strides = [1, 1]} : vector<8x64xf32> to vector<8x32xf32>
    %c16_34 = arith.constant 16 : index
    %c0_35 = arith.constant 0 : index
    %101 = vector.load %arg18[%c16_34, %c0_35] : memref<64x64xf32, #tpu.memory_space<vmem>>, vector<8x32xf32>
    tpu.vector_store %arg18[%c16_34, %c0_35], %100 {strides = array<i32>} : memref<64x64xf32, #tpu.memory_space<vmem>>, vector<8x32xf32>,
    %102 = vector.extract_strided_slice %99 {offsets = [0, 32], sizes = [8, 32], strides = [1, 1]} : vector<8x64xf32> to vector<8x32xf32>
    %c40_36 = arith.constant 40 : index
    %c32_37 = arith.constant 32 : index
    %103 = vector.load %arg18[%c40_36, %c32_37] : memref<64x64xf32, #tpu.memory_space<vmem>>, vector<8x32xf32>
    tpu.vector_store %arg18[%c40_36, %c32_37], %102 {strides = array<i32>} : memref<64x64xf32, #tpu.memory_space<vmem>>, vector<8x32xf32>,
    %c24 = arith.constant 24 : index
    %c0_38 = arith.constant 0 : index
    %104 = vector.load %arg17[%c24, %c0_38] : memref<64x256xf32, #tpu.memory_space<vmem>>, vector<8x256xf32>
    %c32_39 = arith.constant 32 : index
    %c0_40 = arith.constant 0 : index
    %105 = vector.load %arg17[%c32_39, %c0_40] : memref<64x256xf32, #tpu.memory_space<vmem>>, vector<8x256xf32>
    %106 = arith.select %18, %104, %105 : vector<8x256xi1>, vector<8x256xf32>
    %cst_41 = arith.constant dense<0.000000e+00> : vector<8x256xf32>
    %107 = tpu.matmul %99, %26, %cst_41 {dimension_numbers = #tpu.dot_dimension_numbers<[1], [0], [0], [1], [0, 0, 1, 1], [], []>} : vector<8x64xf32>, vector<64x256xf32>, vector<8x256xf32> -> vector<8x256xf32>
    %108 = arith.addf %106, %107 : vector<8x256xf32>
    %109 = vector.extract_strided_slice %108 {offsets = [0, 0], sizes = [8, 192], strides = [1, 1]} : vector<8x256xf32> to vector<8x192xf32>
    %110 = arith.negf %109 : vector<8x192xf32>
    %111 = math.exp %110 : vector<8x192xf32>
    %cst_42 = arith.constant 1.000000e+00 : f32
    %112 = vector.broadcast %cst_42 : f32 to vector<8x192xf32>
    %113 = arith.addf %112, %111 : vector<8x192xf32>
    %114 = arith.divf %112, %113 : vector<8x192xf32>
    %115 = vector.extract_strided_slice %114 {offsets = [0, 0], sizes = [8, 64], strides = [1, 1]} : vector<8x192xf32> to vector<8x64xf32>
    %116 = vector.extract_strided_slice %114 {offsets = [0, 64], sizes = [8, 64], strides = [1, 1]} : vector<8x192xf32> to vector<8x64xf32>
    %117 = vector.extract_strided_slice %114 {offsets = [0, 128], sizes = [8, 64], strides = [1, 1]} : vector<8x192xf32> to vector<8x64xf32>
    %118 = vector.extract_strided_slice %108 {offsets = [0, 192], sizes = [8, 64], strides = [1, 1]} : vector<8x256xf32> to vector<8x64xf32>
    %119 = math.tanh %118 : vector<8x64xf32>
    %120 = arith.mulf %116, %97 : vector<8x64xf32>
    %121 = arith.mulf %115, %119 : vector<8x64xf32>
    %122 = arith.addf %120, %121 : vector<8x64xf32>
    %123 = math.tanh %122 : vector<8x64xf32>
    %124 = arith.mulf %117, %123 : vector<8x64xf32>
    %125 = vector.extract_strided_slice %124 {offsets = [0, 0], sizes = [8, 32], strides = [1, 1]} : vector<8x64xf32> to vector<8x32xf32>
    %c24_43 = arith.constant 24 : index
    %c0_44 = arith.constant 0 : index
    %126 = vector.load %arg18[%c24_43, %c0_44] : memref<64x64xf32, #tpu.memory_space<vmem>>, vector<8x32xf32>
    tpu.vector_store %arg18[%c24_43, %c0_44], %125 {strides = array<i32>} : memref<64x64xf32, #tpu.memory_space<vmem>>, vector<8x32xf32>,
    %127 = vector.extract_strided_slice %124 {offsets = [0, 32], sizes = [8, 32], strides = [1, 1]} : vector<8x64xf32> to vector<8x32xf32>
    %c32_45 = arith.constant 32 : index
    %c32_46 = arith.constant 32 : index
    %128 = vector.load %arg18[%c32_45, %c32_46] : memref<64x64xf32, #tpu.memory_space<vmem>>, vector<8x32xf32>
    tpu.vector_store %arg18[%c32_45, %c32_46], %127 {strides = array<i32>} : memref<64x64xf32, #tpu.memory_space<vmem>>, vector<8x32xf32>,
    %c32_47 = arith.constant 32 : index
    %c0_48 = arith.constant 0 : index
    %129 = vector.load %arg17[%c32_47, %c0_48] : memref<64x256xf32, #tpu.memory_space<vmem>>, vector<8x256xf32>
    %c24_49 = arith.constant 24 : index
    %c0_50 = arith.constant 0 : index
    %130 = vector.load %arg17[%c24_49, %c0_50] : memref<64x256xf32, #tpu.memory_space<vmem>>, vector<8x256xf32>
    %131 = arith.select %18, %129, %130 : vector<8x256xi1>, vector<8x256xf32>
    %cst_51 = arith.constant dense<0.000000e+00> : vector<8x256xf32>
    %132 = tpu.matmul %124, %26, %cst_51 {dimension_numbers = #tpu.dot_dimension_numbers<[1], [0], [0], [1], [0, 0, 1, 1], [], []>} : vector<8x64xf32>, vector<64x256xf32>, vector<8x256xf32> -> vector<8x256xf32>
    %133 = arith.addf %131, %132 : vector<8x256xf32>
    %134 = vector.extract_strided_slice %133 {offsets = [0, 0], sizes = [8, 192], strides = [1, 1]} : vector<8x256xf32> to vector<8x192xf32>
    %135 = arith.negf %134 : vector<8x192xf32>
    %136 = math.exp %135 : vector<8x192xf32>
    %cst_52 = arith.constant 1.000000e+00 : f32
    %137 = vector.broadcast %cst_52 : f32 to vector<8x192xf32>
    %138 = arith.addf %137, %136 : vector<8x192xf32>
    %139 = arith.divf %137, %138 : vector<8x192xf32>
    %140 = vector.extract_strided_slice %139 {offsets = [0, 0], sizes = [8, 64], strides = [1, 1]} : vector<8x192xf32> to vector<8x64xf32>
    %141 = vector.extract_strided_slice %139 {offsets = [0, 64], sizes = [8, 64], strides = [1, 1]} : vector<8x192xf32> to vector<8x64xf32>
    %142 = vector.extract_strided_slice %139 {offsets = [0, 128], sizes = [8, 64], strides = [1, 1]} : vector<8x192xf32> to vector<8x64xf32>
    %143 = vector.extract_strided_slice %133 {offsets = [0, 192], sizes = [8, 64], strides = [1, 1]} : vector<8x256xf32> to vector<8x64xf32>
    %144 = math.tanh %143 : vector<8x64xf32>
    %145 = arith.mulf %141, %122 : vector<8x64xf32>
    %146 = arith.mulf %140, %144 : vector<8x64xf32>
    %147 = arith.addf %145, %146 : vector<8x64xf32>
    %148 = math.tanh %147 : vector<8x64xf32>
    %149 = arith.mulf %142, %148 : vector<8x64xf32>
    %150 = vector.extract_strided_slice %149 {offsets = [0, 0], sizes = [8, 32], strides = [1, 1]} : vector<8x64xf32> to vector<8x32xf32>
    %c32_53 = arith.constant 32 : index
    %c0_54 = arith.constant 0 : index
    %151 = vector.load %arg18[%c32_53, %c0_54] : memref<64x64xf32, #tpu.memory_space<vmem>>, vector<8x32xf32>
    tpu.vector_store %arg18[%c32_53, %c0_54], %150 {strides = array<i32>} : memref<64x64xf32, #tpu.memory_space<vmem>>, vector<8x32xf32>,
    %152 = vector.extract_strided_slice %149 {offsets = [0, 32], sizes = [8, 32], strides = [1, 1]} : vector<8x64xf32> to vector<8x32xf32>
    %c24_55 = arith.constant 24 : index
    %c32_56 = arith.constant 32 : index
    %153 = vector.load %arg18[%c24_55, %c32_56] : memref<64x64xf32, #tpu.memory_space<vmem>>, vector<8x32xf32>
    tpu.vector_store %arg18[%c24_55, %c32_56], %152 {strides = array<i32>} : memref<64x64xf32, #tpu.memory_space<vmem>>, vector<8x32xf32>,
    %c40_57 = arith.constant 40 : index
    %c0_58 = arith.constant 0 : index
    %154 = vector.load %arg17[%c40_57, %c0_58] : memref<64x256xf32, #tpu.memory_space<vmem>>, vector<8x256xf32>
    %c16_59 = arith.constant 16 : index
    %c0_60 = arith.constant 0 : index
    %155 = vector.load %arg17[%c16_59, %c0_60] : memref<64x256xf32, #tpu.memory_space<vmem>>, vector<8x256xf32>
    %156 = arith.select %18, %154, %155 : vector<8x256xi1>, vector<8x256xf32>
    %cst_61 = arith.constant dense<0.000000e+00> : vector<8x256xf32>
    %157 = tpu.matmul %149, %26, %cst_61 {dimension_numbers = #tpu.dot_dimension_numbers<[1], [0], [0], [1], [0, 0, 1, 1], [], []>} : vector<8x64xf32>, vector<64x256xf32>, vector<8x256xf32> -> vector<8x256xf32>
    %158 = arith.addf %156, %157 : vector<8x256xf32>
    %159 = vector.extract_strided_slice %158 {offsets = [0, 0], sizes = [8, 192], strides = [1, 1]} : vector<8x256xf32> to vector<8x192xf32>
    %160 = arith.negf %159 : vector<8x192xf32>
    %161 = math.exp %160 : vector<8x192xf32>
    %cst_62 = arith.constant 1.000000e+00 : f32
    %162 = vector.broadcast %cst_62 : f32 to vector<8x192xf32>
    %163 = arith.addf %162, %161 : vector<8x192xf32>
    %164 = arith.divf %162, %163 : vector<8x192xf32>
    %165 = vector.extract_strided_slice %164 {offsets = [0, 0], sizes = [8, 64], strides = [1, 1]} : vector<8x192xf32> to vector<8x64xf32>
    %166 = vector.extract_strided_slice %164 {offsets = [0, 64], sizes = [8, 64], strides = [1, 1]} : vector<8x192xf32> to vector<8x64xf32>
    %167 = vector.extract_strided_slice %164 {offsets = [0, 128], sizes = [8, 64], strides = [1, 1]} : vector<8x192xf32> to vector<8x64xf32>
    %168 = vector.extract_strided_slice %158 {offsets = [0, 192], sizes = [8, 64], strides = [1, 1]} : vector<8x256xf32> to vector<8x64xf32>
    %169 = math.tanh %168 : vector<8x64xf32>
    %170 = arith.mulf %166, %147 : vector<8x64xf32>
    %171 = arith.mulf %165, %169 : vector<8x64xf32>
    %172 = arith.addf %170, %171 : vector<8x64xf32>
    %173 = math.tanh %172 : vector<8x64xf32>
    %174 = arith.mulf %167, %173 : vector<8x64xf32>
    %175 = vector.extract_strided_slice %174 {offsets = [0, 0], sizes = [8, 32], strides = [1, 1]} : vector<8x64xf32> to vector<8x32xf32>
    %c40_63 = arith.constant 40 : index
    %c0_64 = arith.constant 0 : index
    %176 = vector.load %arg18[%c40_63, %c0_64] : memref<64x64xf32, #tpu.memory_space<vmem>>, vector<8x32xf32>
    tpu.vector_store %arg18[%c40_63, %c0_64], %175 {strides = array<i32>} : memref<64x64xf32, #tpu.memory_space<vmem>>, vector<8x32xf32>,
    %177 = vector.extract_strided_slice %174 {offsets = [0, 32], sizes = [8, 32], strides = [1, 1]} : vector<8x64xf32> to vector<8x32xf32>
    %c16_65 = arith.constant 16 : index
    %c32_66 = arith.constant 32 : index
    %178 = vector.load %arg18[%c16_65, %c32_66] : memref<64x64xf32, #tpu.memory_space<vmem>>, vector<8x32xf32>
    tpu.vector_store %arg18[%c16_65, %c32_66], %177 {strides = array<i32>} : memref<64x64xf32, #tpu.memory_space<vmem>>, vector<8x32xf32>,
    %c48_67 = arith.constant 48 : index
    %c0_68 = arith.constant 0 : index
    %179 = vector.load %arg17[%c48_67, %c0_68] : memref<64x256xf32, #tpu.memory_space<vmem>>, vector<8x256xf32>
    %c8_69 = arith.constant 8 : index
    %c0_70 = arith.constant 0 : index
    %180 = vector.load %arg17[%c8_69, %c0_70] : memref<64x256xf32, #tpu.memory_space<vmem>>, vector<8x256xf32>
    %181 = arith.select %18, %179, %180 : vector<8x256xi1>, vector<8x256xf32>
    %cst_71 = arith.constant dense<0.000000e+00> : vector<8x256xf32>
    %182 = tpu.matmul %174, %26, %cst_71 {dimension_numbers = #tpu.dot_dimension_numbers<[1], [0], [0], [1], [0, 0, 1, 1], [], []>} : vector<8x64xf32>, vector<64x256xf32>, vector<8x256xf32> -> vector<8x256xf32>
    %183 = arith.addf %181, %182 : vector<8x256xf32>
    %184 = vector.extract_strided_slice %183 {offsets = [0, 0], sizes = [8, 192], strides = [1, 1]} : vector<8x256xf32> to vector<8x192xf32>
    %185 = arith.negf %184 : vector<8x192xf32>
    %186 = math.exp %185 : vector<8x192xf32>
    %cst_72 = arith.constant 1.000000e+00 : f32
    %187 = vector.broadcast %cst_72 : f32 to vector<8x192xf32>
    %188 = arith.addf %187, %186 : vector<8x192xf32>
    %189 = arith.divf %187, %188 : vector<8x192xf32>
    %190 = vector.extract_strided_slice %189 {offsets = [0, 0], sizes = [8, 64], strides = [1, 1]} : vector<8x192xf32> to vector<8x64xf32>
    %191 = vector.extract_strided_slice %189 {offsets = [0, 64], sizes = [8, 64], strides = [1, 1]} : vector<8x192xf32> to vector<8x64xf32>
    %192 = vector.extract_strided_slice %189 {offsets = [0, 128], sizes = [8, 64], strides = [1, 1]} : vector<8x192xf32> to vector<8x64xf32>
    %193 = vector.extract_strided_slice %183 {offsets = [0, 192], sizes = [8, 64], strides = [1, 1]} : vector<8x256xf32> to vector<8x64xf32>
    %194 = math.tanh %193 : vector<8x64xf32>
    %195 = arith.mulf %191, %172 : vector<8x64xf32>
    %196 = arith.mulf %190, %194 : vector<8x64xf32>
    %197 = arith.addf %195, %196 : vector<8x64xf32>
    %198 = math.tanh %197 : vector<8x64xf32>
    %199 = arith.mulf %192, %198 : vector<8x64xf32>
    %200 = vector.extract_strided_slice %199 {offsets = [0, 0], sizes = [8, 32], strides = [1, 1]} : vector<8x64xf32> to vector<8x32xf32>
    %c48_73 = arith.constant 48 : index
    %c0_74 = arith.constant 0 : index
    %201 = vector.load %arg18[%c48_73, %c0_74] : memref<64x64xf32, #tpu.memory_space<vmem>>, vector<8x32xf32>
    tpu.vector_store %arg18[%c48_73, %c0_74], %200 {strides = array<i32>} : memref<64x64xf32, #tpu.memory_space<vmem>>, vector<8x32xf32>,
    %202 = vector.extract_strided_slice %199 {offsets = [0, 32], sizes = [8, 32], strides = [1, 1]} : vector<8x64xf32> to vector<8x32xf32>
    %c8_75 = arith.constant 8 : index
    %c32_76 = arith.constant 32 : index
    %203 = vector.load %arg18[%c8_75, %c32_76] : memref<64x64xf32, #tpu.memory_space<vmem>>, vector<8x32xf32>
    tpu.vector_store %arg18[%c8_75, %c32_76], %202 {strides = array<i32>} : memref<64x64xf32, #tpu.memory_space<vmem>>, vector<8x32xf32>,
    %c56_77 = arith.constant 56 : index
    %c0_78 = arith.constant 0 : index
    %204 = vector.load %arg17[%c56_77, %c0_78] : memref<64x256xf32, #tpu.memory_space<vmem>>, vector<8x256xf32>
    %c0_79 = arith.constant 0 : index
    %c0_80 = arith.constant 0 : index
    %205 = vector.load %arg17[%c0_79, %c0_80] : memref<64x256xf32, #tpu.memory_space<vmem>>, vector<8x256xf32>
    %206 = arith.select %18, %204, %205 : vector<8x256xi1>, vector<8x256xf32>
    %cst_81 = arith.constant dense<0.000000e+00> : vector<8x256xf32>
    %207 = tpu.matmul %199, %26, %cst_81 {dimension_numbers = #tpu.dot_dimension_numbers<[1], [0], [0], [1], [0, 0, 1, 1], [], []>} : vector<8x64xf32>, vector<64x256xf32>, vector<8x256xf32> -> vector<8x256xf32>
    %208 = arith.addf %206, %207 : vector<8x256xf32>
    %209 = vector.extract_strided_slice %208 {offsets = [0, 0], sizes = [8, 192], strides = [1, 1]} : vector<8x256xf32> to vector<8x192xf32>
    %210 = arith.negf %209 : vector<8x192xf32>
    %211 = math.exp %210 : vector<8x192xf32>
    %cst_82 = arith.constant 1.000000e+00 : f32
    %212 = vector.broadcast %cst_82 : f32 to vector<8x192xf32>
    %213 = arith.addf %212, %211 : vector<8x192xf32>
    %214 = arith.divf %212, %213 : vector<8x192xf32>
    %215 = vector.extract_strided_slice %214 {offsets = [0, 0], sizes = [8, 64], strides = [1, 1]} : vector<8x192xf32> to vector<8x64xf32>
    %216 = vector.extract_strided_slice %214 {offsets = [0, 64], sizes = [8, 64], strides = [1, 1]} : vector<8x192xf32> to vector<8x64xf32>
    %217 = vector.extract_strided_slice %214 {offsets = [0, 128], sizes = [8, 64], strides = [1, 1]} : vector<8x192xf32> to vector<8x64xf32>
    %218 = vector.extract_strided_slice %208 {offsets = [0, 192], sizes = [8, 64], strides = [1, 1]} : vector<8x256xf32> to vector<8x64xf32>
    %219 = math.tanh %218 : vector<8x64xf32>
    %220 = arith.mulf %216, %197 : vector<8x64xf32>
    %221 = arith.mulf %215, %219 : vector<8x64xf32>
    %222 = arith.addf %220, %221 : vector<8x64xf32>
    %223 = math.tanh %222 : vector<8x64xf32>
    %224 = arith.mulf %217, %223 : vector<8x64xf32>
    %225 = vector.extract_strided_slice %224 {offsets = [0, 0], sizes = [8, 32], strides = [1, 1]} : vector<8x64xf32> to vector<8x32xf32>
    %c56_83 = arith.constant 56 : index
    %c0_84 = arith.constant 0 : index
    %226 = vector.load %arg18[%c56_83, %c0_84] : memref<64x64xf32, #tpu.memory_space<vmem>>, vector<8x32xf32>
    tpu.vector_store %arg18[%c56_83, %c0_84], %225 {strides = array<i32>} : memref<64x64xf32, #tpu.memory_space<vmem>>, vector<8x32xf32>,
    %227 = vector.extract_strided_slice %224 {offsets = [0, 32], sizes = [8, 32], strides = [1, 1]} : vector<8x64xf32> to vector<8x32xf32>
    %c0_85 = arith.constant 0 : index
    %c32_86 = arith.constant 32 : index
    %228 = vector.load %arg18[%c0_85, %c32_86] : memref<64x64xf32, #tpu.memory_space<vmem>>, vector<8x32xf32>
    tpu.vector_store %arg18[%c0_85, %c32_86], %227 {strides = array<i32>} : memref<64x64xf32, #tpu.memory_space<vmem>>, vector<8x32xf32>,
    %c0_87 = arith.constant 0 : index
    %c0_88 = arith.constant 0 : index
    %229 = vector.load %arg18[%c0_87, %c0_88] : memref<64x64xf32, #tpu.memory_space<vmem>>, vector<64x64xf32>
    %c0_89 = arith.constant 0 : index
    %c0_90 = arith.constant 0 : index
    %230 = vector.load %arg5[%c0_89, %c0_90] : memref<64x256xf32, #tpu.memory_space<vmem>>, vector<64x256xf32>
    %cst_91 = arith.constant dense<0.000000e+00> : vector<64x256xf32>
    %231 = tpu.matmul %229, %230, %cst_91 {dimension_numbers = #tpu.dot_dimension_numbers<[1], [0], [0], [1], [0, 0, 1, 1], [], []>} : vector<64x64xf32>, vector<64x256xf32>, vector<64x256xf32> -> vector<64x256xf32>
    %c0_92 = arith.constant 0 : index
    %c0_93 = arith.constant 0 : index
    %232 = vector.load %arg7[%c0_92, %c0_93] : memref<1x256xf32, #tpu.memory_space<vmem>>, vector<1x256xf32>
    %233 = vector.broadcast %232 : vector<1x256xf32> to vector<64x256xf32>
    %234 = arith.addf %231, %233 : vector<64x256xf32>
    %c0_94 = arith.constant 0 : index
    %c0_95 = arith.constant 0 : index
    %235 = vector.load %arg17[%c0_94, %c0_95] : memref<64x256xf32, #tpu.memory_space<vmem>>, vector<64x256xf32>
    tpu.vector_store %arg17[%c0_94, %c0_95], %234 {strides = array<i32>} : memref<64x256xf32, #tpu.memory_space<vmem>>, vector<64x256xf32>,
    %c0_96 = arith.constant 0 : index
    %c0_97 = arith.constant 0 : index
    %236 = vector.load %arg6[%c0_96, %c0_97] : memref<64x256xf32, #tpu.memory_space<vmem>>, vector<64x256xf32>
    %cst_98 = arith.constant 0.000000e+00 : f32
    %237 = vector.broadcast %cst_98 : f32 to vector<8x64xf32>
    %cst_99 = arith.constant 0.000000e+00 : f32
    %238 = vector.broadcast %cst_99 : f32 to vector<8x64xf32>
    %c0_100 = arith.constant 0 : index
    %c0_101 = arith.constant 0 : index
    %239 = vector.load %arg17[%c0_100, %c0_101] : memref<64x256xf32, #tpu.memory_space<vmem>>, vector<8x256xf32>
    %c56_102 = arith.constant 56 : index
    %c0_103 = arith.constant 0 : index
    %240 = vector.load %arg17[%c56_102, %c0_103] : memref<64x256xf32, #tpu.memory_space<vmem>>, vector<8x256xf32>
    %241 = arith.select %18, %239, %240 : vector<8x256xi1>, vector<8x256xf32>
    %cst_104 = arith.constant dense<0.000000e+00> : vector<8x256xf32>
    %242 = tpu.matmul %237, %236, %cst_104 {dimension_numbers = #tpu.dot_dimension_numbers<[1], [0], [0], [1], [0, 0, 1, 1], [], []>} : vector<8x64xf32>, vector<64x256xf32>, vector<8x256xf32> -> vector<8x256xf32>
    %243 = arith.addf %241, %242 : vector<8x256xf32>
    %244 = vector.extract_strided_slice %243 {offsets = [0, 0], sizes = [8, 192], strides = [1, 1]} : vector<8x256xf32> to vector<8x192xf32>
    %245 = arith.negf %244 : vector<8x192xf32>
    %246 = math.exp %245 : vector<8x192xf32>
    %cst_105 = arith.constant 1.000000e+00 : f32
    %247 = vector.broadcast %cst_105 : f32 to vector<8x192xf32>
    %248 = arith.addf %247, %246 : vector<8x192xf32>
    %249 = arith.divf %247, %248 : vector<8x192xf32>
    %250 = vector.extract_strided_slice %249 {offsets = [0, 0], sizes = [8, 64], strides = [1, 1]} : vector<8x192xf32> to vector<8x64xf32>
    %251 = vector.extract_strided_slice %249 {offsets = [0, 64], sizes = [8, 64], strides = [1, 1]} : vector<8x192xf32> to vector<8x64xf32>
    %252 = vector.extract_strided_slice %249 {offsets = [0, 128], sizes = [8, 64], strides = [1, 1]} : vector<8x192xf32> to vector<8x64xf32>
    %253 = vector.extract_strided_slice %243 {offsets = [0, 192], sizes = [8, 64], strides = [1, 1]} : vector<8x256xf32> to vector<8x64xf32>
    %254 = math.tanh %253 : vector<8x64xf32>
    %255 = arith.mulf %251, %238 : vector<8x64xf32>
    %256 = arith.mulf %250, %254 : vector<8x64xf32>
    %257 = arith.addf %255, %256 : vector<8x64xf32>
    %258 = math.tanh %257 : vector<8x64xf32>
    %259 = arith.mulf %252, %258 : vector<8x64xf32>
    %c8_106 = arith.constant 8 : index
    %c0_107 = arith.constant 0 : index
    %260 = vector.load %arg17[%c8_106, %c0_107] : memref<64x256xf32, #tpu.memory_space<vmem>>, vector<8x256xf32>
    %c48_108 = arith.constant 48 : index
    %c0_109 = arith.constant 0 : index
    %261 = vector.load %arg17[%c48_108, %c0_109] : memref<64x256xf32, #tpu.memory_space<vmem>>, vector<8x256xf32>
    %262 = arith.select %18, %260, %261 : vector<8x256xi1>, vector<8x256xf32>
    %cst_110 = arith.constant dense<0.000000e+00> : vector<8x256xf32>
    %263 = tpu.matmul %259, %236, %cst_110 {dimension_numbers = #tpu.dot_dimension_numbers<[1], [0], [0], [1], [0, 0, 1, 1], [], []>} : vector<8x64xf32>, vector<64x256xf32>, vector<8x256xf32> -> vector<8x256xf32>
    %264 = arith.addf %262, %263 : vector<8x256xf32>
    %265 = vector.extract_strided_slice %264 {offsets = [0, 0], sizes = [8, 192], strides = [1, 1]} : vector<8x256xf32> to vector<8x192xf32>
    %266 = arith.negf %265 : vector<8x192xf32>
    %267 = math.exp %266 : vector<8x192xf32>
    %cst_111 = arith.constant 1.000000e+00 : f32
    %268 = vector.broadcast %cst_111 : f32 to vector<8x192xf32>
    %269 = arith.addf %268, %267 : vector<8x192xf32>
    %270 = arith.divf %268, %269 : vector<8x192xf32>
    %271 = vector.extract_strided_slice %270 {offsets = [0, 0], sizes = [8, 64], strides = [1, 1]} : vector<8x192xf32> to vector<8x64xf32>
    %272 = vector.extract_strided_slice %270 {offsets = [0, 64], sizes = [8, 64], strides = [1, 1]} : vector<8x192xf32> to vector<8x64xf32>
    %273 = vector.extract_strided_slice %270 {offsets = [0, 128], sizes = [8, 64], strides = [1, 1]} : vector<8x192xf32> to vector<8x64xf32>
    %274 = vector.extract_strided_slice %264 {offsets = [0, 192], sizes = [8, 64], strides = [1, 1]} : vector<8x256xf32> to vector<8x64xf32>
    %275 = math.tanh %274 : vector<8x64xf32>
    %276 = arith.mulf %272, %257 : vector<8x64xf32>
    %277 = arith.mulf %271, %275 : vector<8x64xf32>
    %278 = arith.addf %276, %277 : vector<8x64xf32>
    %279 = math.tanh %278 : vector<8x64xf32>
    %280 = arith.mulf %273, %279 : vector<8x64xf32>
    %c16_112 = arith.constant 16 : index
    %c0_113 = arith.constant 0 : index
    %281 = vector.load %arg17[%c16_112, %c0_113] : memref<64x256xf32, #tpu.memory_space<vmem>>, vector<8x256xf32>
    %c40_114 = arith.constant 40 : index
    %c0_115 = arith.constant 0 : index
    %282 = vector.load %arg17[%c40_114, %c0_115] : memref<64x256xf32, #tpu.memory_space<vmem>>, vector<8x256xf32>
    %283 = arith.select %18, %281, %282 : vector<8x256xi1>, vector<8x256xf32>
    %cst_116 = arith.constant dense<0.000000e+00> : vector<8x256xf32>
    %284 = tpu.matmul %280, %236, %cst_116 {dimension_numbers = #tpu.dot_dimension_numbers<[1], [0], [0], [1], [0, 0, 1, 1], [], []>} : vector<8x64xf32>, vector<64x256xf32>, vector<8x256xf32> -> vector<8x256xf32>
    %285 = arith.addf %283, %284 : vector<8x256xf32>
    %286 = vector.extract_strided_slice %285 {offsets = [0, 0], sizes = [8, 192], strides = [1, 1]} : vector<8x256xf32> to vector<8x192xf32>
    %287 = arith.negf %286 : vector<8x192xf32>
    %288 = math.exp %287 : vector<8x192xf32>
    %cst_117 = arith.constant 1.000000e+00 : f32
    %289 = vector.broadcast %cst_117 : f32 to vector<8x192xf32>
    %290 = arith.addf %289, %288 : vector<8x192xf32>
    %291 = arith.divf %289, %290 : vector<8x192xf32>
    %292 = vector.extract_strided_slice %291 {offsets = [0, 0], sizes = [8, 64], strides = [1, 1]} : vector<8x192xf32> to vector<8x64xf32>
    %293 = vector.extract_strided_slice %291 {offsets = [0, 64], sizes = [8, 64], strides = [1, 1]} : vector<8x192xf32> to vector<8x64xf32>
    %294 = vector.extract_strided_slice %291 {offsets = [0, 128], sizes = [8, 64], strides = [1, 1]} : vector<8x192xf32> to vector<8x64xf32>
    %295 = vector.extract_strided_slice %285 {offsets = [0, 192], sizes = [8, 64], strides = [1, 1]} : vector<8x256xf32> to vector<8x64xf32>
    %296 = math.tanh %295 : vector<8x64xf32>
    %297 = arith.mulf %293, %278 : vector<8x64xf32>
    %298 = arith.mulf %292, %296 : vector<8x64xf32>
    %299 = arith.addf %297, %298 : vector<8x64xf32>
    %300 = math.tanh %299 : vector<8x64xf32>
    %301 = arith.mulf %294, %300 : vector<8x64xf32>
    %c24_118 = arith.constant 24 : index
    %c0_119 = arith.constant 0 : index
    %302 = vector.load %arg17[%c24_118, %c0_119] : memref<64x256xf32, #tpu.memory_space<vmem>>, vector<8x256xf32>
    %c32_120 = arith.constant 32 : index
    %c0_121 = arith.constant 0 : index
    %303 = vector.load %arg17[%c32_120, %c0_121] : memref<64x256xf32, #tpu.memory_space<vmem>>, vector<8x256xf32>
    %304 = arith.select %18, %302, %303 : vector<8x256xi1>, vector<8x256xf32>
    %cst_122 = arith.constant dense<0.000000e+00> : vector<8x256xf32>
    %305 = tpu.matmul %301, %236, %cst_122 {dimension_numbers = #tpu.dot_dimension_numbers<[1], [0], [0], [1], [0, 0, 1, 1], [], []>} : vector<8x64xf32>, vector<64x256xf32>, vector<8x256xf32> -> vector<8x256xf32>
    %306 = arith.addf %304, %305 : vector<8x256xf32>
    %307 = vector.extract_strided_slice %306 {offsets = [0, 0], sizes = [8, 192], strides = [1, 1]} : vector<8x256xf32> to vector<8x192xf32>
    %308 = arith.negf %307 : vector<8x192xf32>
    %309 = math.exp %308 : vector<8x192xf32>
    %cst_123 = arith.constant 1.000000e+00 : f32
    %310 = vector.broadcast %cst_123 : f32 to vector<8x192xf32>
    %311 = arith.addf %310, %309 : vector<8x192xf32>
    %312 = arith.divf %310, %311 : vector<8x192xf32>
    %313 = vector.extract_strided_slice %312 {offsets = [0, 0], sizes = [8, 64], strides = [1, 1]} : vector<8x192xf32> to vector<8x64xf32>
    %314 = vector.extract_strided_slice %312 {offsets = [0, 64], sizes = [8, 64], strides = [1, 1]} : vector<8x192xf32> to vector<8x64xf32>
    %315 = vector.extract_strided_slice %312 {offsets = [0, 128], sizes = [8, 64], strides = [1, 1]} : vector<8x192xf32> to vector<8x64xf32>
    %316 = vector.extract_strided_slice %306 {offsets = [0, 192], sizes = [8, 64], strides = [1, 1]} : vector<8x256xf32> to vector<8x64xf32>
    %317 = math.tanh %316 : vector<8x64xf32>
    %318 = arith.mulf %314, %299 : vector<8x64xf32>
    %319 = arith.mulf %313, %317 : vector<8x64xf32>
    %320 = arith.addf %318, %319 : vector<8x64xf32>
    %321 = math.tanh %320 : vector<8x64xf32>
    %322 = arith.mulf %315, %321 : vector<8x64xf32>
    %c32_124 = arith.constant 32 : index
    %c0_125 = arith.constant 0 : index
    %323 = vector.load %arg17[%c32_124, %c0_125] : memref<64x256xf32, #tpu.memory_space<vmem>>, vector<8x256xf32>
    %c24_126 = arith.constant 24 : index
    %c0_127 = arith.constant 0 : index
    %324 = vector.load %arg17[%c24_126, %c0_127] : memref<64x256xf32, #tpu.memory_space<vmem>>, vector<8x256xf32>
    %325 = arith.select %18, %323, %324 : vector<8x256xi1>, vector<8x256xf32>
    %cst_128 = arith.constant dense<0.000000e+00> : vector<8x256xf32>
    %326 = tpu.matmul %322, %236, %cst_128 {dimension_numbers = #tpu.dot_dimension_numbers<[1], [0], [0], [1], [0, 0, 1, 1], [], []>} : vector<8x64xf32>, vector<64x256xf32>, vector<8x256xf32> -> vector<8x256xf32>
    %327 = arith.addf %325, %326 : vector<8x256xf32>
    %328 = vector.extract_strided_slice %327 {offsets = [0, 0], sizes = [8, 192], strides = [1, 1]} : vector<8x256xf32> to vector<8x192xf32>
    %329 = arith.negf %328 : vector<8x192xf32>
    %330 = math.exp %329 : vector<8x192xf32>
    %cst_129 = arith.constant 1.000000e+00 : f32
    %331 = vector.broadcast %cst_129 : f32 to vector<8x192xf32>
    %332 = arith.addf %331, %330 : vector<8x192xf32>
    %333 = arith.divf %331, %332 : vector<8x192xf32>
    %334 = vector.extract_strided_slice %333 {offsets = [0, 0], sizes = [8, 64], strides = [1, 1]} : vector<8x192xf32> to vector<8x64xf32>
    %335 = vector.extract_strided_slice %333 {offsets = [0, 64], sizes = [8, 64], strides = [1, 1]} : vector<8x192xf32> to vector<8x64xf32>
    %336 = vector.extract_strided_slice %333 {offsets = [0, 128], sizes = [8, 64], strides = [1, 1]} : vector<8x192xf32> to vector<8x64xf32>
    %337 = vector.extract_strided_slice %327 {offsets = [0, 192], sizes = [8, 64], strides = [1, 1]} : vector<8x256xf32> to vector<8x64xf32>
    %338 = math.tanh %337 : vector<8x64xf32>
    %339 = arith.mulf %335, %320 : vector<8x64xf32>
    %340 = arith.mulf %334, %338 : vector<8x64xf32>
    %341 = arith.addf %339, %340 : vector<8x64xf32>
    %342 = math.tanh %341 : vector<8x64xf32>
    %343 = arith.mulf %336, %342 : vector<8x64xf32>
    %c40_130 = arith.constant 40 : index
    %c0_131 = arith.constant 0 : index
    %344 = vector.load %arg17[%c40_130, %c0_131] : memref<64x256xf32, #tpu.memory_space<vmem>>, vector<8x256xf32>
    %c16_132 = arith.constant 16 : index
    %c0_133 = arith.constant 0 : index
    %345 = vector.load %arg17[%c16_132, %c0_133] : memref<64x256xf32, #tpu.memory_space<vmem>>, vector<8x256xf32>
    %346 = arith.select %18, %344, %345 : vector<8x256xi1>, vector<8x256xf32>
    %cst_134 = arith.constant dense<0.000000e+00> : vector<8x256xf32>
    %347 = tpu.matmul %343, %236, %cst_134 {dimension_numbers = #tpu.dot_dimension_numbers<[1], [0], [0], [1], [0, 0, 1, 1], [], []>} : vector<8x64xf32>, vector<64x256xf32>, vector<8x256xf32> -> vector<8x256xf32>
    %348 = arith.addf %346, %347 : vector<8x256xf32>
    %349 = vector.extract_strided_slice %348 {offsets = [0, 0], sizes = [8, 192], strides = [1, 1]} : vector<8x256xf32> to vector<8x192xf32>
    %350 = arith.negf %349 : vector<8x192xf32>
    %351 = math.exp %350 : vector<8x192xf32>
    %cst_135 = arith.constant 1.000000e+00 : f32
    %352 = vector.broadcast %cst_135 : f32 to vector<8x192xf32>
    %353 = arith.addf %352, %351 : vector<8x192xf32>
    %354 = arith.divf %352, %353 : vector<8x192xf32>
    %355 = vector.extract_strided_slice %354 {offsets = [0, 0], sizes = [8, 64], strides = [1, 1]} : vector<8x192xf32> to vector<8x64xf32>
    %356 = vector.extract_strided_slice %354 {offsets = [0, 64], sizes = [8, 64], strides = [1, 1]} : vector<8x192xf32> to vector<8x64xf32>
    %357 = vector.extract_strided_slice %354 {offsets = [0, 128], sizes = [8, 64], strides = [1, 1]} : vector<8x192xf32> to vector<8x64xf32>
    %358 = vector.extract_strided_slice %348 {offsets = [0, 192], sizes = [8, 64], strides = [1, 1]} : vector<8x256xf32> to vector<8x64xf32>
    %359 = math.tanh %358 : vector<8x64xf32>
    %360 = arith.mulf %356, %341 : vector<8x64xf32>
    %361 = arith.mulf %355, %359 : vector<8x64xf32>
    %362 = arith.addf %360, %361 : vector<8x64xf32>
    %363 = math.tanh %362 : vector<8x64xf32>
    %364 = arith.mulf %357, %363 : vector<8x64xf32>
    %c48_136 = arith.constant 48 : index
    %c0_137 = arith.constant 0 : index
    %365 = vector.load %arg17[%c48_136, %c0_137] : memref<64x256xf32, #tpu.memory_space<vmem>>, vector<8x256xf32>
    %c8_138 = arith.constant 8 : index
    %c0_139 = arith.constant 0 : index
    %366 = vector.load %arg17[%c8_138, %c0_139] : memref<64x256xf32, #tpu.memory_space<vmem>>, vector<8x256xf32>
    %367 = arith.select %18, %365, %366 : vector<8x256xi1>, vector<8x256xf32>
    %cst_140 = arith.constant dense<0.000000e+00> : vector<8x256xf32>
    %368 = tpu.matmul %364, %236, %cst_140 {dimension_numbers = #tpu.dot_dimension_numbers<[1], [0], [0], [1], [0, 0, 1, 1], [], []>} : vector<8x64xf32>, vector<64x256xf32>, vector<8x256xf32> -> vector<8x256xf32>
    %369 = arith.addf %367, %368 : vector<8x256xf32>
    %370 = vector.extract_strided_slice %369 {offsets = [0, 0], sizes = [8, 192], strides = [1, 1]} : vector<8x256xf32> to vector<8x192xf32>
    %371 = arith.negf %370 : vector<8x192xf32>
    %372 = math.exp %371 : vector<8x192xf32>
    %cst_141 = arith.constant 1.000000e+00 : f32
    %373 = vector.broadcast %cst_141 : f32 to vector<8x192xf32>
    %374 = arith.addf %373, %372 : vector<8x192xf32>
    %375 = arith.divf %373, %374 : vector<8x192xf32>
    %376 = vector.extract_strided_slice %375 {offsets = [0, 0], sizes = [8, 64], strides = [1, 1]} : vector<8x192xf32> to vector<8x64xf32>
    %377 = vector.extract_strided_slice %375 {offsets = [0, 64], sizes = [8, 64], strides = [1, 1]} : vector<8x192xf32> to vector<8x64xf32>
    %378 = vector.extract_strided_slice %375 {offsets = [0, 128], sizes = [8, 64], strides = [1, 1]} : vector<8x192xf32> to vector<8x64xf32>
    %379 = vector.extract_strided_slice %369 {offsets = [0, 192], sizes = [8, 64], strides = [1, 1]} : vector<8x256xf32> to vector<8x64xf32>
    %380 = math.tanh %379 : vector<8x64xf32>
    %381 = arith.mulf %377, %362 : vector<8x64xf32>
    %382 = arith.mulf %376, %380 : vector<8x64xf32>
    %383 = arith.addf %381, %382 : vector<8x64xf32>
    %384 = math.tanh %383 : vector<8x64xf32>
    %385 = arith.mulf %378, %384 : vector<8x64xf32>
    %c56_142 = arith.constant 56 : index
    %c0_143 = arith.constant 0 : index
    %386 = vector.load %arg17[%c56_142, %c0_143] : memref<64x256xf32, #tpu.memory_space<vmem>>, vector<8x256xf32>
    %c0_144 = arith.constant 0 : index
    %c0_145 = arith.constant 0 : index
    %387 = vector.load %arg17[%c0_144, %c0_145] : memref<64x256xf32, #tpu.memory_space<vmem>>, vector<8x256xf32>
    %388 = arith.select %18, %386, %387 : vector<8x256xi1>, vector<8x256xf32>
    %cst_146 = arith.constant dense<0.000000e+00> : vector<8x256xf32>
    %389 = tpu.matmul %385, %236, %cst_146 {dimension_numbers = #tpu.dot_dimension_numbers<[1], [0], [0], [1], [0, 0, 1, 1], [], []>} : vector<8x64xf32>, vector<64x256xf32>, vector<8x256xf32> -> vector<8x256xf32>
    %390 = arith.addf %388, %389 : vector<8x256xf32>
    %391 = vector.extract_strided_slice %390 {offsets = [0, 0], sizes = [8, 192], strides = [1, 1]} : vector<8x256xf32> to vector<8x192xf32>
    %392 = arith.negf %391 : vector<8x192xf32>
    %393 = math.exp %392 : vector<8x192xf32>
    %cst_147 = arith.constant 1.000000e+00 : f32
    %394 = vector.broadcast %cst_147 : f32 to vector<8x192xf32>
    %395 = arith.addf %394, %393 : vector<8x192xf32>
    %396 = arith.divf %394, %395 : vector<8x192xf32>
    %397 = vector.extract_strided_slice %396 {offsets = [0, 0], sizes = [8, 64], strides = [1, 1]} : vector<8x192xf32> to vector<8x64xf32>
    %398 = vector.extract_strided_slice %396 {offsets = [0, 64], sizes = [8, 64], strides = [1, 1]} : vector<8x192xf32> to vector<8x64xf32>
    %399 = vector.extract_strided_slice %396 {offsets = [0, 128], sizes = [8, 64], strides = [1, 1]} : vector<8x192xf32> to vector<8x64xf32>
    %400 = vector.extract_strided_slice %390 {offsets = [0, 192], sizes = [8, 64], strides = [1, 1]} : vector<8x256xf32> to vector<8x64xf32>
    %401 = math.tanh %400 : vector<8x64xf32>
    %402 = arith.mulf %398, %383 : vector<8x64xf32>
    %403 = arith.mulf %397, %401 : vector<8x64xf32>
    %404 = arith.addf %402, %403 : vector<8x64xf32>
    %405 = math.tanh %404 : vector<8x64xf32>
    %406 = arith.mulf %399, %405 : vector<8x64xf32>
    %407 = vector.extract_strided_slice %406 {offsets = [0, 0], sizes = [8, 32], strides = [1, 1]} : vector<8x64xf32> to vector<8x32xf32>
    %c0_148 = arith.constant 0 : index
    %c0_149 = arith.constant 0 : index
    %408 = vector.load %arg8[%c0_148, %c0_149] : memref<32x64xf32, #tpu.memory_space<vmem>>, vector<32x64xf32>
    %cst_150 = arith.constant dense<0.000000e+00> : vector<8x64xf32>
    %409 = tpu.matmul %407, %408, %cst_150 {dimension_numbers = #tpu.dot_dimension_numbers<[1], [0], [0], [1], [0, 0, 1, 1], [], []>} : vector<8x32xf32>, vector<32x64xf32>, vector<8x64xf32> -> vector<8x64xf32>
    %c0_151 = arith.constant 0 : index
    %c0_152 = arith.constant 0 : index
    %410 = vector.load %arg9[%c0_151, %c0_152] : memref<1x64xf32, #tpu.memory_space<vmem>>, vector<1x64xf32>
    %411 = vector.broadcast %410 : vector<1x64xf32> to vector<8x64xf32>
    %412 = arith.addf %409, %411 : vector<8x64xf32>
    %cst_153 = arith.constant 0.000000e+00 : f32
    %413 = vector.broadcast %cst_153 : f32 to vector<8x64xf32>
    %414 = arith.maximumf %412, %413 : vector<8x64xf32>
    %c0_154 = arith.constant 0 : index
    %c0_155 = arith.constant 0 : index
    %415 = vector.load %arg10[%c0_154, %c0_155] : memref<64x32xf32, #tpu.memory_space<vmem>>, vector<64x32xf32>
    %cst_156 = arith.constant dense<0.000000e+00> : vector<8x32xf32>
    %416 = tpu.matmul %414, %415, %cst_156 {dimension_numbers = #tpu.dot_dimension_numbers<[1], [0], [0], [1], [0, 0, 1, 1], [], []>} : vector<8x64xf32>, vector<64x32xf32>, vector<8x32xf32> -> vector<8x32xf32>
    %c0_157 = arith.constant 0 : index
    %c0_158 = arith.constant 0 : index
    %417 = vector.load %arg11[%c0_157, %c0_158] : memref<1x32xf32, #tpu.memory_space<vmem>>, vector<1x32xf32>
    %418 = vector.broadcast %417 : vector<1x32xf32> to vector<8x32xf32>
    %419 = arith.addf %416, %418 : vector<8x32xf32>
    %cst_159 = arith.constant 0.000000e+00 : f32
    %420 = vector.broadcast %cst_159 : f32 to vector<8x32xf32>
    %421 = arith.maximumf %419, %420 : vector<8x32xf32>
    %c0_160 = arith.constant 0 : index
    %c0_161 = arith.constant 0 : index
    %422 = vector.load %arg12[%c0_160, %c0_161] : memref<32x8xf32, #tpu.memory_space<vmem>>, vector<32x8xf32>
    %cst_162 = arith.constant dense<0.000000e+00> : vector<8x8xf32>
    %423 = tpu.matmul %421, %422, %cst_162 {dimension_numbers = #tpu.dot_dimension_numbers<[1], [0], [0], [1], [0, 0, 1, 1], [], []>} : vector<8x32xf32>, vector<32x8xf32>, vector<8x8xf32> -> vector<8x8xf32>
    %c0_163 = arith.constant 0 : index
    %c0_164 = arith.constant 0 : index
    %424 = vector.load %arg13[%c0_163, %c0_164] : memref<1x8xf32, #tpu.memory_space<vmem>>, vector<1x8xf32>
    %425 = vector.broadcast %424 : vector<1x8xf32> to vector<8x8xf32>
    %426 = arith.addf %423, %425 : vector<8x8xf32>
    %cst_165 = arith.constant 0.000000e+00 : f32
    %427 = vector.broadcast %cst_165 : f32 to vector<8x8xf32>
    %428 = arith.maximumf %426, %427 : vector<8x8xf32>
    %c0_166 = arith.constant 0 : index
    %c0_167 = arith.constant 0 : index
    %429 = vector.load %arg14[%c0_166, %c0_167] : memref<8x1xf32, #tpu.memory_space<vmem>>, vector<8x1xf32>
    %cst_168 = arith.constant dense<0.000000e+00> : vector<8x1xf32>
    %430 = tpu.matmul %428, %429, %cst_168 {dimension_numbers = #tpu.dot_dimension_numbers<[1], [0], [0], [1], [0, 0, 1, 1], [], []>} : vector<8x8xf32>, vector<8x1xf32>, vector<8x1xf32> -> vector<8x1xf32>
    %c0_169 = arith.constant 0 : index
    %c0_170 = arith.constant 0 : index
    %431 = vector.load %arg15[%c0_169, %c0_170] : memref<1x1xf32, #tpu.memory_space<vmem>>, vector<1x1xf32>
    %432 = vector.broadcast %431 : vector<1x1xf32> to vector<8x1xf32>
    %433 = arith.addf %430, %432 : vector<8x1xf32>
    %c0_171 = arith.constant 0 : index
    %c0_172 = arith.constant 0 : index
    %434 = vector.load %arg16[%c0_171, %c0_172] : memref<8x1xf32, #tpu.memory_space<vmem>>, vector<8x1xf32>
    tpu.vector_store %arg16[%c0_171, %c0_172], %433 {strides = array<i32>} : memref<8x1xf32, #tpu.memory_space<vmem>>, vector<8x1xf32>,
    return
  }
  func.func @transform_0(%arg0: i32) -> (i32, i32) {
    %c0_i32 = arith.constant 0 : i32
    %c0_i32_0 = arith.constant 0 : i32
    %c0_i32_1 = arith.constant 0 : i32
    return %c0_i32, %c0_i32_0 : i32, i32
  }
  func.func @transform_1(%arg0: i32) -> (i32, i32) {
    %c0_i32 = arith.constant 0 : i32
    %c0_i32_0 = arith.constant 0 : i32
    %c0_i32_1 = arith.constant 0 : i32
    return %c0_i32, %c0_i32_0 : i32, i32
  }
  func.func @transform_2(%arg0: i32) -> (i32, i32) {
    %c0_i32 = arith.constant 0 : i32
    %c0_i32_0 = arith.constant 0 : i32
    %c0_i32_1 = arith.constant 0 : i32
    return %c0_i32, %c0_i32_0 : i32, i32
  }
  func.func @transform_3(%arg0: i32) -> (i32, i32) {
    %c0_i32 = arith.constant 0 : i32
    %c0_i32_0 = arith.constant 0 : i32
    %c0_i32_1 = arith.constant 0 : i32
    return %c0_i32, %c0_i32_0 : i32, i32
  }
  func.func @transform_4(%arg0: i32) -> (i32, i32) {
    %c0_i32 = arith.constant 0 : i32
    %c0_i32_0 = arith.constant 0 : i32
    %c0_i32_1 = arith.constant 0 : i32
    return %c0_i32, %c0_i32_0 : i32, i32
  }
  func.func @transform_5(%arg0: i32) -> (i32, i32) {
    %c0_i32 = arith.constant 0 : i32
    %c0_i32_0 = arith.constant 0 : i32
    %c0_i32_1 = arith.constant 0 : i32
    return %c0_i32, %c0_i32_0 : i32, i32
  }
  func.func @transform_6(%arg0: i32) -> (i32, i32) {
    %c0_i32 = arith.constant 0 : i32
    %c0_i32_0 = arith.constant 0 : i32
    %c0_i32_1 = arith.constant 0 : i32
    return %c0_i32, %c0_i32_0 : i32, i32
  }
  func.func @transform_7(%arg0: i32) -> (i32, i32) {
    %c0_i32 = arith.constant 0 : i32
    %c0_i32_0 = arith.constant 0 : i32
    %c0_i32_1 = arith.constant 0 : i32
    return %c0_i32, %c0_i32_0 : i32, i32
  }
  func.func @transform_8(%arg0: i32) -> (i32, i32) {
    %c0_i32 = arith.constant 0 : i32
    %c0_i32_0 = arith.constant 0 : i32
    %c0_i32_1 = arith.constant 0 : i32
    return %c0_i32, %c0_i32_0 : i32, i32
  }
  func.func @transform_9(%arg0: i32) -> (i32, i32) {
    %c0_i32 = arith.constant 0 : i32
    %c0_i32_0 = arith.constant 0 : i32
    %c0_i32_1 = arith.constant 0 : i32
    return %c0_i32, %c0_i32_0 : i32, i32
  }
  func.func @transform_10(%arg0: i32) -> (i32, i32) {
    %c0_i32 = arith.constant 0 : i32
    %c0_i32_0 = arith.constant 0 : i32
    %c0_i32_1 = arith.constant 0 : i32
    return %c0_i32, %c0_i32_0 : i32, i32
  }
  func.func @transform_11(%arg0: i32) -> (i32, i32) {
    %c0_i32 = arith.constant 0 : i32
    %c0_i32_0 = arith.constant 0 : i32
    %c0_i32_1 = arith.constant 0 : i32
    return %c0_i32, %c0_i32_0 : i32, i32
  }
  func.func @transform_12(%arg0: i32) -> (i32, i32) {
    %c0_i32 = arith.constant 0 : i32
    %c0_i32_0 = arith.constant 0 : i32
    %c0_i32_1 = arith.constant 0 : i32
    return %c0_i32, %c0_i32_0 : i32, i32
  }
  func.func @transform_13(%arg0: i32) -> (i32, i32) {
    %c0_i32 = arith.constant 0 : i32
    %c0_i32_0 = arith.constant 0 : i32
    %c0_i32_1 = arith.constant 0 : i32
    return %c0_i32, %c0_i32_0 : i32, i32
  }
  func.func @transform_14(%arg0: i32) -> (i32, i32) {
    %c0_i32 = arith.constant 0 : i32
    %c0_i32_0 = arith.constant 0 : i32
    %c0_i32_1 = arith.constant 0 : i32
    return %c0_i32, %c0_i32_0 : i32, i32
  }
  func.func @transform_15(%arg0: i32) -> (i32, i32) {
    %c0_i32 = arith.constant 0 : i32
    %c0_i32_0 = arith.constant 0 : i32
    %c0_i32_1 = arith.constant 0 : i32
    return %c0_i32, %c0_i32_0 : i32, i32
  }
}

</mosaic_0001>

<llo_original>
// kernel: bidirection_lstm_forward.1
$region0: #{bidirection_lstm_forward.1}
  #allocation0 [shape = 'u32[]', space=smem, size = 0x4, offset = 0x4, fixed_abs, tag = 'smem constant byte address 0x4 - core index']
  #allocation1 [shape = 'u32[144,128]{1,0:T(1,128)}', space=vmem, size = 0x12000, scoped, tag = 'internal scratch']
  #allocation2 [shape = 'f32[64,256]{1,0:T(8,128)}', space=vmem, size = 0x10000, scoped, tag = 'scratch operand']
  #allocation3 [shape = 'f32[64,64]{1,0:T(8,128)}', space=vmem, size = 0x8000, scoped, tag = 'scratch operand']
  #allocation4 [shape = 'f32[1,1]{1,0:T(1,128)S(1)}', space=vmem, size = 0x200, scoped, tag = 'scoped memory for bidirection_lstm_forward.1']
  %s0 = inlined_call_operand.vmem [shape: f32[64,16], index: 0, kind: input, shape index: {}]
  %s1 = inlined_call_operand.hbm [shape: f32[16,256], index: 1, kind: input, shape index: {}]
  %s2 = inlined_call_operand.vmem [shape: f32[64,256], index: 2, kind: input, shape index: {}]
  %s3 = inlined_call_operand.vmem [shape: f32[1,256], index: 3, kind: input, shape index: {}]
  %s4 = inlined_call_operand.vmem [shape: f32[64,256], index: 4, kind: input, shape index: {}]
  %s5 = inlined_call_operand.hbm [shape: f32[64,256], index: 5, kind: input, shape index: {}]
  %s6 = inlined_call_operand.vmem [shape: f32[1,256], index: 6, kind: input, shape index: {}]
  %s7 = inlined_call_operand.hbm [shape: f32[32,64], index: 7, kind: input, shape index: {}]
  %s8 = inlined_call_operand.vmem [shape: f32[1,64], index: 8, kind: input, shape index: {}]
  %s9 = inlined_call_operand.vmem [shape: f32[64,32], index: 9, kind: input, shape index: {}]
  %s10 = inlined_call_operand.vmem [shape: f32[1,32], index: 10, kind: input, shape index: {}]
  %s11 = inlined_call_operand.vmem [shape: f32[32,8], index: 11, kind: input, shape index: {}]
  %s12 = inlined_call_operand.vmem [shape: f32[1,8], index: 12, kind: input, shape index: {}]
  %s13 = inlined_call_operand.vmem [shape: f32[8,1], index: 13, kind: input, shape index: {}]
  %s14 = inlined_call_operand.<no memory space> [shape: f32[1,1], index: 14, kind: input, shape index: {}]
  %s15 = inlined_call_operand.vmem [shape: f32[8,1], index: 15, kind: output, shape index: {}]
  %s16 = sld [smem:[#allocation0]]
  $region82: #{bidirection_lstm_forward.1} parent=0
    _
  %s18 = ssub.s32 1, %s16
  %s19 = scalar_select 0, %s18, %s16
  %v20 = vstv %s14
  %21 = vst [vmem:[#allocation4] sm:$0x1] %v20
  $region1: #{bidirection_lstm_forward.1} parent=0
    #allocation5 [shape = 'u8[16384]{0}', space=vmem, size = 0x4000, scoped, tag = 'input window, operand 1, single buffered']
    #allocation6 [shape = 's32[1]{0}', space=sflag, size = 0x4, scoped, tag = 'scoped memory for bidirection_lstm_forward.1']
    #allocation7 [shape = 'u8[65536]{0}', space=vmem, size = 0x10000, scoped, tag = 'input window, operand 5, single buffered']
    #allocation8 [shape = 's32[1]{0}', space=sflag, size = 0x4, scoped, tag = 'scoped memory for bidirection_lstm_forward.1']
    #allocation9 [shape = 'u8[16384]{0}', space=vmem, size = 0x4000, scoped, tag = 'input window, operand 7, single buffered']
    %22 = vsyncpa [#allocation6], 0
    %23 = vsyncpa [#allocation8], 0
    // Predicated region
    $region2: #{bidirection_lstm_forward.1} parent=1 // pred_check
      _
    $region3: #{bidirection_lstm_forward.1} parent=1 // pred_check_branch
      %25 = sbr.rel (0) target = $region5
    $region4: #{bidirection_lstm_forward.1} parent=1 // pred_region
      _
    $region5: #{bidirection_lstm_forward.1} parent=1 // pred_fallthru
      _
    // Predicated region
    $region6: #{bidirection_lstm_forward.1} parent=1 // pred_check
      _
    $region7: #{bidirection_lstm_forward.1} parent=1 // pred_check_branch
      %27 = sbr.rel (0) target = $region9
    $region8: #{bidirection_lstm_forward.1} parent=1 // pred_region
      %s29 = ssub.s32 512, 512
      %30 = vsyncadd [#allocation6], %s29
      %s31 = sshll.u32 [#allocation5], 4
      %s32 = int_to_ptr.vmem [resolvable:$true] %s31
      %37 = dma.hbm_to_vmem [thread:$0]  %s1, 512, %s32, [#allocation6], 256, 256, 16
    $region9: #{bidirection_lstm_forward.1} parent=1 // pred_fallthru
      _
    // Predicated region
    $region10: #{bidirection_lstm_forward.1} parent=1 // pred_check
      _
    $region11: #{bidirection_lstm_forward.1} parent=1 // pred_check_branch
      %39 = sbr.rel (0) target = $region13
    $region12: #{bidirection_lstm_forward.1} parent=1 // pred_region
      _
    $region13: #{bidirection_lstm_forward.1} parent=1 // pred_fallthru
      _
    // Predicated region
    $region14: #{bidirection_lstm_forward.1} parent=1 // pred_check
      _
    $region15: #{bidirection_lstm_forward.1} parent=1 // pred_check_branch
      %41 = sbr.rel (0) target = $region17
    $region16: #{bidirection_lstm_forward.1} parent=1 // pred_region
      _
    $region17: #{bidirection_lstm_forward.1} parent=1 // pred_fallthru
      _
    // Predicated region
    $region18: #{bidirection_lstm_forward.1} parent=1 // pred_check
      _
    $region19: #{bidirection_lstm_forward.1} parent=1 // pred_check_branch
      %43 = sbr.rel (0) target = $region21
    $region20: #{bidirection_lstm_forward.1} parent=1 // pred_region
      _
    $region21: #{bidirection_lstm_forward.1} parent=1 // pred_fallthru
      _
    // Predicated region
    $region22: #{bidirection_lstm_forward.1} parent=1 // pred_check
      _
    $region23: #{bidirection_lstm_forward.1} parent=1 // pred_check_branch
      %45 = sbr.rel (0) target = $region25
    $region24: #{bidirection_lstm_forward.1} parent=1 // pred_region
      %s47 = ssub.s32 2048, 2048
      %48 = vsyncadd [#allocation8], %s47
      %s49 = sshll.u32 [#allocation7], 4
      %s50 = int_to_ptr.vmem [resolvable:$true] %s49
      %55 = dma.hbm_to_vmem [thread:$0]  %s5, 2048, %s50, [#allocation8], 256, 256, 16
    $region25: #{bidirection_lstm_forward.1} parent=1 // pred_fallthru
      _
    // Predicated region
    $region26: #{bidirection_lstm_forward.1} parent=1 // pred_check
      _
    $region27: #{bidirection_lstm_forward.1} parent=1 // pred_check_branch
      %57 = sbr.rel (0) target = $region29
    $region28: #{bidirection_lstm_forward.1} parent=1 // pred_region
      _
    $region29: #{bidirection_lstm_forward.1} parent=1 // pred_fallthru
      _
    // Predicated region
    $region30: #{bidirection_lstm_forward.1} parent=1 // pred_check
      _
    $region31: #{bidirection_lstm_forward.1} parent=1 // pred_check_branch
      %59 = sbr.rel (0) target = $region33
    $region32: #{bidirection_lstm_forward.1} parent=1 // pred_region
      %s61 = ssub.s32 512, 512
      %62 = vsyncadd [#allocation8], %s61
      %s63 = sshll.u32 [#allocation9], 4
      %s64 = int_to_ptr.vmem [resolvable:$true] %s63
      %69 = dma.hbm_to_vmem [thread:$0]  %s7, 512, %s64, [#allocation8], 128, 128, 8
    $region33: #{bidirection_lstm_forward.1} parent=1 // pred_fallthru
      _
    // Predicated region
    $region34: #{bidirection_lstm_forward.1} parent=1 // pred_check
      _
    $region35: #{bidirection_lstm_forward.1} parent=1 // pred_check_branch
      %71 = sbr.rel (0) target = $region37
    $region36: #{bidirection_lstm_forward.1} parent=1 // pred_region
      _
    $region37: #{bidirection_lstm_forward.1} parent=1 // pred_fallthru
      _
    // Predicated region
    $region38: #{bidirection_lstm_forward.1} parent=1 // pred_check
      _
    $region39: #{bidirection_lstm_forward.1} parent=1 // pred_check_branch
      %73 = sbr.rel (0) target = $region41
    $region40: #{bidirection_lstm_forward.1} parent=1 // pred_region
      _
    $region41: #{bidirection_lstm_forward.1} parent=1 // pred_fallthru
      _
    // Predicated region
    $region42: #{bidirection_lstm_forward.1} parent=1 // pred_check
      _
    $region43: #{bidirection_lstm_forward.1} parent=1 // pred_check_branch
      %75 = sbr.rel (0) target = $region45
    $region44: #{bidirection_lstm_forward.1} parent=1 // pred_region
      _
    $region45: #{bidirection_lstm_forward.1} parent=1 // pred_fallthru
      _
    // Predicated region
    $region46: #{bidirection_lstm_forward.1} parent=1 // pred_check
      _
    $region47: #{bidirection_lstm_forward.1} parent=1 // pred_check_branch
      %77 = sbr.rel (0) target = $region49
    $region48: #{bidirection_lstm_forward.1} parent=1 // pred_region
      _
    $region49: #{bidirection_lstm_forward.1} parent=1 // pred_fallthru
      _
    // Predicated region
    $region50: #{bidirection_lstm_forward.1} parent=1 // pred_check
      _
    $region51: #{bidirection_lstm_forward.1} parent=1 // pred_check_branch
      %79 = sbr.rel (0) target = $region53
    $region52: #{bidirection_lstm_forward.1} parent=1 // pred_region
      _
    $region53: #{bidirection_lstm_forward.1} parent=1 // pred_fallthru
      _
    // Predicated region
    $region54: #{bidirection_lstm_forward.1} parent=1 // pred_check
      _
    $region55: #{bidirection_lstm_forward.1} parent=1 // pred_check_branch
      %81 = sbr.rel (0) target = $region57
    $region56: #{bidirection_lstm_forward.1} parent=1 // pred_region
      _
    $region57: #{bidirection_lstm_forward.1} parent=1 // pred_fallthru
      _
    // Predicated region
    $region58: #{bidirection_lstm_forward.1} parent=1 // pred_check
      _
    $region59: #{bidirection_lstm_forward.1} parent=1 // pred_check_branch
      %83 = sbr.rel (0) target = $region61
    $region60: #{bidirection_lstm_forward.1} parent=1 // pred_region
      _
    $region61: #{bidirection_lstm_forward.1} parent=1 // pred_fallthru
      _
    // Predicated region
    $region62: #{bidirection_lstm_forward.1} parent=1 // pred_check
      _
    $region63: #{bidirection_lstm_forward.1} parent=1 // pred_check_branch
      %85 = sbr.rel (0) target = $region65
    $region64: #{bidirection_lstm_forward.1} parent=1 // pred_region
      %86 = dma.done [#allocation6], 512
    $region65: #{bidirection_lstm_forward.1} parent=1 // pred_fallthru
      _
    // Predicated region
    $region66: #{bidirection_lstm_forward.1} parent=1 // pred_check
      _
    $region67: #{bidirection_lstm_forward.1} parent=1 // pred_check_branch
      %88 = sbr.rel (0) target = $region69
    $region68: #{bidirection_lstm_forward.1} parent=1 // pred_region
      %89 = dma.done [#allocation8], 2048
    $region69: #{bidirection_lstm_forward.1} parent=1 // pred_fallthru
      _
    // Predicated region
    $region70: #{bidirection_lstm_forward.1} parent=1 // pred_check
      _
    $region71: #{bidirection_lstm_forward.1} parent=1 // pred_check_branch
      %91 = sbr.rel (0) target = $region73
    $region72: #{bidirection_lstm_forward.1} parent=1 // pred_region
      %92 = dma.done [#allocation8], 512
    $region73: #{bidirection_lstm_forward.1} parent=1 // pred_fallthru
      _
    %v93 = vlaneseq
    %v94 = vand.u32 %v93, 127
    %v95 = vadd.s32 %v94, 128
    %vm96 = vcmp.lt.s32.totalorder %v94, 0
    %v97 = vsub.s32 0, %v94
    %v98 = vsel %vm96, %v97, %v94
    %v99 = vshrl.u32 %v98, 6
    %v100 = vand.u32 %v98, 63
    %v101 = vsub.s32 0, %v100
    %v102 = vsel %vm96, %v101, %v100
    %vm103 = vcmp.lt.s32.totalorder %v95, 0
    %v104 = vsub.s32 0, %v95
    %v105 = vsel %vm103, %v104, %v95
    %v106 = vshrl.u32 %v105, 6
    %v107 = vand.u32 %v105, 63
    %v108 = vsub.s32 0, %v107
    %v109 = vsel %vm103, %v108, %v107
    %vm110 = vcmp.ne.s32.totalorder %v102, 0
    %vm111 = vcmp.ne.s32.totalorder %v109, 0
    %vm112 = vcmp.lt.s32.totalorder %v102, 0
    %vm113 = vcmp.lt.s32.totalorder %v109, 0
    %vm114 = vmand %vm112, %vm110
    %vm115 = vmand %vm113, %vm111
    %v116 = vadd.s32 %v102, 64
    %v117 = vadd.s32 %v109, 64
    %v118 = vsel %vm114, %v116, %v102
    %v119 = vsel %vm115, %v117, %v109
    %vm120 = vcmp.lt.s32.totalorder %v118, 32
    %vm121 = vcmp.lt.s32.totalorder %v119, 32
    %v122 = vld [vmem:[%s0] sm:$0xff]
    %v123 = vld [vmem:[%s0 + $0x8] sm:$0xff]
    %v124 = vld [vmem:[%s0 + $0x10] sm:$0xff]
    %v125 = vld [vmem:[%s0 + $0x18] sm:$0xff]
    %v126 = vld [vmem:[%s0 + $0x20] sm:$0xff]
    %v127 = vld [vmem:[%s0 + $0x28] sm:$0xff]
    %v128 = vld [vmem:[%s0 + $0x30] sm:$0xff]
    %v129 = vld [vmem:[%s0 + $0x38] sm:$0xff]
    %v130 = vld [vmem:[#allocation5] sm:$0xff]
    %v131 = vld [vmem:[#allocation5 + $0x8] sm:$0xff]
    %v132 = vld [vmem:[#allocation5 + $0x10] sm:$0xff]
    %v133 = vld [vmem:[#allocation5 + $0x18] sm:$0xff]
    %v134 = vld [vmem:[%s3] sm:$0x3]
    %v136 = vlaneseq
    %v137 = vshrl.u32 %v136, 7
    %v138 = vsub.s32 0, %v137
    %v139 = vrot.slane %v134, %v138
    %v140 = vlaneseq
    %v141 = vshrl.u32 %v140, 7
    %v142 = vsub.s32 1, %v141
    %v143 = vrot.slane %v134, %v142
    %vm146 = vcmask 130048
    %v148 = vsel %vm146, %v122, 0
    %v151 = vsel %vm146, %v123, 0
    %v154 = vsel %vm146, %v124, 0
    %v157 = vsel %vm146, %v125, 0
    %v160 = vsel %vm146, %v126, 0
    %v163 = vsel %vm146, %v127, 0
    %v166 = vsel %vm146, %v128, 0
    %v169 = vsel %vm146, %v129, 0
    %171 = vmatprep.subr.mxu0 0.0
    %172 = vmatpush1.msra.mxu0 0.0
    %173 = vmatprep.subr.mxu0 0.0
    %174 = vmatpush1.msra.mxu0 0.0
    %175 = vmatprep.subr.mxu0 0.0
    %176 = vmatpush1.msra.mxu0 0.0
    %177 = vmatprep.subr.mxu0 0.0
    %178 = vmatpush1.msra.mxu0 0.0
    %179 = vmatprep.subr.mxu0 0.0
    %180 = vmatpush1.msra.mxu0 0.0
    %181 = vmatprep.subr.mxu0 0.0
    %182 = vmatpush1.msra.mxu0 0.0
    %183 = vmatprep.subr.mxu0 0.0
    %184 = vmatpush1.msra.mxu0 0.0
    %185 = vmatprep.subr.mxu0 0.0
    %186 = vmatpush1.msra.mxu0 0.0
    %187 = vmatprep.subr.mxu0 0.0
    %188 = vmatpush1.msra.mxu0 0.0
    %189 = vmatprep.subr.mxu0 0.0
    %190 = vmatpush1.msra.mxu0 0.0
    %191 = vmatprep.subr.mxu0 0.0
    %192 = vmatpush1.msra.mxu0 0.0
    %193 = vmatprep.subr.mxu0 0.0
    %194 = vmatpush1.msra.mxu0 0.0
    %195 = vmatprep.subr.mxu0 0.0
    %196 = vmatpush1.msra.mxu0 0.0
    %197 = vmatprep.subr.mxu0 0.0
    %198 = vmatpush1.msra.mxu0 0.0
    %199 = vmatprep.subr.mxu0 %v133
    %200 = vmatpush1.msra.mxu0 %v132
    %201 = vmatprep.subr.mxu0 %v131
    %202 = vmatpush1.msra.mxu0 %v130
    %203 = vmatprep.subr.mxu0 0.0
    %204 = vmatpush2.msra.mxu0 0.0
    %205 = vmatprep.subr.mxu0 0.0
    %206 = vmatpush2.msra.mxu0 0.0
    %207 = vmatprep.subr.mxu0 0.0
    %208 = vmatpush2.msra.mxu0 0.0
    %209 = vmatprep.subr.mxu0 0.0
    %210 = vmatpush2.msra.mxu0 0.0
    %211 = vmatprep.subr.mxu0 0.0
    %212 = vmatpush2.msra.mxu0 0.0
    %213 = vmatprep.subr.mxu0 0.0
    %214 = vmatpush2.msra.mxu0 0.0
    %215 = vmatprep.subr.mxu0 0.0
    %216 = vmatpush2.msra.mxu0 0.0
    %217 = vmatprep.subr.mxu0 0.0
    %218 = vmatpush2.msra.mxu0 0.0
    %219 = vmatprep.subr.mxu0 0.0
    %220 = vmatpush2.msra.mxu0 0.0
    %221 = vmatprep.subr.mxu0 0.0
    %222 = vmatpush2.msra.mxu0 0.0
    %223 = vmatprep.subr.mxu0 0.0
    %224 = vmatpush2.msra.mxu0 0.0
    %225 = vmatprep.subr.mxu0 0.0
    %226 = vmatpush2.msra.mxu0 0.0
    %227 = vmatprep.subr.mxu0 0.0
    %228 = vmatpush2.msra.mxu0 0.0
    %229 = vmatprep.subr.mxu0 0.0
    %230 = vmatpush2.msra.mxu0 0.0
    %231 = vmatprep.subr.mxu0 0.0
    %232 = vmatpush2.msra.mxu0 0.0
    %233 = vmatprep.subr.mxu0 0.0
    %234 = vmatpush2.msra.mxu0 0.0
    %235 = vmatprep.mubr.f32.mxu0 0.0
    %236 = vmatmul.mubr.f32.gmra.mxu0 %v148
    %v237 = vpop.f32.mrf.mxu0
    %v238 = vadd.f32 %v139, %v237
    %v239 = vpop.f32.mrf.mxu0
    %v240 = vadd.f32 %v143, %v239
    %241 = vmatprep.mubr.f32.mxu0 0.0
    %242 = vmatmul.mubr.f32.gmra.mxu0 %v151
    %v243 = vpop.f32.mrf.mxu0
    %v244 = vadd.f32 %v139, %v243
    %v245 = vpop.f32.mrf.mxu0
    %v246 = vadd.f32 %v143, %v245
    %247 = vmatprep.mubr.f32.mxu0 0.0
    %248 = vmatmul.mubr.f32.gmra.mxu0 %v154
    %v249 = vpop.f32.mrf.mxu0
    %v250 = vadd.f32 %v139, %v249
    %v251 = vpop.f32.mrf.mxu0
    %v252 = vadd.f32 %v143, %v251
    %253 = vmatprep.mubr.f32.mxu0 0.0
    %254 = vmatmul.mubr.f32.gmra.mxu0 %v157
    %v255 = vpop.f32.mrf.mxu0
    %v256 = vadd.f32 %v139, %v255
    %v257 = vpop.f32.mrf.mxu0
    %v258 = vadd.f32 %v143, %v257
    %259 = vmatprep.mubr.f32.mxu0 0.0
    %260 = vmatmul.mubr.f32.gmra.mxu0 %v160
    %v261 = vpop.f32.mrf.mxu0
    %v262 = vadd.f32 %v139, %v261
    %v263 = vpop.f32.mrf.mxu0
    %v264 = vadd.f32 %v143, %v263
    %265 = vmatprep.mubr.f32.mxu0 0.0
    %266 = vmatmul.mubr.f32.gmra.mxu0 %v163
    %v267 = vpop.f32.mrf.mxu0
    %v268 = vadd.f32 %v139, %v267
    %v269 = vpop.f32.mrf.mxu0
    %v270 = vadd.f32 %v143, %v269
    %271 = vmatprep.mubr.f32.mxu0 0.0
    %272 = vmatmul.mubr.f32.gmra.mxu0 %v166
    %v273 = vpop.f32.mrf.mxu0
    %v274 = vadd.f32 %v139, %v273
    %v275 = vpop.f32.mrf.mxu0
    %v276 = vadd.f32 %v143, %v275
    %277 = vmatprep.mubr.f32.mxu0 0.0
    %278 = vmatmul.mubr.f32.gmra.mxu0 %v169
    %v279 = vpop.f32.mrf.mxu0
    %v280 = vadd.f32 %v139, %v279
    %v281 = vpop.f32.mrf.mxu0
    %v282 = vadd.f32 %v143, %v281
    %283 = vdwg.mxu0
    %284 = vst [vmem:[#allocation2] sm:$0xff] %v238
    %285 = vst [vmem:[#allocation2 + $0x8] sm:$0xff] %v240
    %286 = vst [vmem:[#allocation2 + $0x10] sm:$0xff] %v244
    %287 = vst [vmem:[#allocation2 + $0x18] sm:$0xff] %v246
    %288 = vst [vmem:[#allocation2 + $0x20] sm:$0xff] %v250
    %289 = vst [vmem:[#allocation2 + $0x28] sm:$0xff] %v252
    %290 = vst [vmem:[#allocation2 + $0x30] sm:$0xff] %v256
    %291 = vst [vmem:[#allocation2 + $0x38] sm:$0xff] %v258
    %292 = vst [vmem:[#allocation2 + $0x40] sm:$0xff] %v262
    %293 = vst [vmem:[#allocation2 + $0x48] sm:$0xff] %v264
    %294 = vst [vmem:[#allocation2 + $0x50] sm:$0xff] %v268
    %295 = vst [vmem:[#allocation2 + $0x58] sm:$0xff] %v270
    %296 = vst [vmem:[#allocation2 + $0x60] sm:$0xff] %v274
    %297 = vst [vmem:[#allocation2 + $0x68] sm:$0xff] %v276
    %298 = vst [vmem:[#allocation2 + $0x70] sm:$0xff] %v280
    %299 = vst [vmem:[#allocation2 + $0x78] sm:$0xff] %v282
    %v300 = vld [vmem:[%s2] sm:$0xff]
    %v301 = vld [vmem:[%s2 + $0x8] sm:$0xff]
    %v302 = vld [vmem:[%s2 + $0x10] sm:$0xff]
    %v303 = vld [vmem:[%s2 + $0x18] sm:$0xff]
    %v304 = vld [vmem:[%s2 + $0x20] sm:$0xff]
    %v305 = vld [vmem:[%s2 + $0x28] sm:$0xff]
    %v306 = vld [vmem:[%s2 + $0x30] sm:$0xff]
    %v307 = vld [vmem:[%s2 + $0x38] sm:$0xff]
    %v308 = vld [vmem:[%s2 + $0x40] sm:$0xff]
    %v309 = vld [vmem:[%s2 + $0x48] sm:$0xff]
    %v310 = vld [vmem:[%s2 + $0x50] sm:$0xff]
    %v311 = vld [vmem:[%s2 + $0x58] sm:$0xff]
    %v312 = vld [vmem:[%s2 + $0x60] sm:$0xff]
    %v313 = vld [vmem:[%s2 + $0x68] sm:$0xff]
    %v314 = vld [vmem:[%s2 + $0x70] sm:$0xff]
    %v315 = vld [vmem:[%s2 + $0x78] sm:$0xff]
    %v316 = vld [vmem:[#allocation2] sm:$0xff]
    %v317 = vld [vmem:[#allocation2 + $0x8] sm:$0xff]
    %v318 = vld [vmem:[#allocation2 + $0x70] sm:$0xff]
    %v319 = vld [vmem:[#allocation2 + $0x78] sm:$0xff]
    %v320 = vsel %vm120, %v316, %v318
    %v321 = vsel %vm121, %v317, %v319
    %vm322 = vcmask 523264
    %v324 = vsel %vm322, 0.0, 0
    %326 = vmatprep.subr.mxu0 0.0
    %327 = vmatpush1.msra.mxu0 0.0
    %328 = vmatprep.subr.mxu0 0.0
    %329 = vmatpush1.msra.mxu0 0.0
    %330 = vmatprep.subr.mxu0 0.0
    %331 = vmatpush1.msra.mxu0 0.0
    %332 = vmatprep.subr.mxu0 0.0
    %333 = vmatpush1.msra.mxu0 0.0
    %334 = vmatprep.subr.mxu0 0.0
    %335 = vmatpush1.msra.mxu0 0.0
    %336 = vmatprep.subr.mxu0 0.0
    %337 = vmatpush1.msra.mxu0 0.0
    %338 = vmatprep.subr.mxu0 0.0
    %339 = vmatpush1.msra.mxu0 0.0
    %340 = vmatprep.subr.mxu0 0.0
    %341 = vmatpush1.msra.mxu0 0.0
    %342 = vmatprep.subr.mxu0 %v315
    %343 = vmatpush1.msra.mxu0 %v314
    %344 = vmatprep.subr.mxu0 %v313
    %345 = vmatpush1.msra.mxu0 %v312
    %346 = vmatprep.subr.mxu0 %v311
    %347 = vmatpush1.msra.mxu0 %v310
    %348 = vmatprep.subr.mxu0 %v309
    %349 = vmatpush1.msra.mxu0 %v308
    %350 = vmatprep.subr.mxu0 %v307
    %351 = vmatpush1.msra.mxu0 %v306
    %352 = vmatprep.subr.mxu0 %v305
    %353 = vmatpush1.msra.mxu0 %v304
    %354 = vmatprep.subr.mxu0 %v303
    %355 = vmatpush1.msra.mxu0 %v302
    %356 = vmatprep.subr.mxu0 %v301
    %357 = vmatpush1.msra.mxu0 %v300
    %358 = vmatprep.subr.mxu0 0.0
    %359 = vmatpush2.msra.mxu0 0.0
    %360 = vmatprep.subr.mxu0 0.0
    %361 = vmatpush2.msra.mxu0 0.0
    %362 = vmatprep.subr.mxu0 0.0
    %363 = vmatpush2.msra.mxu0 0.0
    %364 = vmatprep.subr.mxu0 0.0
    %365 = vmatpush2.msra.mxu0 0.0
    %366 = vmatprep.subr.mxu0 0.0
    %367 = vmatpush2.msra.mxu0 0.0
    %368 = vmatprep.subr.mxu0 0.0
    %369 = vmatpush2.msra.mxu0 0.0
    %370 = vmatprep.subr.mxu0 0.0
    %371 = vmatpush2.msra.mxu0 0.0
    %372 = vmatprep.subr.mxu0 0.0
    %373 = vmatpush2.msra.mxu0 0.0
    %374 = vmatprep.subr.mxu0 0.0
    %375 = vmatpush2.msra.mxu0 0.0
    %376 = vmatprep.subr.mxu0 0.0
    %377 = vmatpush2.msra.mxu0 0.0
    %378 = vmatprep.subr.mxu0 0.0
    %379 = vmatpush2.msra.mxu0 0.0
    %380 = vmatprep.subr.mxu0 0.0
    %381 = vmatpush2.msra.mxu0 0.0
    %382 = vmatprep.subr.mxu0 0.0
    %383 = vmatpush2.msra.mxu0 0.0
    %384 = vmatprep.subr.mxu0 0.0
    %385 = vmatpush2.msra.mxu0 0.0
    %386 = vmatprep.subr.mxu0 0.0
    %387 = vmatpush2.msra.mxu0 0.0
    %388 = vmatprep.subr.mxu0 0.0
    %389 = vmatpush2.msra.mxu0 0.0
    %390 = vmatprep.mubr.f32.mxu0 0.0
    %391 = vmatmul.mubr.f32.gmra.mxu0 %v324
    %v392 = vpop.f32.mrf.mxu0
    %v393 = vadd.f32 0.0, %v392
    %v394 = vpop.f32.mrf.mxu0
    %v395 = vadd.f32 0.0, %v394
    %396 = vdwg.mxu0
    %v397 = vadd.f32 %v320, %v393
    %v398 = vadd.f32 %v321, %v395
    %v399 = vxor.u32 %v397, 2147483648
    %v400 = vxor.u32 %v398, 2147483648
    %v401 = vmul.f32 %v399, 1.442695
    %v402 = vpow.pop %v401
    %v403 = vmul.f32 %v400, 1.442695
    %v404 = vpow.pop %v403
    %v405 = vadd.f32 %v402, 1.0
    %v406 = vadd.f32 %v404, 1.0
    %v407 = vrcp.pop %v405
    %v408 = vmul.f32 1.0, %v407
    %v409 = vrcp.pop %v406
    %v410 = vmul.f32 1.0, %v409
    %v411 = vtanh.pop %v398
    %v412 = vmul.f32 %v408, 0.0
    %414 = vrot.lane.b32.xlu0 %v411, 64
    %v415 = vpop.permute.xlu0 %414
    %v417 = vmul.f32 %v408, %v415
    %419 = vrot.lane.b32.xlu0 %v417, 64
    %v420 = vpop.permute.xlu0 %419
    %v422 = vadd.f32 %v412, %v420
    %v423 = vtanh.pop %v422
    %425 = vrot.lane.b32.xlu0 %v423, 64
    %v426 = vpop.permute.xlu0 %425
    %v428 = vmul.f32 %v410, %v426
    %vm429 = vcmask 261120
    %430 = vst.msk [vmem:[#allocation3] sm:$0xff] %vm429, %v428
    %vm431 = vcmask 523520
    %432 = vst.msk [vmem:[#allocation3 + $0x38] sm:$0xff] %vm431, %v428
    %v433 = vld [vmem:[#allocation2 + $0x10] sm:$0xff]
    %v434 = vld [vmem:[#allocation2 + $0x18] sm:$0xff]
    %v435 = vld [vmem:[#allocation2 + $0x60] sm:$0xff]
    %v436 = vld [vmem:[#allocation2 + $0x68] sm:$0xff]
    %v437 = vsel %vm120, %v433, %v435
    %v438 = vsel %vm121, %v434, %v436
    %v440 = vsel %vm322, %v428, 0
    %442 = vmatprep.subr.mxu0 0.0
    %443 = vmatpush1.msra.mxu0 0.0
    %444 = vmatprep.subr.mxu0 0.0
    %445 = vmatpush1.msra.mxu0 0.0
    %446 = vmatprep.subr.mxu0 0.0
    %447 = vmatpush1.msra.mxu0 0.0
    %448 = vmatprep.subr.mxu0 0.0
    %449 = vmatpush1.msra.mxu0 0.0
    %450 = vmatprep.subr.mxu0 0.0
    %451 = vmatpush1.msra.mxu0 0.0
    %452 = vmatprep.subr.mxu0 0.0
    %453 = vmatpush1.msra.mxu0 0.0
    %454 = vmatprep.subr.mxu0 0.0
    %455 = vmatpush1.msra.mxu0 0.0
    %456 = vmatprep.subr.mxu0 0.0
    %457 = vmatpush1.msra.mxu0 0.0
    %458 = vmatprep.subr.mxu0 %v315
    %459 = vmatpush1.msra.mxu0 %v314
    %460 = vmatprep.subr.mxu0 %v313
    %461 = vmatpush1.msra.mxu0 %v312
    %462 = vmatprep.subr.mxu0 %v311
    %463 = vmatpush1.msra.mxu0 %v310
    %464 = vmatprep.subr.mxu0 %v309
    %465 = vmatpush1.msra.mxu0 %v308
    %466 = vmatprep.subr.mxu0 %v307
    %467 = vmatpush1.msra.mxu0 %v306
    %468 = vmatprep.subr.mxu0 %v305
    %469 = vmatpush1.msra.mxu0 %v304
    %470 = vmatprep.subr.mxu0 %v303
    %471 = vmatpush1.msra.mxu0 %v302
    %472 = vmatprep.subr.mxu0 %v301
    %473 = vmatpush1.msra.mxu0 %v300
    %474 = vmatprep.subr.mxu0 0.0
    %475 = vmatpush2.msra.mxu0 0.0
    %476 = vmatprep.subr.mxu0 0.0
    %477 = vmatpush2.msra.mxu0 0.0
    %478 = vmatprep.subr.mxu0 0.0
    %479 = vmatpush2.msra.mxu0 0.0
    %480 = vmatprep.subr.mxu0 0.0
    %481 = vmatpush2.msra.mxu0 0.0
    %482 = vmatprep.subr.mxu0 0.0
    %483 = vmatpush2.msra.mxu0 0.0
    %484 = vmatprep.subr.mxu0 0.0
    %485 = vmatpush2.msra.mxu0 0.0
    %486 = vmatprep.subr.mxu0 0.0
    %487 = vmatpush2.msra.mxu0 0.0
    %488 = vmatprep.subr.mxu0 0.0
    %489 = vmatpush2.msra.mxu0 0.0
    %490 = vmatprep.subr.mxu0 0.0
    %491 = vmatpush2.msra.mxu0 0.0
    %492 = vmatprep.subr.mxu0 0.0
    %493 = vmatpush2.msra.mxu0 0.0
    %494 = vmatprep.subr.mxu0 0.0
    %495 = vmatpush2.msra.mxu0 0.0
    %496 = vmatprep.subr.mxu0 0.0
    %497 = vmatpush2.msra.mxu0 0.0
    %498 = vmatprep.subr.mxu0 0.0
    %499 = vmatpush2.msra.mxu0 0.0
    %500 = vmatprep.subr.mxu0 0.0
    %501 = vmatpush2.msra.mxu0 0.0
    %502 = vmatprep.subr.mxu0 0.0
    %503 = vmatpush2.msra.mxu0 0.0
    %504 = vmatprep.subr.mxu0 0.0
    %505 = vmatpush2.msra.mxu0 0.0
    %506 = vmatprep.mubr.f32.mxu0 0.0
    %507 = vmatmul.mubr.f32.gmra.mxu0 %v440
    %v508 = vpop.f32.mrf.mxu0
    %v509 = vadd.f32 0.0, %v508
    %v510 = vpop.f32.mrf.mxu0
    %v511 = vadd.f32 0.0, %v510
    %512 = vdwg.mxu0
    %v513 = vadd.f32 %v437, %v509
    %v514 = vadd.f32 %v438, %v511
    %v515 = vxor.u32 %v513, 2147483648
    %v516 = vxor.u32 %v514, 2147483648
    %v517 = vmul.f32 %v515, 1.442695
    %v518 = vpow.pop %v517
    %v519 = vmul.f32 %v516, 1.442695
    %v520 = vpow.pop %v519
    %v521 = vadd.f32 %v518, 1.0
    %v522 = vadd.f32 %v520, 1.0
    %v523 = vrcp.pop %v521
    %v524 = vmul.f32 1.0, %v523
    %v525 = vrcp.pop %v522
    %v526 = vmul.f32 1.0, %v525
    %v527 = vtanh.pop %v514
    %v528 = vmul.f32 %v524, %v422
    %530 = vrot.lane.b32.xlu0 %v527, 64
    %v531 = vpop.permute.xlu0 %530
    %v533 = vmul.f32 %v524, %v531
    %535 = vrot.lane.b32.xlu0 %v533, 64
    %v536 = vpop.permute.xlu0 %535
    %v538 = vadd.f32 %v528, %v536
    %v539 = vtanh.pop %v538
    %541 = vrot.lane.b32.xlu0 %v539, 64
    %v542 = vpop.permute.xlu0 %541
    %v544 = vmul.f32 %v526, %v542
    %545 = vst.msk [vmem:[#allocation3 + $0x8] sm:$0xff] %vm429, %v544
    %546 = vst.msk [vmem:[#allocation3 + $0x30] sm:$0xff] %vm431, %v544
    %v547 = vld [vmem:[#allocation2 + $0x20] sm:$0xff]
    %v548 = vld [vmem:[#allocation2 + $0x28] sm:$0xff]
    %v549 = vld [vmem:[#allocation2 + $0x50] sm:$0xff]
    %v550 = vld [vmem:[#allocation2 + $0x58] sm:$0xff]
    %v551 = vsel %vm120, %v547, %v549
    %v552 = vsel %vm121, %v548, %v550
    %v554 = vsel %vm322, %v544, 0
    %556 = vmatprep.subr.mxu0 0.0
    %557 = vmatpush1.msra.mxu0 0.0
    %558 = vmatprep.subr.mxu0 0.0
    %559 = vmatpush1.msra.mxu0 0.0
    %560 = vmatprep.subr.mxu0 0.0
    %561 = vmatpush1.msra.mxu0 0.0
    %562 = vmatprep.subr.mxu0 0.0
    %563 = vmatpush1.msra.mxu0 0.0
    %564 = vmatprep.subr.mxu0 0.0
    %565 = vmatpush1.msra.mxu0 0.0
    %566 = vmatprep.subr.mxu0 0.0
    %567 = vmatpush1.msra.mxu0 0.0
    %568 = vmatprep.subr.mxu0 0.0
    %569 = vmatpush1.msra.mxu0 0.0
    %570 = vmatprep.subr.mxu0 0.0
    %571 = vmatpush1.msra.mxu0 0.0
    %572 = vmatprep.subr.mxu0 %v315
    %573 = vmatpush1.msra.mxu0 %v314
    %574 = vmatprep.subr.mxu0 %v313
    %575 = vmatpush1.msra.mxu0 %v312
    %576 = vmatprep.subr.mxu0 %v311
    %577 = vmatpush1.msra.mxu0 %v310
    %578 = vmatprep.subr.mxu0 %v309
    %579 = vmatpush1.msra.mxu0 %v308
    %580 = vmatprep.subr.mxu0 %v307
    %581 = vmatpush1.msra.mxu0 %v306
    %582 = vmatprep.subr.mxu0 %v305
    %583 = vmatpush1.msra.mxu0 %v304
    %584 = vmatprep.subr.mxu0 %v303
    %585 = vmatpush1.msra.mxu0 %v302
    %586 = vmatprep.subr.mxu0 %v301
    %587 = vmatpush1.msra.mxu0 %v300
    %588 = vmatprep.subr.mxu0 0.0
    %589 = vmatpush2.msra.mxu0 0.0
    %590 = vmatprep.subr.mxu0 0.0
    %591 = vmatpush2.msra.mxu0 0.0
    %592 = vmatprep.subr.mxu0 0.0
    %593 = vmatpush2.msra.mxu0 0.0
    %594 = vmatprep.subr.mxu0 0.0
    %595 = vmatpush2.msra.mxu0 0.0
    %596 = vmatprep.subr.mxu0 0.0
    %597 = vmatpush2.msra.mxu0 0.0
    %598 = vmatprep.subr.mxu0 0.0
    %599 = vmatpush2.msra.mxu0 0.0
    %600 = vmatprep.subr.mxu0 0.0
    %601 = vmatpush2.msra.mxu0 0.0
    %602 = vmatprep.subr.mxu0 0.0
    %603 = vmatpush2.msra.mxu0 0.0
    %604 = vmatprep.subr.mxu0 0.0
    %605 = vmatpush2.msra.mxu0 0.0
    %606 = vmatprep.subr.mxu0 0.0
    %607 = vmatpush2.msra.mxu0 0.0
    %608 = vmatprep.subr.mxu0 0.0
    %609 = vmatpush2.msra.mxu0 0.0
    %610 = vmatprep.subr.mxu0 0.0
    %611 = vmatpush2.msra.mxu0 0.0
    %612 = vmatprep.subr.mxu0 0.0
    %613 = vmatpush2.msra.mxu0 0.0
    %614 = vmatprep.subr.mxu0 0.0
    %615 = vmatpush2.msra.mxu0 0.0
    %616 = vmatprep.subr.mxu0 0.0
    %617 = vmatpush2.msra.mxu0 0.0
    %618 = vmatprep.subr.mxu0 0.0
    %619 = vmatpush2.msra.mxu0 0.0
    %620 = vmatprep.mubr.f32.mxu0 0.0
    %621 = vmatmul.mubr.f32.gmra.mxu0 %v554
    %v622 = vpop.f32.mrf.mxu0
    %v623 = vadd.f32 0.0, %v622
    %v624 = vpop.f32.mrf.mxu0
    %v625 = vadd.f32 0.0, %v624
    %626 = vdwg.mxu0
    %v627 = vadd.f32 %v551, %v623
    %v628 = vadd.f32 %v552, %v625
    %v629 = vxor.u32 %v627, 2147483648
    %v630 = vxor.u32 %v628, 2147483648
    %v631 = vmul.f32 %v629, 1.442695
    %v632 = vpow.pop %v631
    %v633 = vmul.f32 %v630, 1.442695
    %v634 = vpow.pop %v633
    %v635 = vadd.f32 %v632, 1.0
    %v636 = vadd.f32 %v634, 1.0
    %v637 = vrcp.pop %v635
    %v638 = vmul.f32 1.0, %v637
    %v639 = vrcp.pop %v636
    %v640 = vmul.f32 1.0, %v639
    %v641 = vtanh.pop %v628
    %v642 = vmul.f32 %v638, %v538
    %644 = vrot.lane.b32.xlu0 %v641, 64
    %v645 = vpop.permute.xlu0 %644
    %v647 = vmul.f32 %v638, %v645
    %649 = vrot.lane.b32.xlu0 %v647, 64
    %v650 = vpop.permute.xlu0 %649
    %v652 = vadd.f32 %v642, %v650
    %v653 = vtanh.pop %v652
    %655 = vrot.lane.b32.xlu0 %v653, 64
    %v656 = vpop.permute.xlu0 %655
    %v658 = vmul.f32 %v640, %v656
    %659 = vst.msk [vmem:[#allocation3 + $0x10] sm:$0xff] %vm429, %v658
    %660 = vst.msk [vmem:[#allocation3 + $0x28] sm:$0xff] %vm431, %v658
    %v661 = vld [vmem:[#allocation2 + $0x30] sm:$0xff]
    %v662 = vld [vmem:[#allocation2 + $0x38] sm:$0xff]
    %v663 = vld [vmem:[#allocation2 + $0x40] sm:$0xff]
    %v664 = vld [vmem:[#allocation2 + $0x48] sm:$0xff]
    %v665 = vsel %vm120, %v661, %v663
    %v666 = vsel %vm121, %v662, %v664
    %v668 = vsel %vm322, %v658, 0
    %670 = vmatprep.subr.mxu0 0.0
    %671 = vmatpush1.msra.mxu0 0.0
    %672 = vmatprep.subr.mxu0 0.0
    %673 = vmatpush1.msra.mxu0 0.0
    %674 = vmatprep.subr.mxu0 0.0
    %675 = vmatpush1.msra.mxu0 0.0
    %676 = vmatprep.subr.mxu0 0.0
    %677 = vmatpush1.msra.mxu0 0.0
    %678 = vmatprep.subr.mxu0 0.0
    %679 = vmatpush1.msra.mxu0 0.0
    %680 = vmatprep.subr.mxu0 0.0
    %681 = vmatpush1.msra.mxu0 0.0
    %682 = vmatprep.subr.mxu0 0.0
    %683 = vmatpush1.msra.mxu0 0.0
    %684 = vmatprep.subr.mxu0 0.0
    %685 = vmatpush1.msra.mxu0 0.0
    %686 = vmatprep.subr.mxu0 %v315
    %687 = vmatpush1.msra.mxu0 %v314
    %688 = vmatprep.subr.mxu0 %v313
    %689 = vmatpush1.msra.mxu0 %v312
    %690 = vmatprep.subr.mxu0 %v311
    %691 = vmatpush1.msra.mxu0 %v310
    %692 = vmatprep.subr.mxu0 %v309
    %693 = vmatpush1.msra.mxu0 %v308
    %694 = vmatprep.subr.mxu0 %v307
    %695 = vmatpush1.msra.mxu0 %v306
    %696 = vmatprep.subr.mxu0 %v305
    %697 = vmatpush1.msra.mxu0 %v304
    %698 = vmatprep.subr.mxu0 %v303
    %699 = vmatpush1.msra.mxu0 %v302
    %700 = vmatprep.subr.mxu0 %v301
    %701 = vmatpush1.msra.mxu0 %v300
    %702 = vmatprep.subr.mxu0 0.0
    %703 = vmatpush2.msra.mxu0 0.0
    %704 = vmatprep.subr.mxu0 0.0
    %705 = vmatpush2.msra.mxu0 0.0
    %706 = vmatprep.subr.mxu0 0.0
    %707 = vmatpush2.msra.mxu0 0.0
    %708 = vmatprep.subr.mxu0 0.0
    %709 = vmatpush2.msra.mxu0 0.0
    %710 = vmatprep.subr.mxu0 0.0
    %711 = vmatpush2.msra.mxu0 0.0
    %712 = vmatprep.subr.mxu0 0.0
    %713 = vmatpush2.msra.mxu0 0.0
    %714 = vmatprep.subr.mxu0 0.0
    %715 = vmatpush2.msra.mxu0 0.0
    %716 = vmatprep.subr.mxu0 0.0
    %717 = vmatpush2.msra.mxu0 0.0
    %718 = vmatprep.subr.mxu0 0.0
    %719 = vmatpush2.msra.mxu0 0.0
    %720 = vmatprep.subr.mxu0 0.0
    %721 = vmatpush2.msra.mxu0 0.0
    %722 = vmatprep.subr.mxu0 0.0
    %723 = vmatpush2.msra.mxu0 0.0
    %724 = vmatprep.subr.mxu0 0.0
    %725 = vmatpush2.msra.mxu0 0.0
    %726 = vmatprep.subr.mxu0 0.0
    %727 = vmatpush2.msra.mxu0 0.0
    %728 = vmatprep.subr.mxu0 0.0
    %729 = vmatpush2.msra.mxu0 0.0
    %730 = vmatprep.subr.mxu0 0.0
    %731 = vmatpush2.msra.mxu0 0.0
    %732 = vmatprep.subr.mxu0 0.0
    %733 = vmatpush2.msra.mxu0 0.0
    %734 = vmatprep.mubr.f32.mxu0 0.0
    %735 = vmatmul.mubr.f32.gmra.mxu0 %v668
    %v736 = vpop.f32.mrf.mxu0
    %v737 = vadd.f32 0.0, %v736
    %v738 = vpop.f32.mrf.mxu0
    %v739 = vadd.f32 0.0, %v738
    %740 = vdwg.mxu0
    %v741 = vadd.f32 %v665, %v737
    %v742 = vadd.f32 %v666, %v739
    %v743 = vxor.u32 %v741, 2147483648
    %v744 = vxor.u32 %v742, 2147483648
    %v745 = vmul.f32 %v743, 1.442695
    %v746 = vpow.pop %v745
    %v747 = vmul.f32 %v744, 1.442695
    %v748 = vpow.pop %v747
    %v749 = vadd.f32 %v746, 1.0
    %v750 = vadd.f32 %v748, 1.0
    %v751 = vrcp.pop %v749
    %v752 = vmul.f32 1.0, %v751
    %v753 = vrcp.pop %v750
    %v754 = vmul.f32 1.0, %v753
    %v755 = vtanh.pop %v742
    %v756 = vmul.f32 %v752, %v652
    %758 = vrot.lane.b32.xlu0 %v755, 64
    %v759 = vpop.permute.xlu0 %758
    %v761 = vmul.f32 %v752, %v759
    %763 = vrot.lane.b32.xlu0 %v761, 64
    %v764 = vpop.permute.xlu0 %763
    %v766 = vadd.f32 %v756, %v764
    %v767 = vtanh.pop %v766
    %769 = vrot.lane.b32.xlu0 %v767, 64
    %v770 = vpop.permute.xlu0 %769
    %v772 = vmul.f32 %v754, %v770
    %773 = vst.msk [vmem:[#allocation3 + $0x18] sm:$0xff] %vm429, %v772
    %774 = vst.msk [vmem:[#allocation3 + $0x20] sm:$0xff] %vm431, %v772
    %v775 = vld [vmem:[#allocation2 + $0x40] sm:$0xff]
    %v776 = vld [vmem:[#allocation2 + $0x48] sm:$0xff]
    %v777 = vld [vmem:[#allocation2 + $0x30] sm:$0xff]
    %v778 = vld [vmem:[#allocation2 + $0x38] sm:$0xff]
    %v779 = vsel %vm120, %v775, %v777
    %v780 = vsel %vm121, %v776, %v778
    %v782 = vsel %vm322, %v772, 0
    %784 = vmatprep.subr.mxu0 0.0
    %785 = vmatpush1.msra.mxu0 0.0
    %786 = vmatprep.subr.mxu0 0.0
    %787 = vmatpush1.msra.mxu0 0.0
    %788 = vmatprep.subr.mxu0 0.0
    %789 = vmatpush1.msra.mxu0 0.0
    %790 = vmatprep.subr.mxu0 0.0
    %791 = vmatpush1.msra.mxu0 0.0
    %792 = vmatprep.subr.mxu0 0.0
    %793 = vmatpush1.msra.mxu0 0.0
    %794 = vmatprep.subr.mxu0 0.0
    %795 = vmatpush1.msra.mxu0 0.0
    %796 = vmatprep.subr.mxu0 0.0
    %797 = vmatpush1.msra.mxu0 0.0
    %798 = vmatprep.subr.mxu0 0.0
    %799 = vmatpush1.msra.mxu0 0.0
    %800 = vmatprep.subr.mxu0 %v315
    %801 = vmatpush1.msra.mxu0 %v314
    %802 = vmatprep.subr.mxu0 %v313
    %803 = vmatpush1.msra.mxu0 %v312
    %804 = vmatprep.subr.mxu0 %v311
    %805 = vmatpush1.msra.mxu0 %v310
    %806 = vmatprep.subr.mxu0 %v309
    %807 = vmatpush1.msra.mxu0 %v308
    %808 = vmatprep.subr.mxu0 %v307
    %809 = vmatpush1.msra.mxu0 %v306
    %810 = vmatprep.subr.mxu0 %v305
    %811 = vmatpush1.msra.mxu0 %v304
    %812 = vmatprep.subr.mxu0 %v303
    %813 = vmatpush1.msra.mxu0 %v302
    %814 = vmatprep.subr.mxu0 %v301
    %815 = vmatpush1.msra.mxu0 %v300
    %816 = vmatprep.subr.mxu0 0.0
    %817 = vmatpush2.msra.mxu0 0.0
    %818 = vmatprep.subr.mxu0 0.0
    %819 = vmatpush2.msra.mxu0 0.0
    %820 = vmatprep.subr.mxu0 0.0
    %821 = vmatpush2.msra.mxu0 0.0
    %822 = vmatprep.subr.mxu0 0.0
    %823 = vmatpush2.msra.mxu0 0.0
    %824 = vmatprep.subr.mxu0 0.0
    %825 = vmatpush2.msra.mxu0 0.0
    %826 = vmatprep.subr.mxu0 0.0
    %827 = vmatpush2.msra.mxu0 0.0
    %828 = vmatprep.subr.mxu0 0.0
    %829 = vmatpush2.msra.mxu0 0.0
    %830 = vmatprep.subr.mxu0 0.0
    %831 = vmatpush2.msra.mxu0 0.0
    %832 = vmatprep.subr.mxu0 0.0
    %833 = vmatpush2.msra.mxu0 0.0
    %834 = vmatprep.subr.mxu0 0.0
    %835 = vmatpush2.msra.mxu0 0.0
    %836 = vmatprep.subr.mxu0 0.0
    %837 = vmatpush2.msra.mxu0 0.0
    %838 = vmatprep.subr.mxu0 0.0
    %839 = vmatpush2.msra.mxu0 0.0
    %840 = vmatprep.subr.mxu0 0.0
    %841 = vmatpush2.msra.mxu0 0.0
    %842 = vmatprep.subr.mxu0 0.0
    %843 = vmatpush2.msra.mxu0 0.0
    %844 = vmatprep.subr.mxu0 0.0
    %845 = vmatpush2.msra.mxu0 0.0
    %846 = vmatprep.subr.mxu0 0.0
    %847 = vmatpush2.msra.mxu0 0.0
    %848 = vmatprep.mubr.f32.mxu0 0.0
    %849 = vmatmul.mubr.f32.gmra.mxu0 %v782
    %v850 = vpop.f32.mrf.mxu0
    %v851 = vadd.f32 0.0, %v850
    %v852 = vpop.f32.mrf.mxu0
    %v853 = vadd.f32 0.0, %v852
    %854 = vdwg.mxu0
    %v855 = vadd.f32 %v779, %v851
    %v856 = vadd.f32 %v780, %v853
    %v857 = vxor.u32 %v855, 2147483648
    %v858 = vxor.u32 %v856, 2147483648
    %v859 = vmul.f32 %v857, 1.442695
    %v860 = vpow.pop %v859
    %v861 = vmul.f32 %v858, 1.442695
    %v862 = vpow.pop %v861
    %v863 = vadd.f32 %v860, 1.0
    %v864 = vadd.f32 %v862, 1.0
    %v865 = vrcp.pop %v863
    %v866 = vmul.f32 1.0, %v865
    %v867 = vrcp.pop %v864
    %v868 = vmul.f32 1.0, %v867
    %v869 = vtanh.pop %v856
    %v870 = vmul.f32 %v866, %v766
    %872 = vrot.lane.b32.xlu0 %v869, 64
    %v873 = vpop.permute.xlu0 %872
    %v875 = vmul.f32 %v866, %v873
    %877 = vrot.lane.b32.xlu0 %v875, 64
    %v878 = vpop.permute.xlu0 %877
    %v880 = vadd.f32 %v870, %v878
    %v881 = vtanh.pop %v880
    %883 = vrot.lane.b32.xlu0 %v881, 64
    %v884 = vpop.permute.xlu0 %883
    %v886 = vmul.f32 %v868, %v884
    %887 = vst.msk [vmem:[#allocation3 + $0x20] sm:$0xff] %vm429, %v886
    %888 = vst.msk [vmem:[#allocation3 + $0x18] sm:$0xff] %vm431, %v886
    %v889 = vld [vmem:[#allocation2 + $0x50] sm:$0xff]
    %v890 = vld [vmem:[#allocation2 + $0x58] sm:$0xff]
    %v891 = vld [vmem:[#allocation2 + $0x20] sm:$0xff]
    %v892 = vld [vmem:[#allocation2 + $0x28] sm:$0xff]
    %v893 = vsel %vm120, %v889, %v891
    %v894 = vsel %vm121, %v890, %v892
    %v896 = vsel %vm322, %v886, 0
    %898 = vmatprep.subr.mxu0 0.0
    %899 = vmatpush1.msra.mxu0 0.0
    %900 = vmatprep.subr.mxu0 0.0
    %901 = vmatpush1.msra.mxu0 0.0
    %902 = vmatprep.subr.mxu0 0.0
    %903 = vmatpush1.msra.mxu0 0.0
    %904 = vmatprep.subr.mxu0 0.0
    %905 = vmatpush1.msra.mxu0 0.0
    %906 = vmatprep.subr.mxu0 0.0
    %907 = vmatpush1.msra.mxu0 0.0
    %908 = vmatprep.subr.mxu0 0.0
    %909 = vmatpush1.msra.mxu0 0.0
    %910 = vmatprep.subr.mxu0 0.0
    %911 = vmatpush1.msra.mxu0 0.0
    %912 = vmatprep.subr.mxu0 0.0
    %913 = vmatpush1.msra.mxu0 0.0
    %914 = vmatprep.subr.mxu0 %v315
    %915 = vmatpush1.msra.mxu0 %v314
    %916 = vmatprep.subr.mxu0 %v313
    %917 = vmatpush1.msra.mxu0 %v312
    %918 = vmatprep.subr.mxu0 %v311
    %919 = vmatpush1.msra.mxu0 %v310
    %920 = vmatprep.subr.mxu0 %v309
    %921 = vmatpush1.msra.mxu0 %v308
    %922 = vmatprep.subr.mxu0 %v307
    %923 = vmatpush1.msra.mxu0 %v306
    %924 = vmatprep.subr.mxu0 %v305
    %925 = vmatpush1.msra.mxu0 %v304
    %926 = vmatprep.subr.mxu0 %v303
    %927 = vmatpush1.msra.mxu0 %v302
    %928 = vmatprep.subr.mxu0 %v301
    %929 = vmatpush1.msra.mxu0 %v300
    %930 = vmatprep.subr.mxu0 0.0
    %931 = vmatpush2.msra.mxu0 0.0
    %932 = vmatprep.subr.mxu0 0.0
    %933 = vmatpush2.msra.mxu0 0.0
    %934 = vmatprep.subr.mxu0 0.0
    %935 = vmatpush2.msra.mxu0 0.0
    %936 = vmatprep.subr.mxu0 0.0
    %937 = vmatpush2.msra.mxu0 0.0
    %938 = vmatprep.subr.mxu0 0.0
    %939 = vmatpush2.msra.mxu0 0.0
    %940 = vmatprep.subr.mxu0 0.0
    %941 = vmatpush2.msra.mxu0 0.0
    %942 = vmatprep.subr.mxu0 0.0
    %943 = vmatpush2.msra.mxu0 0.0
    %944 = vmatprep.subr.mxu0 0.0
    %945 = vmatpush2.msra.mxu0 0.0
    %946 = vmatprep.subr.mxu0 0.0
    %947 = vmatpush2.msra.mxu0 0.0
    %948 = vmatprep.subr.mxu0 0.0
    %949 = vmatpush2.msra.mxu0 0.0
    %950 = vmatprep.subr.mxu0 0.0
    %951 = vmatpush2.msra.mxu0 0.0
    %952 = vmatprep.subr.mxu0 0.0
    %953 = vmatpush2.msra.mxu0 0.0
    %954 = vmatprep.subr.mxu0 0.0
    %955 = vmatpush2.msra.mxu0 0.0
    %956 = vmatprep.subr.mxu0 0.0
    %957 = vmatpush2.msra.mxu0 0.0
    %958 = vmatprep.subr.mxu0 0.0
    %959 = vmatpush2.msra.mxu0 0.0
    %960 = vmatprep.subr.mxu0 0.0
    %961 = vmatpush2.msra.mxu0 0.0
    %962 = vmatprep.mubr.f32.mxu0 0.0
    %963 = vmatmul.mubr.f32.gmra.mxu0 %v896
    %v964 = vpop.f32.mrf.mxu0
    %v965 = vadd.f32 0.0, %v964
    %v966 = vpop.f32.mrf.mxu0
    %v967 = vadd.f32 0.0, %v966
    %968 = vdwg.mxu0
    %v969 = vadd.f32 %v893, %v965
    %v970 = vadd.f32 %v894, %v967
    %v971 = vxor.u32 %v969, 2147483648
    %v972 = vxor.u32 %v970, 2147483648
    %v973 = vmul.f32 %v971, 1.442695
    %v974 = vpow.pop %v973
    %v975 = vmul.f32 %v972, 1.442695
    %v976 = vpow.pop %v975
    %v977 = vadd.f32 %v974, 1.0
    %v978 = vadd.f32 %v976, 1.0
    %v979 = vrcp.pop %v977
    %v980 = vmul.f32 1.0, %v979
    %v981 = vrcp.pop %v978
    %v982 = vmul.f32 1.0, %v981
    %v983 = vtanh.pop %v970
    %v984 = vmul.f32 %v980, %v880
    %986 = vrot.lane.b32.xlu0 %v983, 64
    %v987 = vpop.permute.xlu0 %986
    %v989 = vmul.f32 %v980, %v987
    %991 = vrot.lane.b32.xlu0 %v989, 64
    %v992 = vpop.permute.xlu0 %991
    %v994 = vadd.f32 %v984, %v992
    %v995 = vtanh.pop %v994
    %997 = vrot.lane.b32.xlu0 %v995, 64
    %v998 = vpop.permute.xlu0 %997
    %v1000 = vmul.f32 %v982, %v998
    %1001 = vst.msk [vmem:[#allocation3 + $0x28] sm:$0xff] %vm429, %v1000
    %1002 = vst.msk [vmem:[#allocation3 + $0x10] sm:$0xff] %vm431, %v1000
    %v1003 = vld [vmem:[#allocation2 + $0x60] sm:$0xff]
    %v1004 = vld [vmem:[#allocation2 + $0x68] sm:$0xff]
    %v1005 = vld [vmem:[#allocation2 + $0x10] sm:$0xff]
    %v1006 = vld [vmem:[#allocation2 + $0x18] sm:$0xff]
    %v1007 = vsel %vm120, %v1003, %v1005
    %v1008 = vsel %vm121, %v1004, %v1006
    %v1010 = vsel %vm322, %v1000, 0
    %1012 = vmatprep.subr.mxu0 0.0
    %1013 = vmatpush1.msra.mxu0 0.0
    %1014 = vmatprep.subr.mxu0 0.0
    %1015 = vmatpush1.msra.mxu0 0.0
    %1016 = vmatprep.subr.mxu0 0.0
    %1017 = vmatpush1.msra.mxu0 0.0
    %1018 = vmatprep.subr.mxu0 0.0
    %1019 = vmatpush1.msra.mxu0 0.0
    %1020 = vmatprep.subr.mxu0 0.0
    %1021 = vmatpush1.msra.mxu0 0.0
    %1022 = vmatprep.subr.mxu0 0.0
    %1023 = vmatpush1.msra.mxu0 0.0
    %1024 = vmatprep.subr.mxu0 0.0
    %1025 = vmatpush1.msra.mxu0 0.0
    %1026 = vmatprep.subr.mxu0 0.0
    %1027 = vmatpush1.msra.mxu0 0.0
    %1028 = vmatprep.subr.mxu0 %v315
    %1029 = vmatpush1.msra.mxu0 %v314
    %1030 = vmatprep.subr.mxu0 %v313
    %1031 = vmatpush1.msra.mxu0 %v312
    %1032 = vmatprep.subr.mxu0 %v311
    %1033 = vmatpush1.msra.mxu0 %v310
    %1034 = vmatprep.subr.mxu0 %v309
    %1035 = vmatpush1.msra.mxu0 %v308
    %1036 = vmatprep.subr.mxu0 %v307
    %1037 = vmatpush1.msra.mxu0 %v306
    %1038 = vmatprep.subr.mxu0 %v305
    %1039 = vmatpush1.msra.mxu0 %v304
    %1040 = vmatprep.subr.mxu0 %v303
    %1041 = vmatpush1.msra.mxu0 %v302
    %1042 = vmatprep.subr.mxu0 %v301
    %1043 = vmatpush1.msra.mxu0 %v300
    %1044 = vmatprep.subr.mxu0 0.0
    %1045 = vmatpush2.msra.mxu0 0.0
    %1046 = vmatprep.subr.mxu0 0.0
    %1047 = vmatpush2.msra.mxu0 0.0
    %1048 = vmatprep.subr.mxu0 0.0
    %1049 = vmatpush2.msra.mxu0 0.0
    %1050 = vmatprep.subr.mxu0 0.0
    %1051 = vmatpush2.msra.mxu0 0.0
    %1052 = vmatprep.subr.mxu0 0.0
    %1053 = vmatpush2.msra.mxu0 0.0
    %1054 = vmatprep.subr.mxu0 0.0
    %1055 = vmatpush2.msra.mxu0 0.0
    %1056 = vmatprep.subr.mxu0 0.0
    %1057 = vmatpush2.msra.mxu0 0.0
    %1058 = vmatprep.subr.mxu0 0.0
    %1059 = vmatpush2.msra.mxu0 0.0
    %1060 = vmatprep.subr.mxu0 0.0
    %1061 = vmatpush2.msra.mxu0 0.0
    %1062 = vmatprep.subr.mxu0 0.0
    %1063 = vmatpush2.msra.mxu0 0.0
    %1064 = vmatprep.subr.mxu0 0.0
    %1065 = vmatpush2.msra.mxu0 0.0
    %1066 = vmatprep.subr.mxu0 0.0
    %1067 = vmatpush2.msra.mxu0 0.0
    %1068 = vmatprep.subr.mxu0 0.0
    %1069 = vmatpush2.msra.mxu0 0.0
    %1070 = vmatprep.subr.mxu0 0.0
    %1071 = vmatpush2.msra.mxu0 0.0
    %1072 = vmatprep.subr.mxu0 0.0
    %1073 = vmatpush2.msra.mxu0 0.0
    %1074 = vmatprep.subr.mxu0 0.0
    %1075 = vmatpush2.msra.mxu0 0.0
    %1076 = vmatprep.mubr.f32.mxu0 0.0
    %1077 = vmatmul.mubr.f32.gmra.mxu0 %v1010
    %v1078 = vpop.f32.mrf.mxu0
    %v1079 = vadd.f32 0.0, %v1078
    %v1080 = vpop.f32.mrf.mxu0
    %v1081 = vadd.f32 0.0, %v1080
    %1082 = vdwg.mxu0
    %v1083 = vadd.f32 %v1007, %v1079
    %v1084 = vadd.f32 %v1008, %v1081
    %v1085 = vxor.u32 %v1083, 2147483648
    %v1086 = vxor.u32 %v1084, 2147483648
    %v1087 = vmul.f32 %v1085, 1.442695
    %v1088 = vpow.pop %v1087
    %v1089 = vmul.f32 %v1086, 1.442695
    %v1090 = vpow.pop %v1089
    %v1091 = vadd.f32 %v1088, 1.0
    %v1092 = vadd.f32 %v1090, 1.0
    %v1093 = vrcp.pop %v1091
    %v1094 = vmul.f32 1.0, %v1093
    %v1095 = vrcp.pop %v1092
    %v1096 = vmul.f32 1.0, %v1095
    %v1097 = vtanh.pop %v1084
    %v1098 = vmul.f32 %v1094, %v994
    %1100 = vrot.lane.b32.xlu0 %v1097, 64
    %v1101 = vpop.permute.xlu0 %1100
    %v1103 = vmul.f32 %v1094, %v1101
    %1105 = vrot.lane.b32.xlu0 %v1103, 64
    %v1106 = vpop.permute.xlu0 %1105
    %v1108 = vadd.f32 %v1098, %v1106
    %v1109 = vtanh.pop %v1108
    %1111 = vrot.lane.b32.xlu0 %v1109, 64
    %v1112 = vpop.permute.xlu0 %1111
    %v1114 = vmul.f32 %v1096, %v1112
    %1115 = vst.msk [vmem:[#allocation3 + $0x30] sm:$0xff] %vm429, %v1114
    %1116 = vst.msk [vmem:[#allocation3 + $0x8] sm:$0xff] %vm431, %v1114
    %v1117 = vld [vmem:[#allocation2 + $0x70] sm:$0xff]
    %v1118 = vld [vmem:[#allocation2 + $0x78] sm:$0xff]
    %v1119 = vld [vmem:[#allocation2] sm:$0xff]
    %v1120 = vld [vmem:[#allocation2 + $0x8] sm:$0xff]
    %v1121 = vsel %vm120, %v1117, %v1119
    %v1122 = vsel %vm121, %v1118, %v1120
    %v1124 = vsel %vm322, %v1114, 0
    %1126 = vmatprep.subr.mxu0 0.0
    %1127 = vmatpush1.msra.mxu0 0.0
    %1128 = vmatprep.subr.mxu0 0.0
    %1129 = vmatpush1.msra.mxu0 0.0
    %1130 = vmatprep.subr.mxu0 0.0
    %1131 = vmatpush1.msra.mxu0 0.0
    %1132 = vmatprep.subr.mxu0 0.0
    %1133 = vmatpush1.msra.mxu0 0.0
    %1134 = vmatprep.subr.mxu0 0.0
    %1135 = vmatpush1.msra.mxu0 0.0
    %1136 = vmatprep.subr.mxu0 0.0
    %1137 = vmatpush1.msra.mxu0 0.0
    %1138 = vmatprep.subr.mxu0 0.0
    %1139 = vmatpush1.msra.mxu0 0.0
    %1140 = vmatprep.subr.mxu0 0.0
    %1141 = vmatpush1.msra.mxu0 0.0
    %1142 = vmatprep.subr.mxu0 %v315
    %1143 = vmatpush1.msra.mxu0 %v314
    %1144 = vmatprep.subr.mxu0 %v313
    %1145 = vmatpush1.msra.mxu0 %v312
    %1146 = vmatprep.subr.mxu0 %v311
    %1147 = vmatpush1.msra.mxu0 %v310
    %1148 = vmatprep.subr.mxu0 %v309
    %1149 = vmatpush1.msra.mxu0 %v308
    %1150 = vmatprep.subr.mxu0 %v307
    %1151 = vmatpush1.msra.mxu0 %v306
    %1152 = vmatprep.subr.mxu0 %v305
    %1153 = vmatpush1.msra.mxu0 %v304
    %1154 = vmatprep.subr.mxu0 %v303
    %1155 = vmatpush1.msra.mxu0 %v302
    %1156 = vmatprep.subr.mxu0 %v301
    %1157 = vmatpush1.msra.mxu0 %v300
    %1158 = vmatprep.subr.mxu0 0.0
    %1159 = vmatpush2.msra.mxu0 0.0
    %1160 = vmatprep.subr.mxu0 0.0
    %1161 = vmatpush2.msra.mxu0 0.0
    %1162 = vmatprep.subr.mxu0 0.0
    %1163 = vmatpush2.msra.mxu0 0.0
    %1164 = vmatprep.subr.mxu0 0.0
    %1165 = vmatpush2.msra.mxu0 0.0
    %1166 = vmatprep.subr.mxu0 0.0
    %1167 = vmatpush2.msra.mxu0 0.0
    %1168 = vmatprep.subr.mxu0 0.0
    %1169 = vmatpush2.msra.mxu0 0.0
    %1170 = vmatprep.subr.mxu0 0.0
    %1171 = vmatpush2.msra.mxu0 0.0
    %1172 = vmatprep.subr.mxu0 0.0
    %1173 = vmatpush2.msra.mxu0 0.0
    %1174 = vmatprep.subr.mxu0 0.0
    %1175 = vmatpush2.msra.mxu0 0.0
    %1176 = vmatprep.subr.mxu0 0.0
    %1177 = vmatpush2.msra.mxu0 0.0
    %1178 = vmatprep.subr.mxu0 0.0
    %1179 = vmatpush2.msra.mxu0 0.0
    %1180 = vmatprep.subr.mxu0 0.0
    %1181 = vmatpush2.msra.mxu0 0.0
    %1182 = vmatprep.subr.mxu0 0.0
    %1183 = vmatpush2.msra.mxu0 0.0
    %1184 = vmatprep.subr.mxu0 0.0
    %1185 = vmatpush2.msra.mxu0 0.0
    %1186 = vmatprep.subr.mxu0 0.0
    %1187 = vmatpush2.msra.mxu0 0.0
    %1188 = vmatprep.subr.mxu0 0.0
    %1189 = vmatpush2.msra.mxu0 0.0
    %1190 = vmatprep.mubr.f32.mxu0 0.0
    %1191 = vmatmul.mubr.f32.gmra.mxu0 %v1124
    %v1192 = vpop.f32.mrf.mxu0
    %v1193 = vadd.f32 0.0, %v1192
    %v1194 = vpop.f32.mrf.mxu0
    %v1195 = vadd.f32 0.0, %v1194
    %1196 = vdwg.mxu0
    %v1197 = vadd.f32 %v1121, %v1193
    %v1198 = vadd.f32 %v1122, %v1195
    %v1199 = vxor.u32 %v1197, 2147483648
    %v1200 = vxor.u32 %v1198, 2147483648
    %v1201 = vmul.f32 %v1199, 1.442695
    %v1202 = vpow.pop %v1201
    %v1203 = vmul.f32 %v1200, 1.442695
    %v1204 = vpow.pop %v1203
    %v1205 = vadd.f32 %v1202, 1.0
    %v1206 = vadd.f32 %v1204, 1.0
    %v1207 = vrcp.pop %v1205
    %v1208 = vmul.f32 1.0, %v1207
    %v1209 = vrcp.pop %v1206
    %v1210 = vmul.f32 1.0, %v1209
    %v1211 = vtanh.pop %v1198
    %v1212 = vmul.f32 %v1208, %v1108
    %1214 = vrot.lane.b32.xlu0 %v1211, 64
    %v1215 = vpop.permute.xlu0 %1214
    %v1217 = vmul.f32 %v1208, %v1215
    %1219 = vrot.lane.b32.xlu0 %v1217, 64
    %v1220 = vpop.permute.xlu0 %1219
    %v1222 = vadd.f32 %v1212, %v1220
    %v1223 = vtanh.pop %v1222
    %1225 = vrot.lane.b32.xlu0 %v1223, 64
    %v1226 = vpop.permute.xlu0 %1225
    %v1228 = vmul.f32 %v1210, %v1226
    %1229 = vst.msk [vmem:[#allocation3 + $0x38] sm:$0xff] %vm429, %v1228
    %1230 = vst.msk [vmem:[#allocation3] sm:$0xff] %vm431, %v1228
    %v1231 = vld [vmem:[#allocation3] sm:$0xff]
    %v1232 = vld [vmem:[#allocation3 + $0x8] sm:$0xff]
    %v1233 = vld [vmem:[#allocation3 + $0x10] sm:$0xff]
    %v1234 = vld [vmem:[#allocation3 + $0x18] sm:$0xff]
    %v1235 = vld [vmem:[#allocation3 + $0x20] sm:$0xff]
    %v1236 = vld [vmem:[#allocation3 + $0x28] sm:$0xff]
    %v1237 = vld [vmem:[#allocation3 + $0x30] sm:$0xff]
    %v1238 = vld [vmem:[#allocation3 + $0x38] sm:$0xff]
    %v1239 = vld [vmem:[%s4] sm:$0xff]
    %v1240 = vld [vmem:[%s4 + $0x8] sm:$0xff]
    %v1241 = vld [vmem:[%s4 + $0x10] sm:$0xff]
    %v1242 = vld [vmem:[%s4 + $0x18] sm:$0xff]
    %v1243 = vld [vmem:[%s4 + $0x20] sm:$0xff]
    %v1244 = vld [vmem:[%s4 + $0x28] sm:$0xff]
    %v1245 = vld [vmem:[%s4 + $0x30] sm:$0xff]
    %v1246 = vld [vmem:[%s4 + $0x38] sm:$0xff]
    %v1247 = vld [vmem:[%s4 + $0x40] sm:$0xff]
    %v1248 = vld [vmem:[%s4 + $0x48] sm:$0xff]
    %v1249 = vld [vmem:[%s4 + $0x50] sm:$0xff]
    %v1250 = vld [vmem:[%s4 + $0x58] sm:$0xff]
    %v1251 = vld [vmem:[%s4 + $0x60] sm:$0xff]
    %v1252 = vld [vmem:[%s4 + $0x68] sm:$0xff]
    %v1253 = vld [vmem:[%s4 + $0x70] sm:$0xff]
    %v1254 = vld [vmem:[%s4 + $0x78] sm:$0xff]
    %v1255 = vld [vmem:[%s6] sm:$0x3]
    %v1257 = vlaneseq
    %v1258 = vshrl.u32 %v1257, 7
    %v1259 = vsub.s32 0, %v1258
    %v1260 = vrot.slane %v1255, %v1259
    %v1261 = vlaneseq
    %v1262 = vshrl.u32 %v1261, 7
    %v1263 = vsub.s32 1, %v1262
    %v1264 = vrot.slane %v1255, %v1263
    %v1268 = vsel %vm322, %v1231, 0
    %v1271 = vsel %vm322, %v1232, 0
    %v1274 = vsel %vm322, %v1233, 0
    %v1277 = vsel %vm322, %v1234, 0
    %v1280 = vsel %vm322, %v1235, 0
    %v1283 = vsel %vm322, %v1236, 0
    %v1286 = vsel %vm322, %v1237, 0
    %v1289 = vsel %vm322, %v1238, 0
    %1291 = vmatprep.subr.mxu0 0.0
    %1292 = vmatpush1.msra.mxu0 0.0
    %1293 = vmatprep.subr.mxu0 0.0
    %1294 = vmatpush1.msra.mxu0 0.0
    %1295 = vmatprep.subr.mxu0 0.0
    %1296 = vmatpush1.msra.mxu0 0.0
    %1297 = vmatprep.subr.mxu0 0.0
    %1298 = vmatpush1.msra.mxu0 0.0
    %1299 = vmatprep.subr.mxu0 0.0
    %1300 = vmatpush1.msra.mxu0 0.0
    %1301 = vmatprep.subr.mxu0 0.0
    %1302 = vmatpush1.msra.mxu0 0.0
    %1303 = vmatprep.subr.mxu0 0.0
    %1304 = vmatpush1.msra.mxu0 0.0
    %1305 = vmatprep.subr.mxu0 0.0
    %1306 = vmatpush1.msra.mxu0 0.0
    %1307 = vmatprep.subr.mxu0 %v1254
    %1308 = vmatpush1.msra.mxu0 %v1253
    %1309 = vmatprep.subr.mxu0 %v1252
    %1310 = vmatpush1.msra.mxu0 %v1251
    %1311 = vmatprep.subr.mxu0 %v1250
    %1312 = vmatpush1.msra.mxu0 %v1249
    %1313 = vmatprep.subr.mxu0 %v1248
    %1314 = vmatpush1.msra.mxu0 %v1247
    %1315 = vmatprep.subr.mxu0 %v1246
    %1316 = vmatpush1.msra.mxu0 %v1245
    %1317 = vmatprep.subr.mxu0 %v1244
    %1318 = vmatpush1.msra.mxu0 %v1243
    %1319 = vmatprep.subr.mxu0 %v1242
    %1320 = vmatpush1.msra.mxu0 %v1241
    %1321 = vmatprep.subr.mxu0 %v1240
    %1322 = vmatpush1.msra.mxu0 %v1239
    %1323 = vmatprep.subr.mxu0 0.0
    %1324 = vmatpush2.msra.mxu0 0.0
    %1325 = vmatprep.subr.mxu0 0.0
    %1326 = vmatpush2.msra.mxu0 0.0
    %1327 = vmatprep.subr.mxu0 0.0
    %1328 = vmatpush2.msra.mxu0 0.0
    %1329 = vmatprep.subr.mxu0 0.0
    %1330 = vmatpush2.msra.mxu0 0.0
    %1331 = vmatprep.subr.mxu0 0.0
    %1332 = vmatpush2.msra.mxu0 0.0
    %1333 = vmatprep.subr.mxu0 0.0
    %1334 = vmatpush2.msra.mxu0 0.0
    %1335 = vmatprep.subr.mxu0 0.0
    %1336 = vmatpush2.msra.mxu0 0.0
    %1337 = vmatprep.subr.mxu0 0.0
    %1338 = vmatpush2.msra.mxu0 0.0
    %1339 = vmatprep.subr.mxu0 0.0
    %1340 = vmatpush2.msra.mxu0 0.0
    %1341 = vmatprep.subr.mxu0 0.0
    %1342 = vmatpush2.msra.mxu0 0.0
    %1343 = vmatprep.subr.mxu0 0.0
    %1344 = vmatpush2.msra.mxu0 0.0
    %1345 = vmatprep.subr.mxu0 0.0
    %1346 = vmatpush2.msra.mxu0 0.0
    %1347 = vmatprep.subr.mxu0 0.0
    %1348 = vmatpush2.msra.mxu0 0.0
    %1349 = vmatprep.subr.mxu0 0.0
    %1350 = vmatpush2.msra.mxu0 0.0
    %1351 = vmatprep.subr.mxu0 0.0
    %1352 = vmatpush2.msra.mxu0 0.0
    %1353 = vmatprep.subr.mxu0 0.0
    %1354 = vmatpush2.msra.mxu0 0.0
    %1355 = vmatprep.mubr.f32.mxu0 0.0
    %1356 = vmatmul.mubr.f32.gmra.mxu0 %v1268
    %v1357 = vpop.f32.mrf.mxu0
    %v1358 = vadd.f32 %v1260, %v1357
    %v1359 = vpop.f32.mrf.mxu0
    %v1360 = vadd.f32 %v1264, %v1359
    %1361 = vmatprep.mubr.f32.mxu0 0.0
    %1362 = vmatmul.mubr.f32.gmra.mxu0 %v1271
    %v1363 = vpop.f32.mrf.mxu0
    %v1364 = vadd.f32 %v1260, %v1363
    %v1365 = vpop.f32.mrf.mxu0
    %v1366 = vadd.f32 %v1264, %v1365
    %1367 = vmatprep.mubr.f32.mxu0 0.0
    %1368 = vmatmul.mubr.f32.gmra.mxu0 %v1274
    %v1369 = vpop.f32.mrf.mxu0
    %v1370 = vadd.f32 %v1260, %v1369
    %v1371 = vpop.f32.mrf.mxu0
    %v1372 = vadd.f32 %v1264, %v1371
    %1373 = vmatprep.mubr.f32.mxu0 0.0
    %1374 = vmatmul.mubr.f32.gmra.mxu0 %v1277
    %v1375 = vpop.f32.mrf.mxu0
    %v1376 = vadd.f32 %v1260, %v1375
    %v1377 = vpop.f32.mrf.mxu0
    %v1378 = vadd.f32 %v1264, %v1377
    %1379 = vmatprep.mubr.f32.mxu0 0.0
    %1380 = vmatmul.mubr.f32.gmra.mxu0 %v1280
    %v1381 = vpop.f32.mrf.mxu0
    %v1382 = vadd.f32 %v1260, %v1381
    %v1383 = vpop.f32.mrf.mxu0
    %v1384 = vadd.f32 %v1264, %v1383
    %1385 = vmatprep.mubr.f32.mxu0 0.0
    %1386 = vmatmul.mubr.f32.gmra.mxu0 %v1283
    %v1387 = vpop.f32.mrf.mxu0
    %v1388 = vadd.f32 %v1260, %v1387
    %v1389 = vpop.f32.mrf.mxu0
    %v1390 = vadd.f32 %v1264, %v1389
    %1391 = vmatprep.mubr.f32.mxu0 0.0
    %1392 = vmatmul.mubr.f32.gmra.mxu0 %v1286
    %v1393 = vpop.f32.mrf.mxu0
    %v1394 = vadd.f32 %v1260, %v1393
    %v1395 = vpop.f32.mrf.mxu0
    %v1396 = vadd.f32 %v1264, %v1395
    %1397 = vmatprep.mubr.f32.mxu0 0.0
    %1398 = vmatmul.mubr.f32.gmra.mxu0 %v1289
    %v1399 = vpop.f32.mrf.mxu0
    %v1400 = vadd.f32 %v1260, %v1399
    %v1401 = vpop.f32.mrf.mxu0
    %v1402 = vadd.f32 %v1264, %v1401
    %1403 = vdwg.mxu0
    %1404 = vst [vmem:[#allocation2] sm:$0xff] %v1358
    %1405 = vst [vmem:[#allocation2 + $0x8] sm:$0xff] %v1360
    %1406 = vst [vmem:[#allocation2 + $0x10] sm:$0xff] %v1364
    %1407 = vst [vmem:[#allocation2 + $0x18] sm:$0xff] %v1366
    %1408 = vst [vmem:[#allocation2 + $0x20] sm:$0xff] %v1370
    %1409 = vst [vmem:[#allocation2 + $0x28] sm:$0xff] %v1372
    %1410 = vst [vmem:[#allocation2 + $0x30] sm:$0xff] %v1376
    %1411 = vst [vmem:[#allocation2 + $0x38] sm:$0xff] %v1378
    %1412 = vst [vmem:[#allocation2 + $0x40] sm:$0xff] %v1382
    %1413 = vst [vmem:[#allocation2 + $0x48] sm:$0xff] %v1384
    %1414 = vst [vmem:[#allocation2 + $0x50] sm:$0xff] %v1388
    %1415 = vst [vmem:[#allocation2 + $0x58] sm:$0xff] %v1390
    %1416 = vst [vmem:[#allocation2 + $0x60] sm:$0xff] %v1394
    %1417 = vst [vmem:[#allocation2 + $0x68] sm:$0xff] %v1396
    %1418 = vst [vmem:[#allocation2 + $0x70] sm:$0xff] %v1400
    %1419 = vst [vmem:[#allocation2 + $0x78] sm:$0xff] %v1402
    %v1420 = vld [vmem:[#allocation7] sm:$0xff]
    %v1421 = vld [vmem:[#allocation7 + $0x8] sm:$0xff]
    %v1422 = vld [vmem:[#allocation7 + $0x10] sm:$0xff]
    %v1423 = vld [vmem:[#allocation7 + $0x18] sm:$0xff]
    %v1424 = vld [vmem:[#allocation7 + $0x20] sm:$0xff]
    %v1425 = vld [vmem:[#allocation7 + $0x28] sm:$0xff]
    %v1426 = vld [vmem:[#allocation7 + $0x30] sm:$0xff]
    %v1427 = vld [vmem:[#allocation7 + $0x38] sm:$0xff]
    %v1428 = vld [vmem:[#allocation7 + $0x40] sm:$0xff]
    %v1429 = vld [vmem:[#allocation7 + $0x48] sm:$0xff]
    %v1430 = vld [vmem:[#allocation7 + $0x50] sm:$0xff]
    %v1431 = vld [vmem:[#allocation7 + $0x58] sm:$0xff]
    %v1432 = vld [vmem:[#allocation7 + $0x60] sm:$0xff]
    %v1433 = vld [vmem:[#allocation7 + $0x68] sm:$0xff]
    %v1434 = vld [vmem:[#allocation7 + $0x70] sm:$0xff]
    %v1435 = vld [vmem:[#allocation7 + $0x78] sm:$0xff]
    %v1436 = vld [vmem:[#allocation2] sm:$0xff]
    %v1437 = vld [vmem:[#allocation2 + $0x8] sm:$0xff]
    %v1438 = vld [vmem:[#allocation2 + $0x70] sm:$0xff]
    %v1439 = vld [vmem:[#allocation2 + $0x78] sm:$0xff]
    %v1440 = vsel %vm120, %v1436, %v1438
    %v1441 = vsel %vm121, %v1437, %v1439
    %1442 = vmatprep.subr.mxu0 0.0
    %1443 = vmatpush1.msra.mxu0 0.0
    %1444 = vmatprep.subr.mxu0 0.0
    %1445 = vmatpush1.msra.mxu0 0.0
    %1446 = vmatprep.subr.mxu0 0.0
    %1447 = vmatpush1.msra.mxu0 0.0
    %1448 = vmatprep.subr.mxu0 0.0
    %1449 = vmatpush1.msra.mxu0 0.0
    %1450 = vmatprep.subr.mxu0 0.0
    %1451 = vmatpush1.msra.mxu0 0.0
    %1452 = vmatprep.subr.mxu0 0.0
    %1453 = vmatpush1.msra.mxu0 0.0
    %1454 = vmatprep.subr.mxu0 0.0
    %1455 = vmatpush1.msra.mxu0 0.0
    %1456 = vmatprep.subr.mxu0 0.0
    %1457 = vmatpush1.msra.mxu0 0.0
    %1458 = vmatprep.subr.mxu0 %v1435
    %1459 = vmatpush1.msra.mxu0 %v1434
    %1460 = vmatprep.subr.mxu0 %v1433
    %1461 = vmatpush1.msra.mxu0 %v1432
    %1462 = vmatprep.subr.mxu0 %v1431
    %1463 = vmatpush1.msra.mxu0 %v1430
    %1464 = vmatprep.subr.mxu0 %v1429
    %1465 = vmatpush1.msra.mxu0 %v1428
    %1466 = vmatprep.subr.mxu0 %v1427
    %1467 = vmatpush1.msra.mxu0 %v1426
    %1468 = vmatprep.subr.mxu0 %v1425
    %1469 = vmatpush1.msra.mxu0 %v1424
    %1470 = vmatprep.subr.mxu0 %v1423
    %1471 = vmatpush1.msra.mxu0 %v1422
    %1472 = vmatprep.subr.mxu0 %v1421
    %1473 = vmatpush1.msra.mxu0 %v1420
    %1474 = vmatprep.subr.mxu0 0.0
    %1475 = vmatpush2.msra.mxu0 0.0
    %1476 = vmatprep.subr.mxu0 0.0
    %1477 = vmatpush2.msra.mxu0 0.0
    %1478 = vmatprep.subr.mxu0 0.0
    %1479 = vmatpush2.msra.mxu0 0.0
    %1480 = vmatprep.subr.mxu0 0.0
    %1481 = vmatpush2.msra.mxu0 0.0
    %1482 = vmatprep.subr.mxu0 0.0
    %1483 = vmatpush2.msra.mxu0 0.0
    %1484 = vmatprep.subr.mxu0 0.0
    %1485 = vmatpush2.msra.mxu0 0.0
    %1486 = vmatprep.subr.mxu0 0.0
    %1487 = vmatpush2.msra.mxu0 0.0
    %1488 = vmatprep.subr.mxu0 0.0
    %1489 = vmatpush2.msra.mxu0 0.0
    %1490 = vmatprep.subr.mxu0 0.0
    %1491 = vmatpush2.msra.mxu0 0.0
    %1492 = vmatprep.subr.mxu0 0.0
    %1493 = vmatpush2.msra.mxu0 0.0
    %1494 = vmatprep.subr.mxu0 0.0
    %1495 = vmatpush2.msra.mxu0 0.0
    %1496 = vmatprep.subr.mxu0 0.0
    %1497 = vmatpush2.msra.mxu0 0.0
    %1498 = vmatprep.subr.mxu0 0.0
    %1499 = vmatpush2.msra.mxu0 0.0
    %1500 = vmatprep.subr.mxu0 0.0
    %1501 = vmatpush2.msra.mxu0 0.0
    %1502 = vmatprep.subr.mxu0 0.0
    %1503 = vmatpush2.msra.mxu0 0.0
    %1504 = vmatprep.subr.mxu0 0.0
    %1505 = vmatpush2.msra.mxu0 0.0
    %1506 = vmatprep.mubr.f32.mxu0 0.0
    %1507 = vmatmul.mubr.f32.gmra.mxu0 %v324
    %v1508 = vpop.f32.mrf.mxu0
    %v1509 = vadd.f32 0.0, %v1508
    %v1510 = vpop.f32.mrf.mxu0
    %v1511 = vadd.f32 0.0, %v1510
    %1512 = vdwg.mxu0
    %v1513 = vadd.f32 %v1440, %v1509
    %v1514 = vadd.f32 %v1441, %v1511
    %v1515 = vxor.u32 %v1513, 2147483648
    %v1516 = vxor.u32 %v1514, 2147483648
    %v1517 = vmul.f32 %v1515, 1.442695
    %v1518 = vpow.pop %v1517
    %v1519 = vmul.f32 %v1516, 1.442695
    %v1520 = vpow.pop %v1519
    %v1521 = vadd.f32 %v1518, 1.0
    %v1522 = vadd.f32 %v1520, 1.0
    %v1523 = vrcp.pop %v1521
    %v1524 = vmul.f32 1.0, %v1523
    %v1525 = vrcp.pop %v1522
    %v1526 = vmul.f32 1.0, %v1525
    %v1527 = vtanh.pop %v1514
    %v1528 = vmul.f32 %v1524, 0.0
    %1530 = vrot.lane.b32.xlu0 %v1527, 64
    %v1531 = vpop.permute.xlu0 %1530
    %v1533 = vmul.f32 %v1524, %v1531
    %1535 = vrot.lane.b32.xlu0 %v1533, 64
    %v1536 = vpop.permute.xlu0 %1535
    %v1538 = vadd.f32 %v1528, %v1536
    %v1539 = vtanh.pop %v1538
    %1541 = vrot.lane.b32.xlu0 %v1539, 64
    %v1542 = vpop.permute.xlu0 %1541
    %v1544 = vmul.f32 %v1526, %v1542
    %v1545 = vld [vmem:[#allocation2 + $0x10] sm:$0xff]
    %v1546 = vld [vmem:[#allocation2 + $0x18] sm:$0xff]
    %v1547 = vld [vmem:[#allocation2 + $0x60] sm:$0xff]
    %v1548 = vld [vmem:[#allocation2 + $0x68] sm:$0xff]
    %v1549 = vsel %vm120, %v1545, %v1547
    %v1550 = vsel %vm121, %v1546, %v1548
    %v1552 = vsel %vm322, %v1544, 0
    %1554 = vmatprep.subr.mxu0 0.0
    %1555 = vmatpush1.msra.mxu0 0.0
    %1556 = vmatprep.subr.mxu0 0.0
    %1557 = vmatpush1.msra.mxu0 0.0
    %1558 = vmatprep.subr.mxu0 0.0
    %1559 = vmatpush1.msra.mxu0 0.0
    %1560 = vmatprep.subr.mxu0 0.0
    %1561 = vmatpush1.msra.mxu0 0.0
    %1562 = vmatprep.subr.mxu0 0.0
    %1563 = vmatpush1.msra.mxu0 0.0
    %1564 = vmatprep.subr.mxu0 0.0
    %1565 = vmatpush1.msra.mxu0 0.0
    %1566 = vmatprep.subr.mxu0 0.0
    %1567 = vmatpush1.msra.mxu0 0.0
    %1568 = vmatprep.subr.mxu0 0.0
    %1569 = vmatpush1.msra.mxu0 0.0
    %1570 = vmatprep.subr.mxu0 %v1435
    %1571 = vmatpush1.msra.mxu0 %v1434
    %1572 = vmatprep.subr.mxu0 %v1433
    %1573 = vmatpush1.msra.mxu0 %v1432
    %1574 = vmatprep.subr.mxu0 %v1431
    %1575 = vmatpush1.msra.mxu0 %v1430
    %1576 = vmatprep.subr.mxu0 %v1429
    %1577 = vmatpush1.msra.mxu0 %v1428
    %1578 = vmatprep.subr.mxu0 %v1427
    %1579 = vmatpush1.msra.mxu0 %v1426
    %1580 = vmatprep.subr.mxu0 %v1425
    %1581 = vmatpush1.msra.mxu0 %v1424
    %1582 = vmatprep.subr.mxu0 %v1423
    %1583 = vmatpush1.msra.mxu0 %v1422
    %1584 = vmatprep.subr.mxu0 %v1421
    %1585 = vmatpush1.msra.mxu0 %v1420
    %1586 = vmatprep.subr.mxu0 0.0
    %1587 = vmatpush2.msra.mxu0 0.0
    %1588 = vmatprep.subr.mxu0 0.0
    %1589 = vmatpush2.msra.mxu0 0.0
    %1590 = vmatprep.subr.mxu0 0.0
    %1591 = vmatpush2.msra.mxu0 0.0
    %1592 = vmatprep.subr.mxu0 0.0
    %1593 = vmatpush2.msra.mxu0 0.0
    %1594 = vmatprep.subr.mxu0 0.0
    %1595 = vmatpush2.msra.mxu0 0.0
    %1596 = vmatprep.subr.mxu0 0.0
    %1597 = vmatpush2.msra.mxu0 0.0
    %1598 = vmatprep.subr.mxu0 0.0
    %1599 = vmatpush2.msra.mxu0 0.0
    %1600 = vmatprep.subr.mxu0 0.0
    %1601 = vmatpush2.msra.mxu0 0.0
    %1602 = vmatprep.subr.mxu0 0.0
    %1603 = vmatpush2.msra.mxu0 0.0
    %1604 = vmatprep.subr.mxu0 0.0
    %1605 = vmatpush2.msra.mxu0 0.0
    %1606 = vmatprep.subr.mxu0 0.0
    %1607 = vmatpush2.msra.mxu0 0.0
    %1608 = vmatprep.subr.mxu0 0.0
    %1609 = vmatpush2.msra.mxu0 0.0
    %1610 = vmatprep.subr.mxu0 0.0
    %1611 = vmatpush2.msra.mxu0 0.0
    %1612 = vmatprep.subr.mxu0 0.0
    %1613 = vmatpush2.msra.mxu0 0.0
    %1614 = vmatprep.subr.mxu0 0.0
    %1615 = vmatpush2.msra.mxu0 0.0
    %1616 = vmatprep.subr.mxu0 0.0
    %1617 = vmatpush2.msra.mxu0 0.0
    %1618 = vmatprep.mubr.f32.mxu0 0.0
    %1619 = vmatmul.mubr.f32.gmra.mxu0 %v1552
    %v1620 = vpop.f32.mrf.mxu0
    %v1621 = vadd.f32 0.0, %v1620
    %v1622 = vpop.f32.mrf.mxu0
    %v1623 = vadd.f32 0.0, %v1622
    %1624 = vdwg.mxu0
    %v1625 = vadd.f32 %v1549, %v1621
    %v1626 = vadd.f32 %v1550, %v1623
    %v1627 = vxor.u32 %v1625, 2147483648
    %v1628 = vxor.u32 %v1626, 2147483648
    %v1629 = vmul.f32 %v1627, 1.442695
    %v1630 = vpow.pop %v1629
    %v1631 = vmul.f32 %v1628, 1.442695
    %v1632 = vpow.pop %v1631
    %v1633 = vadd.f32 %v1630, 1.0
    %v1634 = vadd.f32 %v1632, 1.0
    %v1635 = vrcp.pop %v1633
    %v1636 = vmul.f32 1.0, %v1635
    %v1637 = vrcp.pop %v1634
    %v1638 = vmul.f32 1.0, %v1637
    %v1639 = vtanh.pop %v1626
    %v1640 = vmul.f32 %v1636, %v1538
    %1642 = vrot.lane.b32.xlu0 %v1639, 64
    %v1643 = vpop.permute.xlu0 %1642
    %v1645 = vmul.f32 %v1636, %v1643
    %1647 = vrot.lane.b32.xlu0 %v1645, 64
    %v1648 = vpop.permute.xlu0 %1647
    %v1650 = vadd.f32 %v1640, %v1648
    %v1651 = vtanh.pop %v1650
    %1653 = vrot.lane.b32.xlu0 %v1651, 64
    %v1654 = vpop.permute.xlu0 %1653
    %v1656 = vmul.f32 %v1638, %v1654
    %v1657 = vld [vmem:[#allocation2 + $0x20] sm:$0xff]
    %v1658 = vld [vmem:[#allocation2 + $0x28] sm:$0xff]
    %v1659 = vld [vmem:[#allocation2 + $0x50] sm:$0xff]
    %v1660 = vld [vmem:[#allocation2 + $0x58] sm:$0xff]
    %v1661 = vsel %vm120, %v1657, %v1659
    %v1662 = vsel %vm121, %v1658, %v1660
    %v1664 = vsel %vm322, %v1656, 0
    %1666 = vmatprep.subr.mxu0 0.0
    %1667 = vmatpush1.msra.mxu0 0.0
    %1668 = vmatprep.subr.mxu0 0.0
    %1669 = vmatpush1.msra.mxu0 0.0
    %1670 = vmatprep.subr.mxu0 0.0
    %1671 = vmatpush1.msra.mxu0 0.0
    %1672 = vmatprep.subr.mxu0 0.0
    %1673 = vmatpush1.msra.mxu0 0.0
    %1674 = vmatprep.subr.mxu0 0.0
    %1675 = vmatpush1.msra.mxu0 0.0
    %1676 = vmatprep.subr.mxu0 0.0
    %1677 = vmatpush1.msra.mxu0 0.0
    %1678 = vmatprep.subr.mxu0 0.0
    %1679 = vmatpush1.msra.mxu0 0.0
    %1680 = vmatprep.subr.mxu0 0.0
    %1681 = vmatpush1.msra.mxu0 0.0
    %1682 = vmatprep.subr.mxu0 %v1435
    %1683 = vmatpush1.msra.mxu0 %v1434
    %1684 = vmatprep.subr.mxu0 %v1433
    %1685 = vmatpush1.msra.mxu0 %v1432
    %1686 = vmatprep.subr.mxu0 %v1431
    %1687 = vmatpush1.msra.mxu0 %v1430
    %1688 = vmatprep.subr.mxu0 %v1429
    %1689 = vmatpush1.msra.mxu0 %v1428
    %1690 = vmatprep.subr.mxu0 %v1427
    %1691 = vmatpush1.msra.mxu0 %v1426
    %1692 = vmatprep.subr.mxu0 %v1425
    %1693 = vmatpush1.msra.mxu0 %v1424
    %1694 = vmatprep.subr.mxu0 %v1423
    %1695 = vmatpush1.msra.mxu0 %v1422
    %1696 = vmatprep.subr.mxu0 %v1421
    %1697 = vmatpush1.msra.mxu0 %v1420
    %1698 = vmatprep.subr.mxu0 0.0
    %1699 = vmatpush2.msra.mxu0 0.0
    %1700 = vmatprep.subr.mxu0 0.0
    %1701 = vmatpush2.msra.mxu0 0.0
    %1702 = vmatprep.subr.mxu0 0.0
    %1703 = vmatpush2.msra.mxu0 0.0
    %1704 = vmatprep.subr.mxu0 0.0
    %1705 = vmatpush2.msra.mxu0 0.0
    %1706 = vmatprep.subr.mxu0 0.0
    %1707 = vmatpush2.msra.mxu0 0.0
    %1708 = vmatprep.subr.mxu0 0.0
    %1709 = vmatpush2.msra.mxu0 0.0
    %1710 = vmatprep.subr.mxu0 0.0
    %1711 = vmatpush2.msra.mxu0 0.0
    %1712 = vmatprep.subr.mxu0 0.0
    %1713 = vmatpush2.msra.mxu0 0.0
    %1714 = vmatprep.subr.mxu0 0.0
    %1715 = vmatpush2.msra.mxu0 0.0
    %1716 = vmatprep.subr.mxu0 0.0
    %1717 = vmatpush2.msra.mxu0 0.0
    %1718 = vmatprep.subr.mxu0 0.0
    %1719 = vmatpush2.msra.mxu0 0.0
    %1720 = vmatprep.subr.mxu0 0.0
    %1721 = vmatpush2.msra.mxu0 0.0
    %1722 = vmatprep.subr.mxu0 0.0
    %1723 = vmatpush2.msra.mxu0 0.0
    %1724 = vmatprep.subr.mxu0 0.0
    %1725 = vmatpush2.msra.mxu0 0.0
    %1726 = vmatprep.subr.mxu0 0.0
    %1727 = vmatpush2.msra.mxu0 0.0
    %1728 = vmatprep.subr.mxu0 0.0
    %1729 = vmatpush2.msra.mxu0 0.0
    %1730 = vmatprep.mubr.f32.mxu0 0.0
    %1731 = vmatmul.mubr.f32.gmra.mxu0 %v1664
    %v1732 = vpop.f32.mrf.mxu0
    %v1733 = vadd.f32 0.0, %v1732
    %v1734 = vpop.f32.mrf.mxu0
    %v1735 = vadd.f32 0.0, %v1734
    %1736 = vdwg.mxu0
    %v1737 = vadd.f32 %v1661, %v1733
    %v1738 = vadd.f32 %v1662, %v1735
    %v1739 = vxor.u32 %v1737, 2147483648
    %v1740 = vxor.u32 %v1738, 2147483648
    %v1741 = vmul.f32 %v1739, 1.442695
    %v1742 = vpow.pop %v1741
    %v1743 = vmul.f32 %v1740, 1.442695
    %v1744 = vpow.pop %v1743
    %v1745 = vadd.f32 %v1742, 1.0
    %v1746 = vadd.f32 %v1744, 1.0
    %v1747 = vrcp.pop %v1745
    %v1748 = vmul.f32 1.0, %v1747
    %v1749 = vrcp.pop %v1746
    %v1750 = vmul.f32 1.0, %v1749
    %v1751 = vtanh.pop %v1738
    %v1752 = vmul.f32 %v1748, %v1650
    %1754 = vrot.lane.b32.xlu0 %v1751, 64
    %v1755 = vpop.permute.xlu0 %1754
    %v1757 = vmul.f32 %v1748, %v1755
    %1759 = vrot.lane.b32.xlu0 %v1757, 64
    %v1760 = vpop.permute.xlu0 %1759
    %v1762 = vadd.f32 %v1752, %v1760
    %v1763 = vtanh.pop %v1762
    %1765 = vrot.lane.b32.xlu0 %v1763, 64
    %v1766 = vpop.permute.xlu0 %1765
    %v1768 = vmul.f32 %v1750, %v1766
    %v1769 = vld [vmem:[#allocation2 + $0x30] sm:$0xff]
    %v1770 = vld [vmem:[#allocation2 + $0x38] sm:$0xff]
    %v1771 = vld [vmem:[#allocation2 + $0x40] sm:$0xff]
    %v1772 = vld [vmem:[#allocation2 + $0x48] sm:$0xff]
    %v1773 = vsel %vm120, %v1769, %v1771
    %v1774 = vsel %vm121, %v1770, %v1772
    %v1776 = vsel %vm322, %v1768, 0
    %1778 = vmatprep.subr.mxu0 0.0
    %1779 = vmatpush1.msra.mxu0 0.0
    %1780 = vmatprep.subr.mxu0 0.0
    %1781 = vmatpush1.msra.mxu0 0.0
    %1782 = vmatprep.subr.mxu0 0.0
    %1783 = vmatpush1.msra.mxu0 0.0
    %1784 = vmatprep.subr.mxu0 0.0
    %1785 = vmatpush1.msra.mxu0 0.0
    %1786 = vmatprep.subr.mxu0 0.0
    %1787 = vmatpush1.msra.mxu0 0.0
    %1788 = vmatprep.subr.mxu0 0.0
    %1789 = vmatpush1.msra.mxu0 0.0
    %1790 = vmatprep.subr.mxu0 0.0
    %1791 = vmatpush1.msra.mxu0 0.0
    %1792 = vmatprep.subr.mxu0 0.0
    %1793 = vmatpush1.msra.mxu0 0.0
    %1794 = vmatprep.subr.mxu0 %v1435
    %1795 = vmatpush1.msra.mxu0 %v1434
    %1796 = vmatprep.subr.mxu0 %v1433
    %1797 = vmatpush1.msra.mxu0 %v1432
    %1798 = vmatprep.subr.mxu0 %v1431
    %1799 = vmatpush1.msra.mxu0 %v1430
    %1800 = vmatprep.subr.mxu0 %v1429
    %1801 = vmatpush1.msra.mxu0 %v1428
    %1802 = vmatprep.subr.mxu0 %v1427
    %1803 = vmatpush1.msra.mxu0 %v1426
    %1804 = vmatprep.subr.mxu0 %v1425
    %1805 = vmatpush1.msra.mxu0 %v1424
    %1806 = vmatprep.subr.mxu0 %v1423
    %1807 = vmatpush1.msra.mxu0 %v1422
    %1808 = vmatprep.subr.mxu0 %v1421
    %1809 = vmatpush1.msra.mxu0 %v1420
    %1810 = vmatprep.subr.mxu0 0.0
    %1811 = vmatpush2.msra.mxu0 0.0
    %1812 = vmatprep.subr.mxu0 0.0
    %1813 = vmatpush2.msra.mxu0 0.0
    %1814 = vmatprep.subr.mxu0 0.0
    %1815 = vmatpush2.msra.mxu0 0.0
    %1816 = vmatprep.subr.mxu0 0.0
    %1817 = vmatpush2.msra.mxu0 0.0
    %1818 = vmatprep.subr.mxu0 0.0
    %1819 = vmatpush2.msra.mxu0 0.0
    %1820 = vmatprep.subr.mxu0 0.0
    %1821 = vmatpush2.msra.mxu0 0.0
    %1822 = vmatprep.subr.mxu0 0.0
    %1823 = vmatpush2.msra.mxu0 0.0
    %1824 = vmatprep.subr.mxu0 0.0
    %1825 = vmatpush2.msra.mxu0 0.0
    %1826 = vmatprep.subr.mxu0 0.0
    %1827 = vmatpush2.msra.mxu0 0.0
    %1828 = vmatprep.subr.mxu0 0.0
    %1829 = vmatpush2.msra.mxu0 0.0
    %1830 = vmatprep.subr.mxu0 0.0
    %1831 = vmatpush2.msra.mxu0 0.0
    %1832 = vmatprep.subr.mxu0 0.0
    %1833 = vmatpush2.msra.mxu0 0.0
    %1834 = vmatprep.subr.mxu0 0.0
    %1835 = vmatpush2.msra.mxu0 0.0
    %1836 = vmatprep.subr.mxu0 0.0
    %1837 = vmatpush2.msra.mxu0 0.0
    %1838 = vmatprep.subr.mxu0 0.0
    %1839 = vmatpush2.msra.mxu0 0.0
    %1840 = vmatprep.subr.mxu0 0.0
    %1841 = vmatpush2.msra.mxu0 0.0
    %1842 = vmatprep.mubr.f32.mxu0 0.0
    %1843 = vmatmul.mubr.f32.gmra.mxu0 %v1776
    %v1844 = vpop.f32.mrf.mxu0
    %v1845 = vadd.f32 0.0, %v1844
    %v1846 = vpop.f32.mrf.mxu0
    %v1847 = vadd.f32 0.0, %v1846
    %1848 = vdwg.mxu0
    %v1849 = vadd.f32 %v1773, %v1845
    %v1850 = vadd.f32 %v1774, %v1847
    %v1851 = vxor.u32 %v1849, 2147483648
    %v1852 = vxor.u32 %v1850, 2147483648
    %v1853 = vmul.f32 %v1851, 1.442695
    %v1854 = vpow.pop %v1853
    %v1855 = vmul.f32 %v1852, 1.442695
    %v1856 = vpow.pop %v1855
    %v1857 = vadd.f32 %v1854, 1.0
    %v1858 = vadd.f32 %v1856, 1.0
    %v1859 = vrcp.pop %v1857
    %v1860 = vmul.f32 1.0, %v1859
    %v1861 = vrcp.pop %v1858
    %v1862 = vmul.f32 1.0, %v1861
    %v1863 = vtanh.pop %v1850
    %v1864 = vmul.f32 %v1860, %v1762
    %1866 = vrot.lane.b32.xlu0 %v1863, 64
    %v1867 = vpop.permute.xlu0 %1866
    %v1869 = vmul.f32 %v1860, %v1867
    %1871 = vrot.lane.b32.xlu0 %v1869, 64
    %v1872 = vpop.permute.xlu0 %1871
    %v1874 = vadd.f32 %v1864, %v1872
    %v1875 = vtanh.pop %v1874
    %1877 = vrot.lane.b32.xlu0 %v1875, 64
    %v1878 = vpop.permute.xlu0 %1877
    %v1880 = vmul.f32 %v1862, %v1878
    %v1881 = vsel %vm120, %v1771, %v1769
    %v1882 = vsel %vm121, %v1772, %v1770
    %v1884 = vsel %vm322, %v1880, 0
    %1886 = vmatprep.subr.mxu0 0.0
    %1887 = vmatpush1.msra.mxu0 0.0
    %1888 = vmatprep.subr.mxu0 0.0
    %1889 = vmatpush1.msra.mxu0 0.0
    %1890 = vmatprep.subr.mxu0 0.0
    %1891 = vmatpush1.msra.mxu0 0.0
    %1892 = vmatprep.subr.mxu0 0.0
    %1893 = vmatpush1.msra.mxu0 0.0
    %1894 = vmatprep.subr.mxu0 0.0
    %1895 = vmatpush1.msra.mxu0 0.0
    %1896 = vmatprep.subr.mxu0 0.0
    %1897 = vmatpush1.msra.mxu0 0.0
    %1898 = vmatprep.subr.mxu0 0.0
    %1899 = vmatpush1.msra.mxu0 0.0
    %1900 = vmatprep.subr.mxu0 0.0
    %1901 = vmatpush1.msra.mxu0 0.0
    %1902 = vmatprep.subr.mxu0 %v1435
    %1903 = vmatpush1.msra.mxu0 %v1434
    %1904 = vmatprep.subr.mxu0 %v1433
    %1905 = vmatpush1.msra.mxu0 %v1432
    %1906 = vmatprep.subr.mxu0 %v1431
    %1907 = vmatpush1.msra.mxu0 %v1430
    %1908 = vmatprep.subr.mxu0 %v1429
    %1909 = vmatpush1.msra.mxu0 %v1428
    %1910 = vmatprep.subr.mxu0 %v1427
    %1911 = vmatpush1.msra.mxu0 %v1426
    %1912 = vmatprep.subr.mxu0 %v1425
    %1913 = vmatpush1.msra.mxu0 %v1424
    %1914 = vmatprep.subr.mxu0 %v1423
    %1915 = vmatpush1.msra.mxu0 %v1422
    %1916 = vmatprep.subr.mxu0 %v1421
    %1917 = vmatpush1.msra.mxu0 %v1420
    %1918 = vmatprep.subr.mxu0 0.0
    %1919 = vmatpush2.msra.mxu0 0.0
    %1920 = vmatprep.subr.mxu0 0.0
    %1921 = vmatpush2.msra.mxu0 0.0
    %1922 = vmatprep.subr.mxu0 0.0
    %1923 = vmatpush2.msra.mxu0 0.0
    %1924 = vmatprep.subr.mxu0 0.0
    %1925 = vmatpush2.msra.mxu0 0.0
    %1926 = vmatprep.subr.mxu0 0.0
    %1927 = vmatpush2.msra.mxu0 0.0
    %1928 = vmatprep.subr.mxu0 0.0
    %1929 = vmatpush2.msra.mxu0 0.0
    %1930 = vmatprep.subr.mxu0 0.0
    %1931 = vmatpush2.msra.mxu0 0.0
    %1932 = vmatprep.subr.mxu0 0.0
    %1933 = vmatpush2.msra.mxu0 0.0
    %1934 = vmatprep.subr.mxu0 0.0
    %1935 = vmatpush2.msra.mxu0 0.0
    %1936 = vmatprep.subr.mxu0 0.0
    %1937 = vmatpush2.msra.mxu0 0.0
    %1938 = vmatprep.subr.mxu0 0.0
    %1939 = vmatpush2.msra.mxu0 0.0
    %1940 = vmatprep.subr.mxu0 0.0
    %1941 = vmatpush2.msra.mxu0 0.0
    %1942 = vmatprep.subr.mxu0 0.0
    %1943 = vmatpush2.msra.mxu0 0.0
    %1944 = vmatprep.subr.mxu0 0.0
    %1945 = vmatpush2.msra.mxu0 0.0
    %1946 = vmatprep.subr.mxu0 0.0
    %1947 = vmatpush2.msra.mxu0 0.0
    %1948 = vmatprep.subr.mxu0 0.0
    %1949 = vmatpush2.msra.mxu0 0.0
    %1950 = vmatprep.mubr.f32.mxu0 0.0
    %1951 = vmatmul.mubr.f32.gmra.mxu0 %v1884
    %v1952 = vpop.f32.mrf.mxu0
    %v1953 = vadd.f32 0.0, %v1952
    %v1954 = vpop.f32.mrf.mxu0
    %v1955 = vadd.f32 0.0, %v1954
    %1956 = vdwg.mxu0
    %v1957 = vadd.f32 %v1881, %v1953
    %v1958 = vadd.f32 %v1882, %v1955
    %v1959 = vxor.u32 %v1957, 2147483648
    %v1960 = vxor.u32 %v1958, 2147483648
    %v1961 = vmul.f32 %v1959, 1.442695
    %v1962 = vpow.pop %v1961
    %v1963 = vmul.f32 %v1960, 1.442695
    %v1964 = vpow.pop %v1963
    %v1965 = vadd.f32 %v1962, 1.0
    %v1966 = vadd.f32 %v1964, 1.0
    %v1967 = vrcp.pop %v1965
    %v1968 = vmul.f32 1.0, %v1967
    %v1969 = vrcp.pop %v1966
    %v1970 = vmul.f32 1.0, %v1969
    %v1971 = vtanh.pop %v1958
    %v1972 = vmul.f32 %v1968, %v1874
    %1974 = vrot.lane.b32.xlu0 %v1971, 64
    %v1975 = vpop.permute.xlu0 %1974
    %v1977 = vmul.f32 %v1968, %v1975
    %1979 = vrot.lane.b32.xlu0 %v1977, 64
    %v1980 = vpop.permute.xlu0 %1979
    %v1982 = vadd.f32 %v1972, %v1980
    %v1983 = vtanh.pop %v1982
    %1985 = vrot.lane.b32.xlu0 %v1983, 64
    %v1986 = vpop.permute.xlu0 %1985
    %v1988 = vmul.f32 %v1970, %v1986
    %v1989 = vsel %vm120, %v1659, %v1657
    %v1990 = vsel %vm121, %v1660, %v1658
    %v1992 = vsel %vm322, %v1988, 0
    %1994 = vmatprep.subr.mxu0 0.0
    %1995 = vmatpush1.msra.mxu0 0.0
    %1996 = vmatprep.subr.mxu0 0.0
    %1997 = vmatpush1.msra.mxu0 0.0
    %1998 = vmatprep.subr.mxu0 0.0
    %1999 = vmatpush1.msra.mxu0 0.0
    %2000 = vmatprep.subr.mxu0 0.0
    %2001 = vmatpush1.msra.mxu0 0.0
    %2002 = vmatprep.subr.mxu0 0.0
    %2003 = vmatpush1.msra.mxu0 0.0
    %2004 = vmatprep.subr.mxu0 0.0
    %2005 = vmatpush1.msra.mxu0 0.0
    %2006 = vmatprep.subr.mxu0 0.0
    %2007 = vmatpush1.msra.mxu0 0.0
    %2008 = vmatprep.subr.mxu0 0.0
    %2009 = vmatpush1.msra.mxu0 0.0
    %2010 = vmatprep.subr.mxu0 %v1435
    %2011 = vmatpush1.msra.mxu0 %v1434
    %2012 = vmatprep.subr.mxu0 %v1433
    %2013 = vmatpush1.msra.mxu0 %v1432
    %2014 = vmatprep.subr.mxu0 %v1431
    %2015 = vmatpush1.msra.mxu0 %v1430
    %2016 = vmatprep.subr.mxu0 %v1429
    %2017 = vmatpush1.msra.mxu0 %v1428
    %2018 = vmatprep.subr.mxu0 %v1427
    %2019 = vmatpush1.msra.mxu0 %v1426
    %2020 = vmatprep.subr.mxu0 %v1425
    %2021 = vmatpush1.msra.mxu0 %v1424
    %2022 = vmatprep.subr.mxu0 %v1423
    %2023 = vmatpush1.msra.mxu0 %v1422
    %2024 = vmatprep.subr.mxu0 %v1421
    %2025 = vmatpush1.msra.mxu0 %v1420
    %2026 = vmatprep.subr.mxu0 0.0
    %2027 = vmatpush2.msra.mxu0 0.0
    %2028 = vmatprep.subr.mxu0 0.0
    %2029 = vmatpush2.msra.mxu0 0.0
    %2030 = vmatprep.subr.mxu0 0.0
    %2031 = vmatpush2.msra.mxu0 0.0
    %2032 = vmatprep.subr.mxu0 0.0
    %2033 = vmatpush2.msra.mxu0 0.0
    %2034 = vmatprep.subr.mxu0 0.0
    %2035 = vmatpush2.msra.mxu0 0.0
    %2036 = vmatprep.subr.mxu0 0.0
    %2037 = vmatpush2.msra.mxu0 0.0
    %2038 = vmatprep.subr.mxu0 0.0
    %2039 = vmatpush2.msra.mxu0 0.0
    %2040 = vmatprep.subr.mxu0 0.0
    %2041 = vmatpush2.msra.mxu0 0.0
    %2042 = vmatprep.subr.mxu0 0.0
    %2043 = vmatpush2.msra.mxu0 0.0
    %2044 = vmatprep.subr.mxu0 0.0
    %2045 = vmatpush2.msra.mxu0 0.0
    %2046 = vmatprep.subr.mxu0 0.0
    %2047 = vmatpush2.msra.mxu0 0.0
    %2048 = vmatprep.subr.mxu0 0.0
    %2049 = vmatpush2.msra.mxu0 0.0
    %2050 = vmatprep.subr.mxu0 0.0
    %2051 = vmatpush2.msra.mxu0 0.0
    %2052 = vmatprep.subr.mxu0 0.0
    %2053 = vmatpush2.msra.mxu0 0.0
    %2054 = vmatprep.subr.mxu0 0.0
    %2055 = vmatpush2.msra.mxu0 0.0
    %2056 = vmatprep.subr.mxu0 0.0
    %2057 = vmatpush2.msra.mxu0 0.0
    %2058 = vmatprep.mubr.f32.mxu0 0.0
    %2059 = vmatmul.mubr.f32.gmra.mxu0 %v1992
    %v2060 = vpop.f32.mrf.mxu0
    %v2061 = vadd.f32 0.0, %v2060
    %v2062 = vpop.f32.mrf.mxu0
    %v2063 = vadd.f32 0.0, %v2062
    %2064 = vdwg.mxu0
    %v2065 = vadd.f32 %v1989, %v2061
    %v2066 = vadd.f32 %v1990, %v2063
    %v2067 = vxor.u32 %v2065, 2147483648
    %v2068 = vxor.u32 %v2066, 2147483648
    %v2069 = vmul.f32 %v2067, 1.442695
    %v2070 = vpow.pop %v2069
    %v2071 = vmul.f32 %v2068, 1.442695
    %v2072 = vpow.pop %v2071
    %v2073 = vadd.f32 %v2070, 1.0
    %v2074 = vadd.f32 %v2072, 1.0
    %v2075 = vrcp.pop %v2073
    %v2076 = vmul.f32 1.0, %v2075
    %v2077 = vrcp.pop %v2074
    %v2078 = vmul.f32 1.0, %v2077
    %v2079 = vtanh.pop %v2066
    %v2080 = vmul.f32 %v2076, %v1982
    %2082 = vrot.lane.b32.xlu0 %v2079, 64
    %v2083 = vpop.permute.xlu0 %2082
    %v2085 = vmul.f32 %v2076, %v2083
    %2087 = vrot.lane.b32.xlu0 %v2085, 64
    %v2088 = vpop.permute.xlu0 %2087
    %v2090 = vadd.f32 %v2080, %v2088
    %v2091 = vtanh.pop %v2090
    %2093 = vrot.lane.b32.xlu0 %v2091, 64
    %v2094 = vpop.permute.xlu0 %2093
    %v2096 = vmul.f32 %v2078, %v2094
    %v2097 = vsel %vm120, %v1547, %v1545
    %v2098 = vsel %vm121, %v1548, %v1546
    %v2100 = vsel %vm322, %v2096, 0
    %2102 = vmatprep.subr.mxu0 0.0
    %2103 = vmatpush1.msra.mxu0 0.0
    %2104 = vmatprep.subr.mxu0 0.0
    %2105 = vmatpush1.msra.mxu0 0.0
    %2106 = vmatprep.subr.mxu0 0.0
    %2107 = vmatpush1.msra.mxu0 0.0
    %2108 = vmatprep.subr.mxu0 0.0
    %2109 = vmatpush1.msra.mxu0 0.0
    %2110 = vmatprep.subr.mxu0 0.0
    %2111 = vmatpush1.msra.mxu0 0.0
    %2112 = vmatprep.subr.mxu0 0.0
    %2113 = vmatpush1.msra.mxu0 0.0
    %2114 = vmatprep.subr.mxu0 0.0
    %2115 = vmatpush1.msra.mxu0 0.0
    %2116 = vmatprep.subr.mxu0 0.0
    %2117 = vmatpush1.msra.mxu0 0.0
    %2118 = vmatprep.subr.mxu0 %v1435
    %2119 = vmatpush1.msra.mxu0 %v1434
    %2120 = vmatprep.subr.mxu0 %v1433
    %2121 = vmatpush1.msra.mxu0 %v1432
    %2122 = vmatprep.subr.mxu0 %v1431
    %2123 = vmatpush1.msra.mxu0 %v1430
    %2124 = vmatprep.subr.mxu0 %v1429
    %2125 = vmatpush1.msra.mxu0 %v1428
    %2126 = vmatprep.subr.mxu0 %v1427
    %2127 = vmatpush1.msra.mxu0 %v1426
    %2128 = vmatprep.subr.mxu0 %v1425
    %2129 = vmatpush1.msra.mxu0 %v1424
    %2130 = vmatprep.subr.mxu0 %v1423
    %2131 = vmatpush1.msra.mxu0 %v1422
    %2132 = vmatprep.subr.mxu0 %v1421
    %2133 = vmatpush1.msra.mxu0 %v1420
    %2134 = vmatprep.subr.mxu0 0.0
    %2135 = vmatpush2.msra.mxu0 0.0
    %2136 = vmatprep.subr.mxu0 0.0
    %2137 = vmatpush2.msra.mxu0 0.0
    %2138 = vmatprep.subr.mxu0 0.0
    %2139 = vmatpush2.msra.mxu0 0.0
    %2140 = vmatprep.subr.mxu0 0.0
    %2141 = vmatpush2.msra.mxu0 0.0
    %2142 = vmatprep.subr.mxu0 0.0
    %2143 = vmatpush2.msra.mxu0 0.0
    %2144 = vmatprep.subr.mxu0 0.0
    %2145 = vmatpush2.msra.mxu0 0.0
    %2146 = vmatprep.subr.mxu0 0.0
    %2147 = vmatpush2.msra.mxu0 0.0
    %2148 = vmatprep.subr.mxu0 0.0
    %2149 = vmatpush2.msra.mxu0 0.0
    %2150 = vmatprep.subr.mxu0 0.0
    %2151 = vmatpush2.msra.mxu0 0.0
    %2152 = vmatprep.subr.mxu0 0.0
    %2153 = vmatpush2.msra.mxu0 0.0
    %2154 = vmatprep.subr.mxu0 0.0
    %2155 = vmatpush2.msra.mxu0 0.0
    %2156 = vmatprep.subr.mxu0 0.0
    %2157 = vmatpush2.msra.mxu0 0.0
    %2158 = vmatprep.subr.mxu0 0.0
    %2159 = vmatpush2.msra.mxu0 0.0
    %2160 = vmatprep.subr.mxu0 0.0
    %2161 = vmatpush2.msra.mxu0 0.0
    %2162 = vmatprep.subr.mxu0 0.0
    %2163 = vmatpush2.msra.mxu0 0.0
    %2164 = vmatprep.subr.mxu0 0.0
    %2165 = vmatpush2.msra.mxu0 0.0
    %2166 = vmatprep.mubr.f32.mxu0 0.0
    %2167 = vmatmul.mubr.f32.gmra.mxu0 %v2100
    %v2168 = vpop.f32.mrf.mxu0
    %v2169 = vadd.f32 0.0, %v2168
    %v2170 = vpop.f32.mrf.mxu0
    %v2171 = vadd.f32 0.0, %v2170
    %2172 = vdwg.mxu0
    %v2173 = vadd.f32 %v2097, %v2169
    %v2174 = vadd.f32 %v2098, %v2171
    %v2175 = vxor.u32 %v2173, 2147483648
    %v2176 = vxor.u32 %v2174, 2147483648
    %v2177 = vmul.f32 %v2175, 1.442695
    %v2178 = vpow.pop %v2177
    %v2179 = vmul.f32 %v2176, 1.442695
    %v2180 = vpow.pop %v2179
    %v2181 = vadd.f32 %v2178, 1.0
    %v2182 = vadd.f32 %v2180, 1.0
    %v2183 = vrcp.pop %v2181
    %v2184 = vmul.f32 1.0, %v2183
    %v2185 = vrcp.pop %v2182
    %v2186 = vmul.f32 1.0, %v2185
    %v2187 = vtanh.pop %v2174
    %v2188 = vmul.f32 %v2184, %v2090
    %2190 = vrot.lane.b32.xlu0 %v2187, 64
    %v2191 = vpop.permute.xlu0 %2190
    %v2193 = vmul.f32 %v2184, %v2191
    %2195 = vrot.lane.b32.xlu0 %v2193, 64
    %v2196 = vpop.permute.xlu0 %2195
    %v2198 = vadd.f32 %v2188, %v2196
    %v2199 = vtanh.pop %v2198
    %2201 = vrot.lane.b32.xlu0 %v2199, 64
    %v2202 = vpop.permute.xlu0 %2201
    %v2204 = vmul.f32 %v2186, %v2202
    %v2205 = vsel %vm120, %v1438, %v1436
    %v2206 = vsel %vm121, %v1439, %v1437
    %v2208 = vsel %vm322, %v2204, 0
    %2210 = vmatprep.subr.mxu0 0.0
    %2211 = vmatpush1.msra.mxu0 0.0
    %2212 = vmatprep.subr.mxu0 0.0
    %2213 = vmatpush1.msra.mxu0 0.0
    %2214 = vmatprep.subr.mxu0 0.0
    %2215 = vmatpush1.msra.mxu0 0.0
    %2216 = vmatprep.subr.mxu0 0.0
    %2217 = vmatpush1.msra.mxu0 0.0
    %2218 = vmatprep.subr.mxu0 0.0
    %2219 = vmatpush1.msra.mxu0 0.0
    %2220 = vmatprep.subr.mxu0 0.0
    %2221 = vmatpush1.msra.mxu0 0.0
    %2222 = vmatprep.subr.mxu0 0.0
    %2223 = vmatpush1.msra.mxu0 0.0
    %2224 = vmatprep.subr.mxu0 0.0
    %2225 = vmatpush1.msra.mxu0 0.0
    %2226 = vmatprep.subr.mxu0 %v1435
    %2227 = vmatpush1.msra.mxu0 %v1434
    %2228 = vmatprep.subr.mxu0 %v1433
    %2229 = vmatpush1.msra.mxu0 %v1432
    %2230 = vmatprep.subr.mxu0 %v1431
    %2231 = vmatpush1.msra.mxu0 %v1430
    %2232 = vmatprep.subr.mxu0 %v1429
    %2233 = vmatpush1.msra.mxu0 %v1428
    %2234 = vmatprep.subr.mxu0 %v1427
    %2235 = vmatpush1.msra.mxu0 %v1426
    %2236 = vmatprep.subr.mxu0 %v1425
    %2237 = vmatpush1.msra.mxu0 %v1424
    %2238 = vmatprep.subr.mxu0 %v1423
    %2239 = vmatpush1.msra.mxu0 %v1422
    %2240 = vmatprep.subr.mxu0 %v1421
    %2241 = vmatpush1.msra.mxu0 %v1420
    %2242 = vmatprep.subr.mxu0 0.0
    %2243 = vmatpush2.msra.mxu0 0.0
    %2244 = vmatprep.subr.mxu0 0.0
    %2245 = vmatpush2.msra.mxu0 0.0
    %2246 = vmatprep.subr.mxu0 0.0
    %2247 = vmatpush2.msra.mxu0 0.0
    %2248 = vmatprep.subr.mxu0 0.0
    %2249 = vmatpush2.msra.mxu0 0.0
    %2250 = vmatprep.subr.mxu0 0.0
    %2251 = vmatpush2.msra.mxu0 0.0
    %2252 = vmatprep.subr.mxu0 0.0
    %2253 = vmatpush2.msra.mxu0 0.0
    %2254 = vmatprep.subr.mxu0 0.0
    %2255 = vmatpush2.msra.mxu0 0.0
    %2256 = vmatprep.subr.mxu0 0.0
    %2257 = vmatpush2.msra.mxu0 0.0
    %2258 = vmatprep.subr.mxu0 0.0
    %2259 = vmatpush2.msra.mxu0 0.0
    %2260 = vmatprep.subr.mxu0 0.0
    %2261 = vmatpush2.msra.mxu0 0.0
    %2262 = vmatprep.subr.mxu0 0.0
    %2263 = vmatpush2.msra.mxu0 0.0
    %2264 = vmatprep.subr.mxu0 0.0
    %2265 = vmatpush2.msra.mxu0 0.0
    %2266 = vmatprep.subr.mxu0 0.0
    %2267 = vmatpush2.msra.mxu0 0.0
    %2268 = vmatprep.subr.mxu0 0.0
    %2269 = vmatpush2.msra.mxu0 0.0
    %2270 = vmatprep.subr.mxu0 0.0
    %2271 = vmatpush2.msra.mxu0 0.0
    %2272 = vmatprep.subr.mxu0 0.0
    %2273 = vmatpush2.msra.mxu0 0.0
    %2274 = vmatprep.mubr.f32.mxu0 0.0
    %2275 = vmatmul.mubr.f32.gmra.mxu0 %v2208
    %v2276 = vpop.f32.mrf.mxu0
    %v2277 = vadd.f32 0.0, %v2276
    %v2278 = vpop.f32.mrf.mxu0
    %v2279 = vadd.f32 0.0, %v2278
    %2280 = vdwg.mxu0
    %v2281 = vadd.f32 %v2205, %v2277
    %v2282 = vadd.f32 %v2206, %v2279
    %v2283 = vxor.u32 %v2281, 2147483648
    %v2284 = vxor.u32 %v2282, 2147483648
    %v2285 = vmul.f32 %v2283, 1.442695
    %v2286 = vpow.pop %v2285
    %v2287 = vmul.f32 %v2284, 1.442695
    %v2288 = vpow.pop %v2287
    %v2289 = vadd.f32 %v2286, 1.0
    %v2290 = vadd.f32 %v2288, 1.0
    %v2291 = vrcp.pop %v2289
    %v2292 = vmul.f32 1.0, %v2291
    %v2293 = vrcp.pop %v2290
    %v2294 = vmul.f32 1.0, %v2293
    %v2295 = vtanh.pop %v2282
    %v2296 = vmul.f32 %v2292, %v2198
    %2298 = vrot.lane.b32.xlu0 %v2295, 64
    %v2299 = vpop.permute.xlu0 %2298
    %v2301 = vmul.f32 %v2292, %v2299
    %2303 = vrot.lane.b32.xlu0 %v2301, 64
    %v2304 = vpop.permute.xlu0 %2303
    %v2306 = vadd.f32 %v2296, %v2304
    %v2307 = vtanh.pop %v2306
    %2309 = vrot.lane.b32.xlu0 %v2307, 64
    %v2310 = vpop.permute.xlu0 %2309
    %v2312 = vmul.f32 %v2294, %v2310
    %v2313 = vld [vmem:[#allocation9] sm:$0xff]
    %v2314 = vld [vmem:[#allocation9 + $0x8] sm:$0xff]
    %v2315 = vld [vmem:[#allocation9 + $0x10] sm:$0xff]
    %v2316 = vld [vmem:[#allocation9 + $0x18] sm:$0xff]
    %v2317 = vld [vmem:[%s8] sm:$0x1]
    %v2319 = vlaneseq
    %v2320 = vshrl.u32 %v2319, 7
    %v2321 = vsub.s32 0, %v2320
    %v2322 = vrot.slane %v2317, %v2321
    %v2325 = vsel %vm429, %v2312, 0
    %2327 = vmatprep.subr.mxu0 0.0
    %2328 = vmatpush1.msra.mxu0 0.0
    %2329 = vmatprep.subr.mxu0 0.0
    %2330 = vmatpush1.msra.mxu0 0.0
    %2331 = vmatprep.subr.mxu0 0.0
    %2332 = vmatpush1.msra.mxu0 0.0
    %2333 = vmatprep.subr.mxu0 0.0
    %2334 = vmatpush1.msra.mxu0 0.0
    %2335 = vmatprep.subr.mxu0 0.0
    %2336 = vmatpush1.msra.mxu0 0.0
    %2337 = vmatprep.subr.mxu0 0.0
    %2338 = vmatpush1.msra.mxu0 0.0
    %2339 = vmatprep.subr.mxu0 0.0
    %2340 = vmatpush1.msra.mxu0 0.0
    %2341 = vmatprep.subr.mxu0 0.0
    %2342 = vmatpush1.msra.mxu0 0.0
    %2343 = vmatprep.subr.mxu0 0.0
    %2344 = vmatpush1.msra.mxu0 0.0
    %2345 = vmatprep.subr.mxu0 0.0
    %2346 = vmatpush1.msra.mxu0 0.0
    %2347 = vmatprep.subr.mxu0 0.0
    %2348 = vmatpush1.msra.mxu0 0.0
    %2349 = vmatprep.subr.mxu0 0.0
    %2350 = vmatpush1.msra.mxu0 0.0
    %2351 = vmatprep.subr.mxu0 0.0
    %2352 = vmatpush1.msra.mxu0 %v2316
    %2353 = vmatprep.subr.mxu0 0.0
    %2354 = vmatpush1.msra.mxu0 %v2315
    %2355 = vmatprep.subr.mxu0 0.0
    %2356 = vmatpush1.msra.mxu0 %v2314
    %2357 = vmatprep.subr.mxu0 0.0
    %2358 = vmatpush1.msra.mxu0 %v2313
    %2359 = vmatprep.subr.mxu0 0.0
    %2360 = vmatpush2.msra.mxu0 0.0
    %2361 = vmatprep.subr.mxu0 0.0
    %2362 = vmatpush2.msra.mxu0 0.0
    %2363 = vmatprep.subr.mxu0 0.0
    %2364 = vmatpush2.msra.mxu0 0.0
    %2365 = vmatprep.subr.mxu0 0.0
    %2366 = vmatpush2.msra.mxu0 0.0
    %2367 = vmatprep.subr.mxu0 0.0
    %2368 = vmatpush2.msra.mxu0 0.0
    %2369 = vmatprep.subr.mxu0 0.0
    %2370 = vmatpush2.msra.mxu0 0.0
    %2371 = vmatprep.subr.mxu0 0.0
    %2372 = vmatpush2.msra.mxu0 0.0
    %2373 = vmatprep.subr.mxu0 0.0
    %2374 = vmatpush2.msra.mxu0 0.0
    %2375 = vmatprep.subr.mxu0 0.0
    %2376 = vmatpush2.msra.mxu0 0.0
    %2377 = vmatprep.subr.mxu0 0.0
    %2378 = vmatpush2.msra.mxu0 0.0
    %2379 = vmatprep.subr.mxu0 0.0
    %2380 = vmatpush2.msra.mxu0 0.0
    %2381 = vmatprep.subr.mxu0 0.0
    %2382 = vmatpush2.msra.mxu0 0.0
    %2383 = vmatprep.subr.mxu0 0.0
    %2384 = vmatpush2.msra.mxu0 0.0
    %2385 = vmatprep.subr.mxu0 0.0
    %2386 = vmatpush2.msra.mxu0 0.0
    %2387 = vmatprep.subr.mxu0 0.0
    %2388 = vmatpush2.msra.mxu0 0.0
    %2389 = vmatprep.subr.mxu0 0.0
    %2390 = vmatpush2.msra.mxu0 0.0
    %2391 = vmatprep.mubr.f32.mxu0 0.0
    %2392 = vmatmul.mubr.f32.gmra.mxu0 %v2325
    %v2393 = vpop.f32.mrf.mxu0
    %v2394 = vadd.f32 %v2322, %v2393
    %v2395 = vpop.f32.mrf.mxu0
    %2396 = vdwg.mxu0
    %v2397 = vmax.f32 %v2394, 0.0
    %v2398 = vld [vmem:[%s9] sm:$0xff]
    %v2399 = vld [vmem:[%s9 + $0x8] sm:$0xff]
    %v2400 = vld [vmem:[%s9 + $0x10] sm:$0xff]
    %v2401 = vld [vmem:[%s9 + $0x18] sm:$0xff]
    %v2402 = vld [vmem:[%s9 + $0x20] sm:$0xff]
    %v2403 = vld [vmem:[%s9 + $0x28] sm:$0xff]
    %v2404 = vld [vmem:[%s9 + $0x30] sm:$0xff]
    %v2405 = vld [vmem:[%s9 + $0x38] sm:$0xff]
    %v2406 = vld [vmem:[%s10] sm:$0x1]
    %v2408 = vlaneseq
    %v2409 = vshrl.u32 %v2408, 7
    %v2410 = vsub.s32 0, %v2409
    %v2411 = vrot.slane %v2406, %v2410
    %v2414 = vsel %vm322, %v2397, 0
    %2416 = vmatprep.subr.mxu0 0.0
    %2417 = vmatpush1.msra.mxu0 0.0
    %2418 = vmatprep.subr.mxu0 0.0
    %2419 = vmatpush1.msra.mxu0 0.0
    %2420 = vmatprep.subr.mxu0 0.0
    %2421 = vmatpush1.msra.mxu0 0.0
    %2422 = vmatprep.subr.mxu0 0.0
    %2423 = vmatpush1.msra.mxu0 0.0
    %2424 = vmatprep.subr.mxu0 0.0
    %2425 = vmatpush1.msra.mxu0 0.0
    %2426 = vmatprep.subr.mxu0 0.0
    %2427 = vmatpush1.msra.mxu0 0.0
    %2428 = vmatprep.subr.mxu0 0.0
    %2429 = vmatpush1.msra.mxu0 0.0
    %2430 = vmatprep.subr.mxu0 0.0
    %2431 = vmatpush1.msra.mxu0 0.0
    %2432 = vmatprep.subr.mxu0 0.0
    %2433 = vmatpush1.msra.mxu0 %v2405
    %2434 = vmatprep.subr.mxu0 0.0
    %2435 = vmatpush1.msra.mxu0 %v2404
    %2436 = vmatprep.subr.mxu0 0.0
    %2437 = vmatpush1.msra.mxu0 %v2403
    %2438 = vmatprep.subr.mxu0 0.0
    %2439 = vmatpush1.msra.mxu0 %v2402
    %2440 = vmatprep.subr.mxu0 0.0
    %2441 = vmatpush1.msra.mxu0 %v2401
    %2442 = vmatprep.subr.mxu0 0.0
    %2443 = vmatpush1.msra.mxu0 %v2400
    %2444 = vmatprep.subr.mxu0 0.0
    %2445 = vmatpush1.msra.mxu0 %v2399
    %2446 = vmatprep.subr.mxu0 0.0
    %2447 = vmatpush1.msra.mxu0 %v2398
    %2448 = vmatprep.subr.mxu0 0.0
    %2449 = vmatpush2.msra.mxu0 0.0
    %2450 = vmatprep.subr.mxu0 0.0
    %2451 = vmatpush2.msra.mxu0 0.0
    %2452 = vmatprep.subr.mxu0 0.0
    %2453 = vmatpush2.msra.mxu0 0.0
    %2454 = vmatprep.subr.mxu0 0.0
    %2455 = vmatpush2.msra.mxu0 0.0
    %2456 = vmatprep.subr.mxu0 0.0
    %2457 = vmatpush2.msra.mxu0 0.0
    %2458 = vmatprep.subr.mxu0 0.0
    %2459 = vmatpush2.msra.mxu0 0.0
    %2460 = vmatprep.subr.mxu0 0.0
    %2461 = vmatpush2.msra.mxu0 0.0
    %2462 = vmatprep.subr.mxu0 0.0
    %2463 = vmatpush2.msra.mxu0 0.0
    %2464 = vmatprep.subr.mxu0 0.0
    %2465 = vmatpush2.msra.mxu0 0.0
    %2466 = vmatprep.subr.mxu0 0.0
    %2467 = vmatpush2.msra.mxu0 0.0
    %2468 = vmatprep.subr.mxu0 0.0
    %2469 = vmatpush2.msra.mxu0 0.0
    %2470 = vmatprep.subr.mxu0 0.0
    %2471 = vmatpush2.msra.mxu0 0.0
    %2472 = vmatprep.subr.mxu0 0.0
    %2473 = vmatpush2.msra.mxu0 0.0
    %2474 = vmatprep.subr.mxu0 0.0
    %2475 = vmatpush2.msra.mxu0 0.0
    %2476 = vmatprep.subr.mxu0 0.0
    %2477 = vmatpush2.msra.mxu0 0.0
    %2478 = vmatprep.subr.mxu0 0.0
    %2479 = vmatpush2.msra.mxu0 0.0
    %2480 = vmatprep.mubr.f32.mxu0 0.0
    %2481 = vmatmul.mubr.f32.gmra.mxu0 %v2414
    %v2482 = vpop.f32.mrf.mxu0
    %v2483 = vadd.f32 %v2411, %v2482
    %v2484 = vpop.f32.mrf.mxu0
    %2485 = vdwg.mxu0
    %v2486 = vmax.f32 %v2483, 0.0
    %v2487 = vld [vmem:[%s11] sm:$0xff]
    %v2488 = vld [vmem:[%s11 + $0x8] sm:$0xff]
    %v2489 = vld [vmem:[%s11 + $0x10] sm:$0xff]
    %v2490 = vld [vmem:[%s11 + $0x18] sm:$0xff]
    %v2491 = vld [vmem:[%s12] sm:$0x1]
    %v2493 = vlaneseq
    %v2494 = vshrl.u32 %v2493, 7
    %v2495 = vsub.s32 0, %v2494
    %v2496 = vrot.slane %v2491, %v2495
    %v2499 = vsel %vm429, %v2486, 0
    %2501 = vmatprep.subr.mxu0 0.0
    %2502 = vmatpush1.msra.mxu0 0.0
    %2503 = vmatprep.subr.mxu0 0.0
    %2504 = vmatpush1.msra.mxu0 0.0
    %2505 = vmatprep.subr.mxu0 0.0
    %2506 = vmatpush1.msra.mxu0 0.0
    %2507 = vmatprep.subr.mxu0 0.0
    %2508 = vmatpush1.msra.mxu0 0.0
    %2509 = vmatprep.subr.mxu0 0.0
    %2510 = vmatpush1.msra.mxu0 0.0
    %2511 = vmatprep.subr.mxu0 0.0
    %2512 = vmatpush1.msra.mxu0 0.0
    %2513 = vmatprep.subr.mxu0 0.0
    %2514 = vmatpush1.msra.mxu0 0.0
    %2515 = vmatprep.subr.mxu0 0.0
    %2516 = vmatpush1.msra.mxu0 0.0
    %2517 = vmatprep.subr.mxu0 0.0
    %2518 = vmatpush1.msra.mxu0 0.0
    %2519 = vmatprep.subr.mxu0 0.0
    %2520 = vmatpush1.msra.mxu0 0.0
    %2521 = vmatprep.subr.mxu0 0.0
    %2522 = vmatpush1.msra.mxu0 0.0
    %2523 = vmatprep.subr.mxu0 0.0
    %2524 = vmatpush1.msra.mxu0 0.0
    %2525 = vmatprep.subr.mxu0 0.0
    %2526 = vmatpush1.msra.mxu0 %v2490
    %2527 = vmatprep.subr.mxu0 0.0
    %2528 = vmatpush1.msra.mxu0 %v2489
    %2529 = vmatprep.subr.mxu0 0.0
    %2530 = vmatpush1.msra.mxu0 %v2488
    %2531 = vmatprep.subr.mxu0 0.0
    %2532 = vmatpush1.msra.mxu0 %v2487
    %2533 = vmatprep.subr.mxu0 0.0
    %2534 = vmatpush2.msra.mxu0 0.0
    %2535 = vmatprep.subr.mxu0 0.0
    %2536 = vmatpush2.msra.mxu0 0.0
    %2537 = vmatprep.subr.mxu0 0.0
    %2538 = vmatpush2.msra.mxu0 0.0
    %2539 = vmatprep.subr.mxu0 0.0
    %2540 = vmatpush2.msra.mxu0 0.0
    %2541 = vmatprep.subr.mxu0 0.0
    %2542 = vmatpush2.msra.mxu0 0.0
    %2543 = vmatprep.subr.mxu0 0.0
    %2544 = vmatpush2.msra.mxu0 0.0
    %2545 = vmatprep.subr.mxu0 0.0
    %2546 = vmatpush2.msra.mxu0 0.0
    %2547 = vmatprep.subr.mxu0 0.0
    %2548 = vmatpush2.msra.mxu0 0.0
    %2549 = vmatprep.subr.mxu0 0.0
    %2550 = vmatpush2.msra.mxu0 0.0
    %2551 = vmatprep.subr.mxu0 0.0
    %2552 = vmatpush2.msra.mxu0 0.0
    %2553 = vmatprep.subr.mxu0 0.0
    %2554 = vmatpush2.msra.mxu0 0.0
    %2555 = vmatprep.subr.mxu0 0.0
    %2556 = vmatpush2.msra.mxu0 0.0
    %2557 = vmatprep.subr.mxu0 0.0
    %2558 = vmatpush2.msra.mxu0 0.0
    %2559 = vmatprep.subr.mxu0 0.0
    %2560 = vmatpush2.msra.mxu0 0.0
    %2561 = vmatprep.subr.mxu0 0.0
    %2562 = vmatpush2.msra.mxu0 0.0
    %2563 = vmatprep.subr.mxu0 0.0
    %2564 = vmatpush2.msra.mxu0 0.0
    %2565 = vmatprep.mubr.f32.mxu0 0.0
    %2566 = vmatmul.mubr.f32.gmra.mxu0 %v2499
    %v2567 = vpop.f32.mrf.mxu0
    %v2568 = vadd.f32 %v2496, %v2567
    %v2569 = vpop.f32.mrf.mxu0
    %2570 = vdwg.mxu0
    %v2571 = vmax.f32 %v2568, 0.0
    %v2572 = vld [vmem:[%s13] sm:$0xff]
    %v2573 = vld [vmem:[#allocation4] sm:$0x1]
    %v2575 = vlaneseq
    %v2576 = vshrl.u32 %v2575, 7
    %v2577 = vsub.s32 0, %v2576
    %v2578 = vrot.slane %v2573, %v2577
    %vm2580 = vcmask 64512
    %v2582 = vsel %vm2580, %v2571, 0
    %2584 = vmatprep.subr.mxu0 0.0
    %2585 = vmatpush1.msra.mxu0 0.0
    %2586 = vmatprep.subr.mxu0 0.0
    %2587 = vmatpush1.msra.mxu0 0.0
    %2588 = vmatprep.subr.mxu0 0.0
    %2589 = vmatpush1.msra.mxu0 0.0
    %2590 = vmatprep.subr.mxu0 0.0
    %2591 = vmatpush1.msra.mxu0 0.0
    %2592 = vmatprep.subr.mxu0 0.0
    %2593 = vmatpush1.msra.mxu0 0.0
    %2594 = vmatprep.subr.mxu0 0.0
    %2595 = vmatpush1.msra.mxu0 0.0
    %2596 = vmatprep.subr.mxu0 0.0
    %2597 = vmatpush1.msra.mxu0 0.0
    %2598 = vmatprep.subr.mxu0 0.0
    %2599 = vmatpush1.msra.mxu0 0.0
    %2600 = vmatprep.subr.mxu0 0.0
    %2601 = vmatpush1.msra.mxu0 0.0
    %2602 = vmatprep.subr.mxu0 0.0
    %2603 = vmatpush1.msra.mxu0 0.0
    %2604 = vmatprep.subr.mxu0 0.0
    %2605 = vmatpush1.msra.mxu0 0.0
    %2606 = vmatprep.subr.mxu0 0.0
    %2607 = vmatpush1.msra.mxu0 0.0
    %2608 = vmatprep.subr.mxu0 0.0
    %2609 = vmatpush1.msra.mxu0 0.0
    %2610 = vmatprep.subr.mxu0 0.0
    %2611 = vmatpush1.msra.mxu0 0.0
    %2612 = vmatprep.subr.mxu0 0.0
    %2613 = vmatpush1.msra.mxu0 0.0
    %2614 = vmatprep.subr.mxu0 0.0
    %2615 = vmatpush1.msra.mxu0 %v2572
    %2616 = vmatprep.subr.mxu0 0.0
    %2617 = vmatpush2.msra.mxu0 0.0
    %2618 = vmatprep.subr.mxu0 0.0
    %2619 = vmatpush2.msra.mxu0 0.0
    %2620 = vmatprep.subr.mxu0 0.0
    %2621 = vmatpush2.msra.mxu0 0.0
    %2622 = vmatprep.subr.mxu0 0.0
    %2623 = vmatpush2.msra.mxu0 0.0
    %2624 = vmatprep.subr.mxu0 0.0
    %2625 = vmatpush2.msra.mxu0 0.0
    %2626 = vmatprep.subr.mxu0 0.0
    %2627 = vmatpush2.msra.mxu0 0.0
    %2628 = vmatprep.subr.mxu0 0.0
    %2629 = vmatpush2.msra.mxu0 0.0
    %2630 = vmatprep.subr.mxu0 0.0
    %2631 = vmatpush2.msra.mxu0 0.0
    %2632 = vmatprep.subr.mxu0 0.0
    %2633 = vmatpush2.msra.mxu0 0.0
    %2634 = vmatprep.subr.mxu0 0.0
    %2635 = vmatpush2.msra.mxu0 0.0
    %2636 = vmatprep.subr.mxu0 0.0
    %2637 = vmatpush2.msra.mxu0 0.0
    %2638 = vmatprep.subr.mxu0 0.0
    %2639 = vmatpush2.msra.mxu0 0.0
    %2640 = vmatprep.subr.mxu0 0.0
    %2641 = vmatpush2.msra.mxu0 0.0
    %2642 = vmatprep.subr.mxu0 0.0
    %2643 = vmatpush2.msra.mxu0 0.0
    %2644 = vmatprep.subr.mxu0 0.0
    %2645 = vmatpush2.msra.mxu0 0.0
    %2646 = vmatprep.subr.mxu0 0.0
    %2647 = vmatpush2.msra.mxu0 0.0
    %2648 = vmatprep.mubr.f32.mxu0 0.0
    %2649 = vmatmul.mubr.f32.gmra.mxu0 %v2582
    %v2650 = vpop.f32.mrf.mxu0
    %v2651 = vadd.f32 %v2578, %v2650
    %v2652 = vpop.f32.mrf.mxu0
    %2653 = vdwg.mxu0
    %vm2654 = vcmask 7168
    %2655 = vst.msk [vmem:[%s15] sm:$0xff] %vm2654, %v2651
    // Predicated region
    $region74: #{bidirection_lstm_forward.1} parent=1 // pred_check
      _
    $region75: #{bidirection_lstm_forward.1} parent=1 // pred_check_branch
      %2657 = sbr.rel (0) target = $region77
    $region76: #{bidirection_lstm_forward.1} parent=1 // pred_region
      _
    $region77: #{bidirection_lstm_forward.1} parent=1 // pred_fallthru
      _
    // Predicated region
    $region78: #{bidirection_lstm_forward.1} parent=1 // pred_check
      _
    $region79: #{bidirection_lstm_forward.1} parent=1 // pred_check_branch
      %2659 = sbr.rel (0) target = $region81
    $region80: #{bidirection_lstm_forward.1} parent=1 // pred_region
      _
    $region81: #{bidirection_lstm_forward.1} parent=1 // pred_fallthru
      _
    %2660 = vsyncpa [#allocation6], 1
    %2661 = vsyncpa [#allocation8], 1

</llo_original>
